<compile_context>
chip_gen: v7x
topology: tpu7x:2x2x1
jax: 0.10.0
libtpu: 0.0.40
codegen_flags: <defaults>
</compile_context>

<pallas_src>
import functools

import jax
import jax.numpy as jnp
from jax import lax
from jax.experimental import pallas as pl
from jax.experimental.pallas import tpu as pltpu

EPS = 1e-5
_LANE = 128
_G = 16          # guard rows on each side of the mid scratch (one bf16 (16,128) tile)


def _round_up(x, m):
    return (x + m - 1) // m * m


def _pick_tile_h(h):
    """Largest strip height dividing H that yields >=4 pipeline steps (>=2 as fallback)."""
    for min_strips in (4, 2):
        for th in (64, 32, 16, 8, 4, 2, 1):
            if h % th == 0 and h // th >= min_strips:
                return th
    return h


def _conv_block_kernel(x_ref, w1_ref, s1_ref, t1_ref, w2_ref, s2_ref, t2_ref,
                       o_ref, xs_ref, mid_ref, *, H, W, Wp, TH):
    # x_ref  : (1, Hp*Wp, Cin_p)  bf16  whole padded image of this batch (VMEM-resident over s)
    # w1_ref : (9, Cin_p, Cmid_p) bf16 ; w2_ref : (9, Cmid_p, Cout_p) bf16   (tap = ky*3 + kx)
    # s*/t*  : (1, C) f32 folded conv-bias + eval-mode BN scale/shift
    # o_ref  : (1, TH*Wp, Cout_p) bf16 output row-strip (flattened spatial)
    # xs_ref : ((TH+6)*Wp, Cin_p) bf16 staged input strip (+halo) scratch
    # mid_ref: (2*_G + (TH+2)*Wp, Cmid_p) bf16 conv1 activation strip with guard rows
    C_mid = mid_ref.shape[1]
    Lm = (TH + 2) * Wp            # mid rows: strip rows + 1-row halo on each side
    Lo = TH * Wp                  # output rows of this strip
    s = pl.program_id(1)

    # Stage this strip's input rows (incl. the conv1-of-conv2-halo rows) with ONE 16-aligned
    # dynamic slice of the resident image; all subsequent tap slices are static.
    start = pl.multiple_of(s * (TH * Wp), 16)
    xs_ref[...] = x_ref[0, pl.ds(start, (TH + 6) * Wp), :]

    def nine_tap(src_ref, base, rows, w_ref):
        # 9 whole-strip MXU matmuls summed in a traced f32 accumulator (single store by caller).
        acc = None
        for k in range(9):
            ky, kx = divmod(k, 3)
            patch = src_ref[pl.ds(base + ky * Wp + (kx - 1), rows), :]
            d = jnp.dot(patch, w_ref[k], preferred_element_type=jnp.float32)
            acc = d if acc is None else acc + d
        return acc

    # ---- conv1 + folded bias/BN + ReLU; zero the padded columns so they act as conv2's
    #      horizontal zero padding; single bf16 store into the mid scratch ----
    acc1 = nine_tap(xs_ref, Wp, Lm, w1_ref)
    col = lax.broadcasted_iota(jnp.int32, (Lm, 1), 0) % Wp       # strip-invariant column mask
    keep = (col >= 1) & (col <= W)
    mid = jnp.maximum(acc1 * s1_ref[...] + t1_ref[...], 0.0)
    mid_ref[pl.ds(_G, Lm), :] = jnp.where(keep, mid, 0.0).astype(mid_ref.dtype)

    # Guard rows adjacent to the strip: conv2's corner taps read one row before/after the strip;
    # zero them so they never see stale VMEM.
    zeros_g = jnp.zeros((_G, C_mid), mid_ref.dtype)
    mid_ref[pl.ds(0, _G), :] = zeros_g
    mid_ref[pl.ds(_G + Lm, _G), :] = zeros_g

    # Rows outside the image (top halo of the first strip / bottom halo of the last strip) are
    # conv2's vertical zero padding -- gated so interior strips pay nothing.
    @pl.when(s == 0)
    def _():
        mid_ref[pl.ds(_G, Wp), :] = jnp.zeros((Wp, C_mid), mid_ref.dtype)

    @pl.when(s == pl.num_programs(1) - 1)
    def _():
        mid_ref[pl.ds(_G + (TH + 1) * Wp, Wp), :] = jnp.zeros((Wp, C_mid), mid_ref.dtype)

    # ---- conv2 + folded bias/BN + ReLU; single bf16 store to the lane-dense output block ----
    acc2 = nine_tap(mid_ref, _G, Lo, w2_ref)
    o_ref[0] = jnp.maximum(acc2 * s2_ref[...] + t2_ref[...], 0.0).astype(o_ref.dtype)


def conv_block_nested_forward(x_nchw, params):
    (w1, b1, g1, bt1, m1, v1, w2, b2, g2, bt2, m2, v2) = params
    N, Cin, H, W = x_nchw.shape
    Cmid, Cout = w1.shape[0], w2.shape[0]

    Cin_p, Cmid_p, Cout_p = (_round_up(c, _LANE) for c in (Cin, Cmid, Cout))
    Wp = _round_up(W + 2, 16)      # >=1 zero col each side; bf16 sublane-tile aligned rows
    Hp = H + 6                     # 3 zero rows above + 3 below (conv1-of-halo + wrap guard)
    TH = _pick_tile_h(H)
    S = H // TH
    Lm = (TH + 2) * Wp

    # NCHW -> NHWC in bf16 (pad/copy in bf16, not f32), pad channels to 128 lanes and spatial
    # borders, flatten spatial row-major.  No per-strip slab stacking.
    x = jnp.transpose(x_nchw, (0, 2, 3, 1)).astype(jnp.bfloat16)
    x = jnp.pad(x, ((0, 0), (3, 3), (1, Wp - W - 1), (0, Cin_p - Cin)))
    x_flat = x.reshape(N, Hp * Wp, Cin_p)

    def prep_w(w, cin_p, cout_p):  # torch OIHW -> (tap, Cin_p, Cout_p), bf16 for the MXU
        w = jnp.transpose(w, (2, 3, 1, 0)).astype(jnp.float32)     # HWIO
        w = jnp.pad(w, ((0, 0), (0, 0), (0, cin_p - w.shape[2]), (0, cout_p - w.shape[3])))
        return w.reshape(9, cin_p, cout_p).astype(jnp.bfloat16)

    def fold_bn(b, g, bt, m, v, cp):  # conv bias + eval-mode BN -> per-channel scale/shift
        sc = g / jnp.sqrt(v + EPS)
        sh = bt + (b - m) * sc
        pad = (0, cp - sc.shape[0])
        return (jnp.pad(sc, pad).reshape(1, cp).astype(jnp.float32),
                jnp.pad(sh, pad).reshape(1, cp).astype(jnp.float32))

    w1p, w2p = prep_w(w1, Cin_p, Cmid_p), prep_w(w2, Cmid_p, Cout_p)
    s1, t1 = fold_bn(b1, g1, bt1, m1, v1, Cmid_p)
    s2, t2 = fold_bn(b2, g2, bt2, m2, v2, Cout_p)

    kernel = functools.partial(_conv_block_kernel, H=H, W=W, Wp=Wp, TH=TH)

    # Explicit VMEM budget (double-buffered blocks + scratch + accumulator temps) -> scoped limit.
    need = (2 * Hp * Wp * Cin_p * 2                               # resident input image
            + 2 * 9 * (Cin_p * Cmid_p + Cmid_p * Cout_p) * 2      # weights
            + 2 * TH * Wp * Cout_p * 2                            # bf16 output block
            + (TH + 6) * Wp * Cin_p * 2                           # staged input strip
            + (2 * _G + Lm) * Cmid_p * 2                          # mid scratch
            + 4 * Lm * max(Cmid_p, Cout_p) * 4)                   # f32 accumulator temps
    try:
        vmem_cap = int(pltpu.get_tpu_info().vmem_capacity_bytes)
    except Exception:
        vmem_cap = 64 * 1024 * 1024
    vmem_limit = int(max(32 * 1024 * 1024, min(need + (8 << 20), vmem_cap - (4 << 20))))

    flops = 2 * N * S * 9 * (Lm * Cin_p * Cmid_p + TH * Wp * Cmid_p * Cout_p)
    bytes_accessed = (x_flat.size * 2 + w1p.size * 2 + w2p.size * 2
                      + (s1.size + t1.size + s2.size + t2.size) * 4
                      + N * H * Wp * Cout_p * 2)

    out_flat = pl.pallas_call(
        kernel,
        out_shape=jax.ShapeDtypeStruct((N, H * Wp, Cout_p), jnp.bfloat16),
        grid_spec=pltpu.PrefetchScalarGridSpec(
            num_scalar_prefetch=0,
            grid=(N, S),
            in_specs=[
                # whole padded image of batch n: constant over s -> DMA'd once, VMEM-resident
                pl.BlockSpec((1, Hp * Wp, Cin_p), lambda n, s: (n, 0, 0)),
                pl.BlockSpec((9, Cin_p, Cmid_p), lambda n, s: (0, 0, 0)),
                pl.BlockSpec((1, Cmid_p), lambda n, s: (0, 0)),
                pl.BlockSpec((1, Cmid_p), lambda n, s: (0, 0)),
                pl.BlockSpec((9, Cmid_p, Cout_p), lambda n, s: (0, 0, 0)),
                pl.BlockSpec((1, Cout_p), lambda n, s: (0, 0)),
                pl.BlockSpec((1, Cout_p), lambda n, s: (0, 0)),
            ],
            out_specs=pl.BlockSpec((1, TH * Wp, Cout_p), lambda n, s: (n, s, 0)),
            scratch_shapes=[
                pltpu.VMEM(((TH + 6) * Wp, Cin_p), jnp.bfloat16),   # staged input strip (+halo)
                pltpu.VMEM((2 * _G + Lm, Cmid_p), jnp.bfloat16),    # conv1 activations + guards
            ],
        ),
        compiler_params=pltpu.CompilerParams(
            dimension_semantics=("parallel", "parallel"),
            vmem_limit_bytes=vmem_limit),
        cost_estimate=pl.CostEstimate(flops=int(flops), transcendentals=0,
                                      bytes_accessed=int(bytes_accessed)),
    )(x_flat, w1p, s1, t1, w2p, s2, t2)

    # drop padded width columns / padded output channels, back to NCHW in the input dtype
    out = out_flat.reshape(N, H, Wp, Cout_p)[:, :, 1:W + 1, :Cout]
    return jnp.transpose(out, (0, 3, 1, 2)).astype(x_nchw.dtype)


def reference_forward(x_nchw, params):
    """Pure-JAX f32 reference (matches PyTorch eval-mode forward)."""
    (w1, b1, g1, bt1, m1, v1, w2, b2, g2, bt2, m2, v2) = params

    def conv(x, w, b):
        y = lax.conv_general_dilated(
            x, w, window_strides=(1, 1), padding=((1, 1), (1, 1)),
            dimension_numbers=("NCHW", "OIHW", "NCHW"))
        return y + b[None, :, None, None]

    def bn(x, g, bt, m, v):
        return ((x - m[None, :, None, None])
                / jnp.sqrt(v[None, :, None, None] + EPS)
                * g[None, :, None, None] + bt[None, :, None, None])

    y = jnp.maximum(bn(conv(x_nchw, w1, b1), g1, bt1, m1, v1), 0.0)
    y = jnp.maximum(bn(conv(y, w2, b2), g2, bt2, m2, v2), 0.0)
    return y


def make_params(key, in_ch, mid_ch, out_ch):
    ks = jax.random.split(key, 10)
    w1 = 0.2 * jax.random.normal(ks[0], (mid_ch, in_ch, 3, 3), jnp.float32)
    b1 = 0.1 * jax.random.normal(ks[1], (mid_ch,), jnp.float32)
    g1 = 1.0 + 0.1 * jax.random.normal(ks[2], (mid_ch,), jnp.float32)
    bt1 = 0.1 * jax.random.normal(ks[3], (mid_ch,), jnp.float32)
    m1 = 0.05 * jax.random.normal(ks[4], (mid_ch,), jnp.float32)
    v1 = 0.5 + jnp.abs(jax.random.normal(ks[5], (mid_ch,), jnp.float32))
    w2 = 0.2 * jax.random.normal(ks[6], (out_ch, mid_ch, 3, 3), jnp.float32)
    b2 = 0.1 * jax.random.normal(ks[7], (out_ch,), jnp.float32)
    g2 = 1.0 + 0.1 * jax.random.normal(ks[8], (out_ch,), jnp.float32)
    bt2 = 0.1 * jax.random.normal(ks[9], (out_ch,), jnp.float32)
    m2 = jnp.linspace(-0.1, 0.1, out_ch, dtype=jnp.float32)
    v2 = 0.5 + jnp.linspace(0.0, 1.0, out_ch, dtype=jnp.float32)
    return (w1, b1, g1, bt1, m1, v1, w2, b2, g2, bt2, m2, v2)


if __name__ == "__main__":
    key = jax.random.PRNGKey(0)
    k_x, k_p = jax.random.split(key)

    N, in_ch, mid_ch, out_ch, H, W = 2, 4, 8, 8, 16, 16
    x = jax.random.normal(k_x, (N, in_ch, H, W), jnp.float32)
    params = make_params(k_p, in_ch, mid_ch, out_ch)

    out = conv_block_nested_forward(x, params)
    out = jax.block_until_ready(out)

    ref = reference_forward(x, params)
    assert out.shape == (N, out_ch, H, W)
    # tolerance reflects bf16 MXU operands / bf16 activations+output vs the pure-f32 reference
    assert jnp.allclose(out, ref, atol=1e-1, rtol=5e-2), (
        float(jnp.max(jnp.abs(out - ref))))
    print("KERNEL_OK")
</pallas_src>

<mosaic_0001>
module attributes {stable_mosaic.version = 11 : i64} {
  func.func @_conv_block_kernel(%arg0: i32, %arg1: i32, %arg2: memref<1x704x128xbf16, #tpu.memory_space<vmem>>, %arg3: memref<9x128x128xbf16, #tpu.memory_space<vmem>>, %arg4: memref<1x128xf32, #tpu.memory_space<vmem>>, %arg5: memref<1x128xf32, #tpu.memory_space<vmem>>, %arg6: memref<9x128x128xbf16, #tpu.memory_space<vmem>>, %arg7: memref<1x128xf32, #tpu.memory_space<vmem>>, %arg8: memref<1x128xf32, #tpu.memory_space<vmem>>, %arg9: memref<1x128x128xbf16, #tpu.memory_space<vmem>>, %arg10: memref<320x128xbf16, #tpu.memory_space<vmem>>, %arg11: memref<224x128xbf16, #tpu.memory_space<vmem>>) attributes {dimension_semantics = [#tpu.dimension_semantics<parallel>, #tpu.dimension_semantics<parallel>], iteration_bounds = array<i64: 2, 4>, scalar_prefetch = 0 : i64, scratch_operands = 2 : i64, tpu.core_type = #tpu.core_type<tc>, window_params = [{transform_indices = @transform_0, window_bounds = array<i64: 1, 704, 128>}, {pipeline_mode = #tpu.pipeline_mode<synchronous>, transform_indices = @transform_1, window_bounds = array<i64: 9, 128, 128>}, {pipeline_mode = #tpu.pipeline_mode<synchronous>, transform_indices = @transform_2, window_bounds = array<i64: 1, 128>}, {pipeline_mode = #tpu.pipeline_mode<synchronous>, transform_indices = @transform_3, window_bounds = array<i64: 1, 128>}, {pipeline_mode = #tpu.pipeline_mode<synchronous>, transform_indices = @transform_4, window_bounds = array<i64: 9, 128, 128>}, {pipeline_mode = #tpu.pipeline_mode<synchronous>, transform_indices = @transform_5, window_bounds = array<i64: 1, 128>}, {pipeline_mode = #tpu.pipeline_mode<synchronous>, transform_indices = @transform_6, window_bounds = array<i64: 1, 128>}, {transform_indices = @transform_7, window_bounds = array<i64: 1, 128, 128>}]} {
    %c128_i32 = arith.constant 128 : i32
    %0 = arith.muli %arg1, %c128_i32 : i32
    %1 = tpu.assume_multiple %0, 16 : i32
    %c0 = arith.constant 0 : index
    %2 = arith.index_cast %1 : i32 to index
    %c0_0 = arith.constant 0 : index
    %3 = vector.load %arg2[%c0, %2, %c0_0] : memref<1x704x128xbf16, #tpu.memory_space<vmem>>, vector<1x320x128xbf16>
    %4 = vector.shape_cast %3 : vector<1x320x128xbf16> to vector<320x128xbf16>
    %c0_1 = arith.constant 0 : index
    %c0_2 = arith.constant 0 : index
    %5 = vector.load %arg10[%c0_1, %c0_2] : memref<320x128xbf16, #tpu.memory_space<vmem>>, vector<320x128xbf16>
    tpu.vector_store %arg10[%c0_1, %c0_2], %4 {strides = array<i32>} : memref<320x128xbf16, #tpu.memory_space<vmem>>, vector<320x128xbf16>,
    %c31 = arith.constant 31 : index
    %c0_3 = arith.constant 0 : index
    %6 = vector.load %arg10[%c31, %c0_3] : memref<320x128xbf16, #tpu.memory_space<vmem>>, vector<192x128xbf16>
    %c0_4 = arith.constant 0 : index
    %c0_5 = arith.constant 0 : index
    %c0_6 = arith.constant 0 : index
    %7 = vector.load %arg3[%c0_4, %c0_5, %c0_6] : memref<9x128x128xbf16, #tpu.memory_space<vmem>>, vector<1x128x128xbf16>
    %8 = vector.shape_cast %7 : vector<1x128x128xbf16> to vector<128x128xbf16>
    %cst = arith.constant dense<0.000000e+00> : vector<192x128xf32>
    %9 = tpu.matmul %6, %8, %cst {dimension_numbers = #tpu.dot_dimension_numbers<[1], [0], [0], [1], [0, 0, 1, 1], [], []>} : vector<192x128xbf16>, vector<128x128xbf16>, vector<192x128xf32> -> vector<192x128xf32>
    %c32 = arith.constant 32 : index
    %c0_7 = arith.constant 0 : index
    %10 = vector.load %arg10[%c32, %c0_7] : memref<320x128xbf16, #tpu.memory_space<vmem>>, vector<192x128xbf16>
    %c1 = arith.constant 1 : index
    %c0_8 = arith.constant 0 : index
    %c0_9 = arith.constant 0 : index
    %11 = vector.load %arg3[%c1, %c0_8, %c0_9] : memref<9x128x128xbf16, #tpu.memory_space<vmem>>, vector<1x128x128xbf16>
    %12 = vector.shape_cast %11 : vector<1x128x128xbf16> to vector<128x128xbf16>
    %cst_10 = arith.constant dense<0.000000e+00> : vector<192x128xf32>
    %13 = tpu.matmul %10, %12, %cst_10 {dimension_numbers = #tpu.dot_dimension_numbers<[1], [0], [0], [1], [0, 0, 1, 1], [], []>} : vector<192x128xbf16>, vector<128x128xbf16>, vector<192x128xf32> -> vector<192x128xf32>
    %14 = arith.addf %9, %13 : vector<192x128xf32>
    %c33 = arith.constant 33 : index
    %c0_11 = arith.constant 0 : index
    %15 = vector.load %arg10[%c33, %c0_11] : memref<320x128xbf16, #tpu.memory_space<vmem>>, vector<192x128xbf16>
    %c2 = arith.constant 2 : index
    %c0_12 = arith.constant 0 : index
    %c0_13 = arith.constant 0 : index
    %16 = vector.load %arg3[%c2, %c0_12, %c0_13] : memref<9x128x128xbf16, #tpu.memory_space<vmem>>, vector<1x128x128xbf16>
    %17 = vector.shape_cast %16 : vector<1x128x128xbf16> to vector<128x128xbf16>
    %cst_14 = arith.constant dense<0.000000e+00> : vector<192x128xf32>
    %18 = tpu.matmul %15, %17, %cst_14 {dimension_numbers = #tpu.dot_dimension_numbers<[1], [0], [0], [1], [0, 0, 1, 1], [], []>} : vector<192x128xbf16>, vector<128x128xbf16>, vector<192x128xf32> -> vector<192x128xf32>
    %19 = arith.addf %14, %18 : vector<192x128xf32>
    %c63 = arith.constant 63 : index
    %c0_15 = arith.constant 0 : index
    %20 = vector.load %arg10[%c63, %c0_15] : memref<320x128xbf16, #tpu.memory_space<vmem>>, vector<192x128xbf16>
    %c3 = arith.constant 3 : index
    %c0_16 = arith.constant 0 : index
    %c0_17 = arith.constant 0 : index
    %21 = vector.load %arg3[%c3, %c0_16, %c0_17] : memref<9x128x128xbf16, #tpu.memory_space<vmem>>, vector<1x128x128xbf16>
    %22 = vector.shape_cast %21 : vector<1x128x128xbf16> to vector<128x128xbf16>
    %cst_18 = arith.constant dense<0.000000e+00> : vector<192x128xf32>
    %23 = tpu.matmul %20, %22, %cst_18 {dimension_numbers = #tpu.dot_dimension_numbers<[1], [0], [0], [1], [0, 0, 1, 1], [], []>} : vector<192x128xbf16>, vector<128x128xbf16>, vector<192x128xf32> -> vector<192x128xf32>
    %24 = arith.addf %19, %23 : vector<192x128xf32>
    %c64 = arith.constant 64 : index
    %c0_19 = arith.constant 0 : index
    %25 = vector.load %arg10[%c64, %c0_19] : memref<320x128xbf16, #tpu.memory_space<vmem>>, vector<192x128xbf16>
    %c4 = arith.constant 4 : index
    %c0_20 = arith.constant 0 : index
    %c0_21 = arith.constant 0 : index
    %26 = vector.load %arg3[%c4, %c0_20, %c0_21] : memref<9x128x128xbf16, #tpu.memory_space<vmem>>, vector<1x128x128xbf16>
    %27 = vector.shape_cast %26 : vector<1x128x128xbf16> to vector<128x128xbf16>
    %cst_22 = arith.constant dense<0.000000e+00> : vector<192x128xf32>
    %28 = tpu.matmul %25, %27, %cst_22 {dimension_numbers = #tpu.dot_dimension_numbers<[1], [0], [0], [1], [0, 0, 1, 1], [], []>} : vector<192x128xbf16>, vector<128x128xbf16>, vector<192x128xf32> -> vector<192x128xf32>
    %29 = arith.addf %24, %28 : vector<192x128xf32>
    %c65 = arith.constant 65 : index
    %c0_23 = arith.constant 0 : index
    %30 = vector.load %arg10[%c65, %c0_23] : memref<320x128xbf16, #tpu.memory_space<vmem>>, vector<192x128xbf16>
    %c5 = arith.constant 5 : index
    %c0_24 = arith.constant 0 : index
    %c0_25 = arith.constant 0 : index
    %31 = vector.load %arg3[%c5, %c0_24, %c0_25] : memref<9x128x128xbf16, #tpu.memory_space<vmem>>, vector<1x128x128xbf16>
    %32 = vector.shape_cast %31 : vector<1x128x128xbf16> to vector<128x128xbf16>
    %cst_26 = arith.constant dense<0.000000e+00> : vector<192x128xf32>
    %33 = tpu.matmul %30, %32, %cst_26 {dimension_numbers = #tpu.dot_dimension_numbers<[1], [0], [0], [1], [0, 0, 1, 1], [], []>} : vector<192x128xbf16>, vector<128x128xbf16>, vector<192x128xf32> -> vector<192x128xf32>
    %34 = arith.addf %29, %33 : vector<192x128xf32>
    %c95 = arith.constant 95 : index
    %c0_27 = arith.constant 0 : index
    %35 = vector.load %arg10[%c95, %c0_27] : memref<320x128xbf16, #tpu.memory_space<vmem>>, vector<192x128xbf16>
    %c6 = arith.constant 6 : index
    %c0_28 = arith.constant 0 : index
    %c0_29 = arith.constant 0 : index
    %36 = vector.load %arg3[%c6, %c0_28, %c0_29] : memref<9x128x128xbf16, #tpu.memory_space<vmem>>, vector<1x128x128xbf16>
    %37 = vector.shape_cast %36 : vector<1x128x128xbf16> to vector<128x128xbf16>
    %cst_30 = arith.constant dense<0.000000e+00> : vector<192x128xf32>
    %38 = tpu.matmul %35, %37, %cst_30 {dimension_numbers = #tpu.dot_dimension_numbers<[1], [0], [0], [1], [0, 0, 1, 1], [], []>} : vector<192x128xbf16>, vector<128x128xbf16>, vector<192x128xf32> -> vector<192x128xf32>
    %39 = arith.addf %34, %38 : vector<192x128xf32>
    %c96 = arith.constant 96 : index
    %c0_31 = arith.constant 0 : index
    %40 = vector.load %arg10[%c96, %c0_31] : memref<320x128xbf16, #tpu.memory_space<vmem>>, vector<192x128xbf16>
    %c7 = arith.constant 7 : index
    %c0_32 = arith.constant 0 : index
    %c0_33 = arith.constant 0 : index
    %41 = vector.load %arg3[%c7, %c0_32, %c0_33] : memref<9x128x128xbf16, #tpu.memory_space<vmem>>, vector<1x128x128xbf16>
    %42 = vector.shape_cast %41 : vector<1x128x128xbf16> to vector<128x128xbf16>
    %cst_34 = arith.constant dense<0.000000e+00> : vector<192x128xf32>
    %43 = tpu.matmul %40, %42, %cst_34 {dimension_numbers = #tpu.dot_dimension_numbers<[1], [0], [0], [1], [0, 0, 1, 1], [], []>} : vector<192x128xbf16>, vector<128x128xbf16>, vector<192x128xf32> -> vector<192x128xf32>
    %44 = arith.addf %39, %43 : vector<192x128xf32>
    %c97 = arith.constant 97 : index
    %c0_35 = arith.constant 0 : index
    %45 = vector.load %arg10[%c97, %c0_35] : memref<320x128xbf16, #tpu.memory_space<vmem>>, vector<192x128xbf16>
    %c8 = arith.constant 8 : index
    %c0_36 = arith.constant 0 : index
    %c0_37 = arith.constant 0 : index
    %46 = vector.load %arg3[%c8, %c0_36, %c0_37] : memref<9x128x128xbf16, #tpu.memory_space<vmem>>, vector<1x128x128xbf16>
    %47 = vector.shape_cast %46 : vector<1x128x128xbf16> to vector<128x128xbf16>
    %cst_38 = arith.constant dense<0.000000e+00> : vector<192x128xf32>
    %48 = tpu.matmul %45, %47, %cst_38 {dimension_numbers = #tpu.dot_dimension_numbers<[1], [0], [0], [1], [0, 0, 1, 1], [], []>} : vector<192x128xbf16>, vector<128x128xbf16>, vector<192x128xf32> -> vector<192x128xf32>
    %49 = arith.addf %44, %48 : vector<192x128xf32>
    %50 = tpu.iota {dimensions = array<i32: 0>} : vector<192x1xi32>
    %c32_i32 = arith.constant 32 : i32
    %c0_i32 = arith.constant 0 : i32
    %51 = arith.cmpi eq, %c32_i32, %c0_i32 : i32
    %c1_i32 = arith.constant 1 : i32
    %52 = arith.select %51, %c1_i32, %c32_i32 : i32
    %53 = vector.broadcast %52 : i32 to vector<192x1xi32>
    %54 = arith.remsi %50, %53 : vector<192x1xi32>
    %c0_i32_39 = arith.constant 0 : i32
    %55 = vector.broadcast %c0_i32_39 : i32 to vector<192x1xi32>
    %56 = arith.cmpi ne, %54, %55 : vector<192x1xi32>
    %c0_i32_40 = arith.constant 0 : i32
    %57 = vector.broadcast %c0_i32_40 : i32 to vector<192x1xi32>
    %58 = arith.cmpi slt, %54, %57 : vector<192x1xi32>
    %c0_i32_41 = arith.constant 0 : i32
    %59 = arith.cmpi slt, %52, %c0_i32_41 : i32
    %60 = vector.broadcast %59 : i1 to vector<192x1xi1>
    %61 = vector.broadcast %60 : vector<192x1xi1> to vector<192x1xi1>
    %62 = arith.xori %58, %61 : vector<192x1xi1>
    %63 = arith.andi %62, %56 : vector<192x1xi1>
    %64 = vector.broadcast %52 : i32 to vector<192x1xi32>
    %65 = arith.addi %54, %64 : vector<192x1xi32>
    %66 = arith.select %63, %65, %54 : vector<192x1xi1>, vector<192x1xi32>
    %c1_i32_42 = arith.constant 1 : i32
    %67 = vector.broadcast %c1_i32_42 : i32 to vector<192x1xi32>
    %68 = arith.cmpi sge, %66, %67 : vector<192x1xi32>
    %c16_i32 = arith.constant 16 : i32
    %69 = vector.broadcast %c16_i32 : i32 to vector<192x1xi32>
    %70 = arith.cmpi sle, %66, %69 : vector<192x1xi32>
    %71 = arith.andi %68, %70 : vector<192x1xi1>
    %c0_43 = arith.constant 0 : index
    %c0_44 = arith.constant 0 : index
    %72 = vector.load %arg4[%c0_43, %c0_44] : memref<1x128xf32, #tpu.memory_space<vmem>>, vector<1x128xf32>
    %73 = vector.broadcast %72 : vector<1x128xf32> to vector<192x128xf32>
    %74 = arith.mulf %49, %73 : vector<192x128xf32>
    %c0_45 = arith.constant 0 : index
    %c0_46 = arith.constant 0 : index
    %75 = vector.load %arg5[%c0_45, %c0_46] : memref<1x128xf32, #tpu.memory_space<vmem>>, vector<1x128xf32>
    %76 = vector.broadcast %75 : vector<1x128xf32> to vector<192x128xf32>
    %77 = arith.addf %74, %76 : vector<192x128xf32>
    %cst_47 = arith.constant 0.000000e+00 : f32
    %78 = vector.broadcast %cst_47 : f32 to vector<192x128xf32>
    %79 = arith.maximumf %77, %78 : vector<192x128xf32>
    %cst_48 = arith.constant 0.000000e+00 : f32
    %80 = vector.shape_cast %71 : vector<192x1xi1> to vector<192x1xi1>
    %81 = vector.broadcast %80 : vector<192x1xi1> to vector<192x128xi1>
    %82 = vector.broadcast %cst_48 : f32 to vector<192x128xf32>
    %83 = arith.select %81, %79, %82 : vector<192x128xi1>, vector<192x128xf32>
    %84 = arith.truncf %83 : vector<192x128xf32> to vector<192x128xbf16>
    %c16 = arith.constant 16 : index
    %c0_49 = arith.constant 0 : index
    %85 = vector.load %arg11[%c16, %c0_49] : memref<224x128xbf16, #tpu.memory_space<vmem>>, vector<192x128xbf16>
    tpu.vector_store %arg11[%c16, %c0_49], %84 {strides = array<i32>} : memref<224x128xbf16, #tpu.memory_space<vmem>>, vector<192x128xbf16>,
    %cst_50 = arith.constant 0.000000e+00 : bf16
    %86 = vector.broadcast %cst_50 : bf16 to vector<16x128xbf16>
    %c0_51 = arith.constant 0 : index
    %c0_52 = arith.constant 0 : index
    %87 = vector.load %arg11[%c0_51, %c0_52] : memref<224x128xbf16, #tpu.memory_space<vmem>>, vector<16x128xbf16>
    tpu.vector_store %arg11[%c0_51, %c0_52], %86 {strides = array<i32>} : memref<224x128xbf16, #tpu.memory_space<vmem>>, vector<16x128xbf16>,
    %c208 = arith.constant 208 : index
    %c0_53 = arith.constant 0 : index
    %88 = vector.load %arg11[%c208, %c0_53] : memref<224x128xbf16, #tpu.memory_space<vmem>>, vector<16x128xbf16>
    tpu.vector_store %arg11[%c208, %c0_53], %86 {strides = array<i32>} : memref<224x128xbf16, #tpu.memory_space<vmem>>, vector<16x128xbf16>,
    %c0_i32_54 = arith.constant 0 : i32
    %89 = arith.cmpi eq, %arg1, %c0_i32_54 : i32
    %90 = arith.extui %89 : i1 to i32
    %c0_i32_55 = arith.constant 0 : i32
    %91 = arith.cmpi ne, %90, %c0_i32_55 : i32
    scf.if %91 {
      %cst_111 = arith.constant 0.000000e+00 : bf16
      %151 = vector.broadcast %cst_111 : bf16 to vector<32x128xbf16>
      %c16_112 = arith.constant 16 : index
      %c0_113 = arith.constant 0 : index
      %152 = vector.load %arg11[%c16_112, %c0_113] : memref<224x128xbf16, #tpu.memory_space<vmem>>, vector<32x128xbf16>
      tpu.vector_store %arg11[%c16_112, %c0_113], %151 {strides = array<i32>} : memref<224x128xbf16, #tpu.memory_space<vmem>>, vector<32x128xbf16>,
    } else {
    }
    %c3_i32 = arith.constant 3 : i32
    %92 = arith.cmpi eq, %arg1, %c3_i32 : i32
    %93 = arith.extui %92 : i1 to i32
    %c0_i32_56 = arith.constant 0 : i32
    %94 = arith.cmpi ne, %93, %c0_i32_56 : i32
    scf.if %94 {
      %cst_111 = arith.constant 0.000000e+00 : bf16
      %151 = vector.broadcast %cst_111 : bf16 to vector<32x128xbf16>
      %c176 = arith.constant 176 : index
      %c0_112 = arith.constant 0 : index
      %152 = vector.load %arg11[%c176, %c0_112] : memref<224x128xbf16, #tpu.memory_space<vmem>>, vector<32x128xbf16>
      tpu.vector_store %arg11[%c176, %c0_112], %151 {strides = array<i32>} : memref<224x128xbf16, #tpu.memory_space<vmem>>, vector<32x128xbf16>,
    } else {
    }
    %c15 = arith.constant 15 : index
    %c0_57 = arith.constant 0 : index
    %95 = vector.load %arg11[%c15, %c0_57] : memref<224x128xbf16, #tpu.memory_space<vmem>>, vector<128x128xbf16>
    %c0_58 = arith.constant 0 : index
    %c0_59 = arith.constant 0 : index
    %c0_60 = arith.constant 0 : index
    %96 = vector.load %arg6[%c0_58, %c0_59, %c0_60] : memref<9x128x128xbf16, #tpu.memory_space<vmem>>, vector<1x128x128xbf16>
    %97 = vector.shape_cast %96 : vector<1x128x128xbf16> to vector<128x128xbf16>
    %cst_61 = arith.constant dense<0.000000e+00> : vector<128x128xf32>
    %98 = tpu.matmul %95, %97, %cst_61 {dimension_numbers = #tpu.dot_dimension_numbers<[1], [0], [0], [1], [0, 0, 1, 1], [], []>} : vector<128x128xbf16>, vector<128x128xbf16>, vector<128x128xf32> -> vector<128x128xf32>
    %c16_62 = arith.constant 16 : index
    %c0_63 = arith.constant 0 : index
    %99 = vector.load %arg11[%c16_62, %c0_63] : memref<224x128xbf16, #tpu.memory_space<vmem>>, vector<128x128xbf16>
    %c1_64 = arith.constant 1 : index
    %c0_65 = arith.constant 0 : index
    %c0_66 = arith.constant 0 : index
    %100 = vector.load %arg6[%c1_64, %c0_65, %c0_66] : memref<9x128x128xbf16, #tpu.memory_space<vmem>>, vector<1x128x128xbf16>
    %101 = vector.shape_cast %100 : vector<1x128x128xbf16> to vector<128x128xbf16>
    %cst_67 = arith.constant dense<0.000000e+00> : vector<128x128xf32>
    %102 = tpu.matmul %99, %101, %cst_67 {dimension_numbers = #tpu.dot_dimension_numbers<[1], [0], [0], [1], [0, 0, 1, 1], [], []>} : vector<128x128xbf16>, vector<128x128xbf16>, vector<128x128xf32> -> vector<128x128xf32>
    %103 = arith.addf %98, %102 : vector<128x128xf32>
    %c17 = arith.constant 17 : index
    %c0_68 = arith.constant 0 : index
    %104 = vector.load %arg11[%c17, %c0_68] : memref<224x128xbf16, #tpu.memory_space<vmem>>, vector<128x128xbf16>
    %c2_69 = arith.constant 2 : index
    %c0_70 = arith.constant 0 : index
    %c0_71 = arith.constant 0 : index
    %105 = vector.load %arg6[%c2_69, %c0_70, %c0_71] : memref<9x128x128xbf16, #tpu.memory_space<vmem>>, vector<1x128x128xbf16>
    %106 = vector.shape_cast %105 : vector<1x128x128xbf16> to vector<128x128xbf16>
    %cst_72 = arith.constant dense<0.000000e+00> : vector<128x128xf32>
    %107 = tpu.matmul %104, %106, %cst_72 {dimension_numbers = #tpu.dot_dimension_numbers<[1], [0], [0], [1], [0, 0, 1, 1], [], []>} : vector<128x128xbf16>, vector<128x128xbf16>, vector<128x128xf32> -> vector<128x128xf32>
    %108 = arith.addf %103, %107 : vector<128x128xf32>
    %c47 = arith.constant 47 : index
    %c0_73 = arith.constant 0 : index
    %109 = vector.load %arg11[%c47, %c0_73] : memref<224x128xbf16, #tpu.memory_space<vmem>>, vector<128x128xbf16>
    %c3_74 = arith.constant 3 : index
    %c0_75 = arith.constant 0 : index
    %c0_76 = arith.constant 0 : index
    %110 = vector.load %arg6[%c3_74, %c0_75, %c0_76] : memref<9x128x128xbf16, #tpu.memory_space<vmem>>, vector<1x128x128xbf16>
    %111 = vector.shape_cast %110 : vector<1x128x128xbf16> to vector<128x128xbf16>
    %cst_77 = arith.constant dense<0.000000e+00> : vector<128x128xf32>
    %112 = tpu.matmul %109, %111, %cst_77 {dimension_numbers = #tpu.dot_dimension_numbers<[1], [0], [0], [1], [0, 0, 1, 1], [], []>} : vector<128x128xbf16>, vector<128x128xbf16>, vector<128x128xf32> -> vector<128x128xf32>
    %113 = arith.addf %108, %112 : vector<128x128xf32>
    %c48 = arith.constant 48 : index
    %c0_78 = arith.constant 0 : index
    %114 = vector.load %arg11[%c48, %c0_78] : memref<224x128xbf16, #tpu.memory_space<vmem>>, vector<128x128xbf16>
    %c4_79 = arith.constant 4 : index
    %c0_80 = arith.constant 0 : index
    %c0_81 = arith.constant 0 : index
    %115 = vector.load %arg6[%c4_79, %c0_80, %c0_81] : memref<9x128x128xbf16, #tpu.memory_space<vmem>>, vector<1x128x128xbf16>
    %116 = vector.shape_cast %115 : vector<1x128x128xbf16> to vector<128x128xbf16>
    %cst_82 = arith.constant dense<0.000000e+00> : vector<128x128xf32>
    %117 = tpu.matmul %114, %116, %cst_82 {dimension_numbers = #tpu.dot_dimension_numbers<[1], [0], [0], [1], [0, 0, 1, 1], [], []>} : vector<128x128xbf16>, vector<128x128xbf16>, vector<128x128xf32> -> vector<128x128xf32>
    %118 = arith.addf %113, %117 : vector<128x128xf32>
    %c49 = arith.constant 49 : index
    %c0_83 = arith.constant 0 : index
    %119 = vector.load %arg11[%c49, %c0_83] : memref<224x128xbf16, #tpu.memory_space<vmem>>, vector<128x128xbf16>
    %c5_84 = arith.constant 5 : index
    %c0_85 = arith.constant 0 : index
    %c0_86 = arith.constant 0 : index
    %120 = vector.load %arg6[%c5_84, %c0_85, %c0_86] : memref<9x128x128xbf16, #tpu.memory_space<vmem>>, vector<1x128x128xbf16>
    %121 = vector.shape_cast %120 : vector<1x128x128xbf16> to vector<128x128xbf16>
    %cst_87 = arith.constant dense<0.000000e+00> : vector<128x128xf32>
    %122 = tpu.matmul %119, %121, %cst_87 {dimension_numbers = #tpu.dot_dimension_numbers<[1], [0], [0], [1], [0, 0, 1, 1], [], []>} : vector<128x128xbf16>, vector<128x128xbf16>, vector<128x128xf32> -> vector<128x128xf32>
    %123 = arith.addf %118, %122 : vector<128x128xf32>
    %c79 = arith.constant 79 : index
    %c0_88 = arith.constant 0 : index
    %124 = vector.load %arg11[%c79, %c0_88] : memref<224x128xbf16, #tpu.memory_space<vmem>>, vector<128x128xbf16>
    %c6_89 = arith.constant 6 : index
    %c0_90 = arith.constant 0 : index
    %c0_91 = arith.constant 0 : index
    %125 = vector.load %arg6[%c6_89, %c0_90, %c0_91] : memref<9x128x128xbf16, #tpu.memory_space<vmem>>, vector<1x128x128xbf16>
    %126 = vector.shape_cast %125 : vector<1x128x128xbf16> to vector<128x128xbf16>
    %cst_92 = arith.constant dense<0.000000e+00> : vector<128x128xf32>
    %127 = tpu.matmul %124, %126, %cst_92 {dimension_numbers = #tpu.dot_dimension_numbers<[1], [0], [0], [1], [0, 0, 1, 1], [], []>} : vector<128x128xbf16>, vector<128x128xbf16>, vector<128x128xf32> -> vector<128x128xf32>
    %128 = arith.addf %123, %127 : vector<128x128xf32>
    %c80 = arith.constant 80 : index
    %c0_93 = arith.constant 0 : index
    %129 = vector.load %arg11[%c80, %c0_93] : memref<224x128xbf16, #tpu.memory_space<vmem>>, vector<128x128xbf16>
    %c7_94 = arith.constant 7 : index
    %c0_95 = arith.constant 0 : index
    %c0_96 = arith.constant 0 : index
    %130 = vector.load %arg6[%c7_94, %c0_95, %c0_96] : memref<9x128x128xbf16, #tpu.memory_space<vmem>>, vector<1x128x128xbf16>
    %131 = vector.shape_cast %130 : vector<1x128x128xbf16> to vector<128x128xbf16>
    %cst_97 = arith.constant dense<0.000000e+00> : vector<128x128xf32>
    %132 = tpu.matmul %129, %131, %cst_97 {dimension_numbers = #tpu.dot_dimension_numbers<[1], [0], [0], [1], [0, 0, 1, 1], [], []>} : vector<128x128xbf16>, vector<128x128xbf16>, vector<128x128xf32> -> vector<128x128xf32>
    %133 = arith.addf %128, %132 : vector<128x128xf32>
    %c81 = arith.constant 81 : index
    %c0_98 = arith.constant 0 : index
    %134 = vector.load %arg11[%c81, %c0_98] : memref<224x128xbf16, #tpu.memory_space<vmem>>, vector<128x128xbf16>
    %c8_99 = arith.constant 8 : index
    %c0_100 = arith.constant 0 : index
    %c0_101 = arith.constant 0 : index
    %135 = vector.load %arg6[%c8_99, %c0_100, %c0_101] : memref<9x128x128xbf16, #tpu.memory_space<vmem>>, vector<1x128x128xbf16>
    %136 = vector.shape_cast %135 : vector<1x128x128xbf16> to vector<128x128xbf16>
    %cst_102 = arith.constant dense<0.000000e+00> : vector<128x128xf32>
    %137 = tpu.matmul %134, %136, %cst_102 {dimension_numbers = #tpu.dot_dimension_numbers<[1], [0], [0], [1], [0, 0, 1, 1], [], []>} : vector<128x128xbf16>, vector<128x128xbf16>, vector<128x128xf32> -> vector<128x128xf32>
    %138 = arith.addf %133, %137 : vector<128x128xf32>
    %c0_103 = arith.constant 0 : index
    %c0_104 = arith.constant 0 : index
    %139 = vector.load %arg7[%c0_103, %c0_104] : memref<1x128xf32, #tpu.memory_space<vmem>>, vector<1x128xf32>
    %140 = vector.broadcast %139 : vector<1x128xf32> to vector<128x128xf32>
    %141 = arith.mulf %138, %140 : vector<128x128xf32>
    %c0_105 = arith.constant 0 : index
    %c0_106 = arith.constant 0 : index
    %142 = vector.load %arg8[%c0_105, %c0_106] : memref<1x128xf32, #tpu.memory_space<vmem>>, vector<1x128xf32>
    %143 = vector.broadcast %142 : vector<1x128xf32> to vector<128x128xf32>
    %144 = arith.addf %141, %143 : vector<128x128xf32>
    %cst_107 = arith.constant 0.000000e+00 : f32
    %145 = vector.broadcast %cst_107 : f32 to vector<128x128xf32>
    %146 = arith.maximumf %144, %145 : vector<128x128xf32>
    %147 = arith.truncf %146 : vector<128x128xf32> to vector<128x128xbf16>
    %c0_108 = arith.constant 0 : index
    %c0_109 = arith.constant 0 : index
    %c0_110 = arith.constant 0 : index
    %148 = vector.load %arg9[%c0_108, %c0_109, %c0_110] : memref<1x128x128xbf16, #tpu.memory_space<vmem>>, vector<1x128x128xbf16>
    %149 = vector.shape_cast %148 : vector<1x128x128xbf16> to vector<128x128xbf16>
    %150 = vector.shape_cast %147 : vector<128x128xbf16> to vector<1x128x128xbf16>
    tpu.vector_store %arg9[%c0_108, %c0_109, %c0_110], %150 {strides = array<i32>} : memref<1x128x128xbf16, #tpu.memory_space<vmem>>, vector<1x128x128xbf16>,
    return
  }
  func.func @transform_0(%arg0: i32, %arg1: i32) -> (i32, i32, i32) {
    %c0_i32 = arith.constant 0 : i32
    %c0_i32_0 = arith.constant 0 : i32
    %c0_i32_1 = arith.constant 0 : i32
    return %arg0, %c0_i32, %c0_i32_0 : i32, i32, i32
  }
  func.func @transform_1(%arg0: i32, %arg1: i32) -> (i32, i32, i32) {
    %c0_i32 = arith.constant 0 : i32
    %c0_i32_0 = arith.constant 0 : i32
    %c0_i32_1 = arith.constant 0 : i32
    %c0_i32_2 = arith.constant 0 : i32
    return %c0_i32, %c0_i32_0, %c0_i32_1 : i32, i32, i32
  }
  func.func @transform_2(%arg0: i32, %arg1: i32) -> (i32, i32) {
    %c0_i32 = arith.constant 0 : i32
    %c0_i32_0 = arith.constant 0 : i32
    %c0_i32_1 = arith.constant 0 : i32
    return %c0_i32, %c0_i32_0 : i32, i32
  }
  func.func @transform_3(%arg0: i32, %arg1: i32) -> (i32, i32) {
    %c0_i32 = arith.constant 0 : i32
    %c0_i32_0 = arith.constant 0 : i32
    %c0_i32_1 = arith.constant 0 : i32
    return %c0_i32, %c0_i32_0 : i32, i32
  }
  func.func @transform_4(%arg0: i32, %arg1: i32) -> (i32, i32, i32) {
    %c0_i32 = arith.constant 0 : i32
    %c0_i32_0 = arith.constant 0 : i32
    %c0_i32_1 = arith.constant 0 : i32
    %c0_i32_2 = arith.constant 0 : i32
    return %c0_i32, %c0_i32_0, %c0_i32_1 : i32, i32, i32
  }
  func.func @transform_5(%arg0: i32, %arg1: i32) -> (i32, i32) {
    %c0_i32 = arith.constant 0 : i32
    %c0_i32_0 = arith.constant 0 : i32
    %c0_i32_1 = arith.constant 0 : i32
    return %c0_i32, %c0_i32_0 : i32, i32
  }
  func.func @transform_6(%arg0: i32, %arg1: i32) -> (i32, i32) {
    %c0_i32 = arith.constant 0 : i32
    %c0_i32_0 = arith.constant 0 : i32
    %c0_i32_1 = arith.constant 0 : i32
    return %c0_i32, %c0_i32_0 : i32, i32
  }
  func.func @transform_7(%arg0: i32, %arg1: i32) -> (i32, i32, i32) {
    %c0_i32 = arith.constant 0 : i32
    %c0_i32_0 = arith.constant 0 : i32
    return %arg0, %arg1, %c0_i32 : i32, i32, i32
  }
}

</mosaic_0001>

<llo_original>
// kernel: tpu_custom_call.1
$region0: #{tpu_custom_call.1}
  #allocation0 [shape = 'u32[]', space=smem, size = 0x4, offset = 0x4, fixed_abs, tag = 'smem constant byte address 0x4 - core index']
  #allocation1 [shape = 'u32[144,128]{1,0:T(1,128)}', space=vmem, size = 0x12000, scoped, tag = 'internal scratch']
  #allocation2 [shape = 'bf16[320,128]{1,0:T(16,128)(2,1)}', space=vmem, size = 0x14000, scoped, tag = 'scratch operand']
  #allocation3 [shape = 'bf16[224,128]{1,0:T(16,128)(2,1)}', space=vmem, size = 0xe000, scoped, tag = 'scratch operand']
  %s0 = inlined_call_operand.hbm [shape: bf16[2,704,128], index: 0, kind: input, shape index: {}]
  %s1 = inlined_call_operand.hbm [shape: bf16[9,128,128], index: 1, kind: input, shape index: {}]
  %s2 = inlined_call_operand.vmem [shape: f32[1,128], index: 2, kind: input, shape index: {}]
  %s3 = inlined_call_operand.vmem [shape: f32[1,128], index: 3, kind: input, shape index: {}]
  %s4 = inlined_call_operand.hbm [shape: bf16[9,128,128], index: 4, kind: input, shape index: {}]
  %s5 = inlined_call_operand.vmem [shape: f32[1,128], index: 5, kind: input, shape index: {}]
  %s6 = inlined_call_operand.vmem [shape: f32[1,128], index: 6, kind: input, shape index: {}]
  %s7 = inlined_call_operand.hbm [shape: bf16[2,512,128], index: 7, kind: output, shape index: {}]
  %s8 = sld [smem:[#allocation0]]
  $region81: #{tpu_custom_call.1} parent=0
    _
  %s10 = ssub.s32 1, %s8
  %s11 = scalar_select 0, %s10, %s8
  $region1: #{tpu_custom_call.1} parent=0
    #allocation4 [shape = 'u8[360448]{0}', space=vmem, size = 0x58000, scoped, tag = 'input window, operand 0']
    #allocation5 [shape = 's32[2]{0}', space=sflag, size = 0x8, scoped, tag = 'scoped memory for tpu_custom_call.1']
    #allocation6 [shape = 's32[2]{0}', space=sflag, size = 0x8, scoped, tag = 'scoped memory for tpu_custom_call.1']
    #allocation7 [shape = 'u8[294912]{0}', space=vmem, size = 0x48000, scoped, tag = 'input window, operand 1, single buffered']
    #allocation8 [shape = 's32[1]{0}', space=sflag, size = 0x4, scoped, tag = 'scoped memory for tpu_custom_call.1']
    #allocation9 [shape = 'u8[294912]{0}', space=vmem, size = 0x48000, scoped, tag = 'input window, operand 4, single buffered']
    #allocation10 [shape = 'u8[65536]{0}', space=vmem, size = 0x10000, scoped, tag = 'output window, operand 0']
    %12 = vsyncpa [#allocation5], 0
    %s13 = scalar_lea.sflag [#allocation5], 1
    %14 = vsyncpa %s13, 0
    %15 = vsyncpa [#allocation8], 0
    %16 = vsyncpa [#allocation6], 0
    %s17 = scalar_lea.sflag [#allocation6], 1
    %18 = vsyncpa %s17, 0
    loop: start=0, step=1, limit=10
    $region2: #{tpu_custom_call.1} parent=1 // loop_pre_header
      _
    $region3: #{tpu_custom_call.1} parent=1 // loop_header
      %s20 = sphi 0, %s24
      %p21 = scmp.ge.s32.totalorder %s20, 10
      %s27 = sphi 0, %s39
      %s28 = sphi 0, %s35
      %s29 = sphi 0, %s27
      %s30 = sphi 0, %s28
      %s31 = sphi 0, %s29
      %s32 = sphi 0, %s30
      %s42 = sphi 0, %s44
      %s45 = sphi 0, %s42
      %s46 = sphi 0, %s45
      %s62 = sphi 0, %s46
      %s66 = sphi 0, %s66
      %s68 = sphi 0, %s66
      %s69 = sphi 0, %s68
      %s83 = sphi 0, %s69
      %s87 = sphi 0, %s87
      %s89 = sphi 0, %s87
      %s90 = sphi 0, %s89
      %s104 = sphi 0, %s90
      %s108 = sphi 0, %s108
      %s110 = sphi 0, %s108
      %s111 = sphi 0, %s110
      %s125 = sphi 0, %s111
      %s129 = sphi 0, %s129
      %s131 = sphi 0, %s129
      %s132 = sphi 0, %s131
      %s146 = sphi 0, %s132
      %s150 = sphi 0, %s150
      %s152 = sphi 0, %s150
      %s153 = sphi 0, %s152
      %s167 = sphi 0, %s153
      %s171 = sphi 0, %s171
      %s173 = sphi 0, %s171
      %s174 = sphi 0, %s173
      %s188 = sphi 0, %s174
      %s196 = sphi 0, %s198
      %s199 = sphi 0, %s196
      %s200 = sphi 0, %s199
      %s216 = sphi 0, %s200
    $region4: #{tpu_custom_call.1} parent=1 // loop_header_branch
      %23 = sbr.rel (%p21) target = $region8
    $region5: #{tpu_custom_call.1} parent=1 // loop_body
      %s25 = ssub.s32 %s20, 1
      %s26 = ssub.s32 %s20, 2
      %s33 = sadd.s32 1, %s28
      %p34 = scmp.ge.s32.totalorder %s33, 4
      %s35 = scalar_select %p34, 0, %s33
      %s36 = sadd.s32 1, %s27
      %s37 = scalar_select %p34, %s36, %s27
      %p38 = scmp.ge.s32.totalorder %s37, 2
      %s39 = scalar_select %p38, 0, %s37
      %s40 = ssub.s32 %s27, %s39
      %p41 = scmp.eq.s32.totalorder %s40, 0
      %s43 = sadd.s32 %s42, 1
      %s44 = scalar_select %p41, %s42, %s43
      %p47 = pneg %p41
      %p48 = scmp.eq.s32.totalorder %s20, 7
      %p49 = por %p47, %p48
      %p50 = scmp.ne.s32.totalorder %s42, %s45
      %p51 = scmp.eq.s32.totalorder %s20, 0
      %p52 = por %p50, %p51
      %p53 = scmp.ne.s32.totalorder %s42, %s45
      %p54 = scmp.eq.s32.totalorder %s25, 7
      %p55 = por %p53, %p54
      %p56 = scmp.ne.s32.totalorder %s45, %s46
      %p57 = scmp.eq.s32.totalorder %s25, 0
      %p58 = por %p56, %p57
      %p59 = scmp.ne.s32.totalorder %s45, %s46
      %p60 = scmp.eq.s32.totalorder %s26, 7
      %p61 = por %p59, %p60
      %p63 = scmp.ne.s32.totalorder %s46, %s62
      %p64 = scmp.eq.s32.totalorder %s26, 0
      %p65 = por %p63, %p64
      %s67 = sadd.s32 %s66, 1
      %p70 = scmp.eq.s32.totalorder %s20, 7
      %p71 = scmp.ne.s32.totalorder %s66, %s68
      %p72 = scmp.eq.s32.totalorder %s20, 0
      %p73 = por %p71, %p72
      %p74 = scmp.ne.s32.totalorder %s66, %s68
      %p75 = scmp.eq.s32.totalorder %s25, 7
      %p76 = por %p74, %p75
      %p77 = scmp.ne.s32.totalorder %s68, %s69
      %p78 = scmp.eq.s32.totalorder %s25, 0
      %p79 = por %p77, %p78
      %p80 = scmp.ne.s32.totalorder %s68, %s69
      %p81 = scmp.eq.s32.totalorder %s26, 7
      %p82 = por %p80, %p81
      %p84 = scmp.ne.s32.totalorder %s69, %s83
      %p85 = scmp.eq.s32.totalorder %s26, 0
      %p86 = por %p84, %p85
      %s88 = sadd.s32 %s87, 1
      %p91 = scmp.eq.s32.totalorder %s20, 7
      %p92 = scmp.ne.s32.totalorder %s87, %s89
      %p93 = scmp.eq.s32.totalorder %s20, 0
      %p94 = por %p92, %p93
      %p95 = scmp.ne.s32.totalorder %s87, %s89
      %p96 = scmp.eq.s32.totalorder %s25, 7
      %p97 = por %p95, %p96
      %p98 = scmp.ne.s32.totalorder %s89, %s90
      %p99 = scmp.eq.s32.totalorder %s25, 0
      %p100 = por %p98, %p99
      %p101 = scmp.ne.s32.totalorder %s89, %s90
      %p102 = scmp.eq.s32.totalorder %s26, 7
      %p103 = por %p101, %p102
      %p105 = scmp.ne.s32.totalorder %s90, %s104
      %p106 = scmp.eq.s32.totalorder %s26, 0
      %p107 = por %p105, %p106
      %s109 = sadd.s32 %s108, 1
      %p112 = scmp.eq.s32.totalorder %s20, 7
      %p113 = scmp.ne.s32.totalorder %s108, %s110
      %p114 = scmp.eq.s32.totalorder %s20, 0
      %p115 = por %p113, %p114
      %p116 = scmp.ne.s32.totalorder %s108, %s110
      %p117 = scmp.eq.s32.totalorder %s25, 7
      %p118 = por %p116, %p117
      %p119 = scmp.ne.s32.totalorder %s110, %s111
      %p120 = scmp.eq.s32.totalorder %s25, 0
      %p121 = por %p119, %p120
      %p122 = scmp.ne.s32.totalorder %s110, %s111
      %p123 = scmp.eq.s32.totalorder %s26, 7
      %p124 = por %p122, %p123
      %p126 = scmp.ne.s32.totalorder %s111, %s125
      %p127 = scmp.eq.s32.totalorder %s26, 0
      %p128 = por %p126, %p127
      %s130 = sadd.s32 %s129, 1
      %p133 = scmp.eq.s32.totalorder %s20, 7
      %p134 = scmp.ne.s32.totalorder %s129, %s131
      %p135 = scmp.eq.s32.totalorder %s20, 0
      %p136 = por %p134, %p135
      %p137 = scmp.ne.s32.totalorder %s129, %s131
      %p138 = scmp.eq.s32.totalorder %s25, 7
      %p139 = por %p137, %p138
      %p140 = scmp.ne.s32.totalorder %s131, %s132
      %p141 = scmp.eq.s32.totalorder %s25, 0
      %p142 = por %p140, %p141
      %p143 = scmp.ne.s32.totalorder %s131, %s132
      %p144 = scmp.eq.s32.totalorder %s26, 7
      %p145 = por %p143, %p144
      %p147 = scmp.ne.s32.totalorder %s132, %s146
      %p148 = scmp.eq.s32.totalorder %s26, 0
      %p149 = por %p147, %p148
      %s151 = sadd.s32 %s150, 1
      %p154 = scmp.eq.s32.totalorder %s20, 7
      %p155 = scmp.ne.s32.totalorder %s150, %s152
      %p156 = scmp.eq.s32.totalorder %s20, 0
      %p157 = por %p155, %p156
      %p158 = scmp.ne.s32.totalorder %s150, %s152
      %p159 = scmp.eq.s32.totalorder %s25, 7
      %p160 = por %p158, %p159
      %p161 = scmp.ne.s32.totalorder %s152, %s153
      %p162 = scmp.eq.s32.totalorder %s25, 0
      %p163 = por %p161, %p162
      %p164 = scmp.ne.s32.totalorder %s152, %s153
      %p165 = scmp.eq.s32.totalorder %s26, 7
      %p166 = por %p164, %p165
      %p168 = scmp.ne.s32.totalorder %s153, %s167
      %p169 = scmp.eq.s32.totalorder %s26, 0
      %p170 = por %p168, %p169
      %s172 = sadd.s32 %s171, 1
      %p175 = scmp.eq.s32.totalorder %s20, 7
      %p176 = scmp.ne.s32.totalorder %s171, %s173
      %p177 = scmp.eq.s32.totalorder %s20, 0
      %p178 = por %p176, %p177
      %p179 = scmp.ne.s32.totalorder %s171, %s173
      %p180 = scmp.eq.s32.totalorder %s25, 7
      %p181 = por %p179, %p180
      %p182 = scmp.ne.s32.totalorder %s173, %s174
      %p183 = scmp.eq.s32.totalorder %s25, 0
      %p184 = por %p182, %p183
      %p185 = scmp.ne.s32.totalorder %s173, %s174
      %p186 = scmp.eq.s32.totalorder %s26, 7
      %p187 = por %p185, %p186
      %p189 = scmp.ne.s32.totalorder %s174, %s188
      %p190 = scmp.eq.s32.totalorder %s26, 0
      %p191 = por %p189, %p190
      %s192 = ssub.s32 %s27, %s39
      %s193 = ssub.s32 %s28, %s35
      %s194 = sor.u32 %s192, %s193
      %p195 = scmp.eq.s32.totalorder %s194, 0
      %s197 = sadd.s32 %s196, 1
      %s198 = scalar_select %p195, %s196, %s197
      %p201 = pneg %p195
      %p202 = scmp.eq.s32.totalorder %s20, 7
      %p203 = por %p201, %p202
      %p204 = scmp.ne.s32.totalorder %s196, %s199
      %p205 = scmp.eq.s32.totalorder %s20, 0
      %p206 = por %p204, %p205
      %p207 = scmp.ne.s32.totalorder %s196, %s199
      %p208 = scmp.eq.s32.totalorder %s25, 7
      %p209 = por %p207, %p208
      %p210 = scmp.ne.s32.totalorder %s199, %s200
      %p211 = scmp.eq.s32.totalorder %s25, 0
      %p212 = por %p210, %p211
      %p213 = scmp.ne.s32.totalorder %s199, %s200
      %p214 = scmp.eq.s32.totalorder %s26, 7
      %p215 = por %p213, %p214
      %p217 = scmp.ne.s32.totalorder %s200, %s216
      %p218 = scmp.eq.s32.totalorder %s26, 0
      %p219 = por %p217, %p218
      %p220 = scmp.le.s32.totalorder 1, %s20
      %p221 = scmp.lt.s32.totalorder %s20, 9
      %p222 = pnand %p220, %p221
      %p223 = pneg %p222
      // Predicated region
      $region9: #{tpu_custom_call.1} parent=5 // pred_check
        _
      $region10: #{tpu_custom_call.1} parent=5 // pred_check_branch
        %225 = sbr.rel (%p222) target = $region12
      $region11: #{tpu_custom_call.1} parent=5 // pred_region
        %s226 = ssub.s32 %s20, 1
        // Predicated region
        $region13: #{tpu_custom_call.1} parent=11 // pred_check
          %p227 = pneg %p79
        $region14: #{tpu_custom_call.1} parent=11 // pred_check_branch
          %229 = sbr.rel (%p227) target = $region16
        $region15: #{tpu_custom_call.1} parent=11 // pred_region
          %s231 = ssub.s32 9216, 9216
          %232 = vsyncadd [#allocation8], %s231
          %s233 = sshll.u32 [#allocation7], 4
          %s234 = int_to_ptr.vmem [resolvable:$true] %s233
          %239 = dma.hbm_to_vmem [thread:$0]  %s1, 9216, %s234, [#allocation8], 64, 64, 4
        $region16: #{tpu_custom_call.1} parent=11 // pred_fallthru
          _
        // Predicated region
        $region17: #{tpu_custom_call.1} parent=11 // pred_check
          %p240 = pneg %p100
        $region18: #{tpu_custom_call.1} parent=11 // pred_check_branch
          %242 = sbr.rel (%p240) target = $region20
        $region19: #{tpu_custom_call.1} parent=11 // pred_region
          _
        $region20: #{tpu_custom_call.1} parent=11 // pred_fallthru
          _
        // Predicated region
        $region21: #{tpu_custom_call.1} parent=11 // pred_check
          %p243 = pneg %p121
        $region22: #{tpu_custom_call.1} parent=11 // pred_check_branch
          %245 = sbr.rel (%p243) target = $region24
        $region23: #{tpu_custom_call.1} parent=11 // pred_region
          _
        $region24: #{tpu_custom_call.1} parent=11 // pred_fallthru
          _
        // Predicated region
        $region25: #{tpu_custom_call.1} parent=11 // pred_check
          %p246 = pneg %p142
        $region26: #{tpu_custom_call.1} parent=11 // pred_check_branch
          %248 = sbr.rel (%p246) target = $region28
        $region27: #{tpu_custom_call.1} parent=11 // pred_region
          %s250 = ssub.s32 9216, 9216
          %251 = vsyncadd [#allocation8], %s250
          %s252 = sshll.u32 [#allocation9], 4
          %s253 = int_to_ptr.vmem [resolvable:$true] %s252
          %258 = dma.hbm_to_vmem [thread:$0]  %s4, 9216, %s253, [#allocation8], 64, 64, 4
        $region28: #{tpu_custom_call.1} parent=11 // pred_fallthru
          _
        // Predicated region
        $region29: #{tpu_custom_call.1} parent=11 // pred_check
          %p259 = pneg %p163
        $region30: #{tpu_custom_call.1} parent=11 // pred_check_branch
          %261 = sbr.rel (%p259) target = $region32
        $region31: #{tpu_custom_call.1} parent=11 // pred_region
          _
        $region32: #{tpu_custom_call.1} parent=11 // pred_fallthru
          _
        // Predicated region
        $region33: #{tpu_custom_call.1} parent=11 // pred_check
          %p262 = pneg %p184
        $region34: #{tpu_custom_call.1} parent=11 // pred_check_branch
          %264 = sbr.rel (%p262) target = $region36
        $region35: #{tpu_custom_call.1} parent=11 // pred_region
          _
        $region36: #{tpu_custom_call.1} parent=11 // pred_fallthru
          _
      $region12: #{tpu_custom_call.1} parent=5 // pred_fallthru
        _
      %p265 = scmp.lt.s32.totalorder %s20, 8
      // Predicated region
      $region37: #{tpu_custom_call.1} parent=5 // pred_check
        %p266 = pneg %p265
      $region38: #{tpu_custom_call.1} parent=5 // pred_check_branch
        %268 = sbr.rel (%p266) target = $region40
      $region39: #{tpu_custom_call.1} parent=5 // pred_region
        // Predicated region
        $region41: #{tpu_custom_call.1} parent=39 // pred_check
          %p269 = pneg %p52
        $region42: #{tpu_custom_call.1} parent=39 // pred_check_branch
          %271 = sbr.rel (%p269) target = $region44
        $region43: #{tpu_custom_call.1} parent=39 // pred_region
          %s272 = sand.u32 %s42, 1
          %s273 = scalar_lea.sflag [#allocation5], %s272
          %s274 = sand.u32 %s42, 1
          %s275 = smul.addr %s274, 352
          %s276 = scalar_lea.vmem [#allocation4], %s275
          %s278 = ssub.s32 5632, 5632
          %279 = vsyncadd %s273, %s278
          %s280 = smul.addr %s27, 88
          %s281 = smul.addr %s280, 64
          %s282 = scalar_lea.hbm %s0, %s281
          %s283 = sshll.u32 %s276, 4
          %s284 = int_to_ptr.vmem [resolvable:$true] %s283
          %289 = dma.hbm_to_vmem [thread:$0]  %s282, 5632, %s284, %s273, 64, 64, 4
        $region44: #{tpu_custom_call.1} parent=39 // pred_fallthru
          _
      $region40: #{tpu_custom_call.1} parent=5 // pred_fallthru
        _
      %p290 = scmp.le.s32.totalorder 1, %s20
      %p291 = scmp.lt.s32.totalorder %s20, 9
      %p292 = pnand %p290, %p291
      %p293 = pneg %p292
      // Predicated region
      $region45: #{tpu_custom_call.1} parent=5 // pred_check
        _
      $region46: #{tpu_custom_call.1} parent=5 // pred_check_branch
        %295 = sbr.rel (%p292) target = $region48
      $region47: #{tpu_custom_call.1} parent=5 // pred_region
        %s296 = ssub.s32 %s20, 1
        %s297 = sand.u32 %s45, 1
        %s298 = scalar_lea.sflag [#allocation5], %s297
        %s299 = sand.u32 %s45, 1
        %s300 = smul.addr %s299, 352
        %s301 = scalar_lea.vmem [#allocation4], %s300
        // Predicated region
        $region49: #{tpu_custom_call.1} parent=47 // pred_check
          %p302 = pneg %p58
        $region50: #{tpu_custom_call.1} parent=47 // pred_check_branch
          %304 = sbr.rel (%p302) target = $region52
        $region51: #{tpu_custom_call.1} parent=47 // pred_region
          %305 = dma.done %s298, 5632
        $region52: #{tpu_custom_call.1} parent=47 // pred_fallthru
          _
        // Predicated region
        $region53: #{tpu_custom_call.1} parent=47 // pred_check
          %p306 = pneg %p79
        $region54: #{tpu_custom_call.1} parent=47 // pred_check_branch
          %308 = sbr.rel (%p306) target = $region56
        $region55: #{tpu_custom_call.1} parent=47 // pred_region
          %309 = dma.done [#allocation8], 9216
        $region56: #{tpu_custom_call.1} parent=47 // pred_fallthru
          _
        // Predicated region
        $region57: #{tpu_custom_call.1} parent=47 // pred_check
          %p310 = pneg %p142
        $region58: #{tpu_custom_call.1} parent=47 // pred_check_branch
          %312 = sbr.rel (%p310) target = $region60
        $region59: #{tpu_custom_call.1} parent=47 // pred_region
          %313 = dma.done [#allocation8], 9216
        $region60: #{tpu_custom_call.1} parent=47 // pred_fallthru
          _
        %s314 = sand.u32 %s45, 1
        %s315 = scalar_lea.sflag [#allocation5], %s314
        %s316 = sand.u32 %s45, 1
        %s317 = smul.addr %s316, 352
        %s318 = scalar_lea.vmem [#allocation4], %s317
        %p319 = pneg %p58
        %p320 = pneg %p55
        %p321 = pneg %p79
        %p322 = pneg %p76
        %p323 = pneg %p100
        %p324 = pneg %p97
        %p325 = pneg %p121
        %p326 = pneg %p118
        %p327 = pneg %p142
        %p328 = pneg %p139
        %p329 = pneg %p163
        %p330 = pneg %p160
        %p331 = pneg %p184
        %p332 = pneg %p181
        %p333 = pneg %p212
        %p334 = pneg %p209
        %s335 = sand.u32 %s199, 1
        %s336 = scalar_lea.sflag [#allocation6], %s335
        %s337 = sand.u32 %s199, 1
        %s338 = smul.addr %s337, 64
        %s339 = scalar_lea.vmem [#allocation10], %s338
        %s340 = smul.u32 16, %s30
        %s342 = smul.u32 %s30, 128
        %s343 = sshra.s32 %s342, 3
        %s344 = sand.u32 %s342, 7
        %s345 = smul.addr %s343, 4
        %s346 = scalar_lea.vmem %s301, %s345 [#allocation4]
        %v347 = vld [vmem:[%s346] sm:$0xf]
        %v348 = vld [vmem:[%s346 + $0x4] sm:$0xf]
        %v349 = vld [vmem:[%s346 + $0x8] sm:$0xf]
        %v350 = vld [vmem:[%s346 + $0xc] sm:$0xf]
        %v351 = vld [vmem:[%s346 + $0x10] sm:$0xf]
        %v352 = vld [vmem:[%s346 + $0x14] sm:$0xf]
        %v353 = vld [vmem:[%s346 + $0x18] sm:$0xf]
        %v354 = vld [vmem:[%s346 + $0x1c] sm:$0xf]
        %v355 = vld [vmem:[%s346 + $0x20] sm:$0xf]
        %v356 = vld [vmem:[%s346 + $0x24] sm:$0xf]
        %v357 = vld [vmem:[%s346 + $0x28] sm:$0xf]
        %v358 = vld [vmem:[%s346 + $0x2c] sm:$0xf]
        %v359 = vld [vmem:[%s346 + $0x30] sm:$0xf]
        %v360 = vld [vmem:[%s346 + $0x34] sm:$0xf]
        %v361 = vld [vmem:[%s346 + $0x38] sm:$0xf]
        %v362 = vld [vmem:[%s346 + $0x3c] sm:$0xf]
        %v363 = vld [vmem:[%s346 + $0x40] sm:$0xf]
        %v364 = vld [vmem:[%s346 + $0x44] sm:$0xf]
        %v365 = vld [vmem:[%s346 + $0x48] sm:$0xf]
        %v366 = vld [vmem:[%s346 + $0x4c] sm:$0xf]
        %v367 = vld [vmem:[%s346 + $0x50] sm:$0xf]
        %v368 = vld [vmem:[%s346 + $0x54] sm:$0xf]
        %v369 = vld [vmem:[%s346 + $0x58] sm:$0xf]
        %v370 = vld [vmem:[%s346 + $0x5c] sm:$0xf]
        %v371 = vld [vmem:[%s346 + $0x60] sm:$0xf]
        %v372 = vld [vmem:[%s346 + $0x64] sm:$0xf]
        %v373 = vld [vmem:[%s346 + $0x68] sm:$0xf]
        %v374 = vld [vmem:[%s346 + $0x6c] sm:$0xf]
        %v375 = vld [vmem:[%s346 + $0x70] sm:$0xf]
        %v376 = vld [vmem:[%s346 + $0x74] sm:$0xf]
        %v377 = vld [vmem:[%s346 + $0x78] sm:$0xf]
        %v378 = vld [vmem:[%s346 + $0x7c] sm:$0xf]
        %v379 = vld [vmem:[%s346 + $0x80] sm:$0xf]
        %v380 = vld [vmem:[%s346 + $0x84] sm:$0xf]
        %v381 = vld [vmem:[%s346 + $0x88] sm:$0xf]
        %v382 = vld [vmem:[%s346 + $0x8c] sm:$0xf]
        %v383 = vld [vmem:[%s346 + $0x90] sm:$0xf]
        %v384 = vld [vmem:[%s346 + $0x94] sm:$0xf]
        %v385 = vld [vmem:[%s346 + $0x98] sm:$0xf]
        %v386 = vld [vmem:[%s346 + $0x9c] sm:$0xf]
        %v427 = vunpack.c.l.b16 %v347
        %v428 = vunpack.c.l.b16 %v348
        %v429 = vunpack.c.l.b16 %v349
        %v430 = vunpack.c.l.b16 %v350
        %v431 = vunpack.c.l.b16 %v351
        %v432 = vunpack.c.l.b16 %v352
        %v433 = vunpack.c.l.b16 %v353
        %v434 = vunpack.c.l.b16 %v354
        %v435 = vunpack.c.l.b16 %v355
        %v436 = vunpack.c.l.b16 %v356
        %v437 = vunpack.c.l.b16 %v357
        %v438 = vunpack.c.l.b16 %v358
        %v439 = vunpack.c.l.b16 %v359
        %v440 = vunpack.c.l.b16 %v360
        %v441 = vunpack.c.l.b16 %v361
        %v442 = vunpack.c.l.b16 %v362
        %v443 = vunpack.c.l.b16 %v363
        %v444 = vunpack.c.l.b16 %v364
        %v445 = vunpack.c.l.b16 %v365
        %v446 = vunpack.c.l.b16 %v366
        %v447 = vunpack.c.l.b16 %v367
        %v448 = vunpack.c.l.b16 %v368
        %v449 = vunpack.c.l.b16 %v369
        %v450 = vunpack.c.l.b16 %v370
        %v451 = vunpack.c.l.b16 %v371
        %v452 = vunpack.c.l.b16 %v372
        %v453 = vunpack.c.l.b16 %v373
        %v454 = vunpack.c.l.b16 %v374
        %v455 = vunpack.c.l.b16 %v375
        %v456 = vunpack.c.l.b16 %v376
        %v457 = vunpack.c.l.b16 %v377
        %v458 = vunpack.c.l.b16 %v378
        %v459 = vunpack.c.l.b16 %v379
        %v460 = vunpack.c.l.b16 %v380
        %v461 = vunpack.c.l.b16 %v381
        %v462 = vunpack.c.l.b16 %v382
        %v463 = vunpack.c.l.b16 %v383
        %v464 = vunpack.c.l.b16 %v384
        %v465 = vunpack.c.l.b16 %v385
        %v466 = vunpack.c.l.b16 %v386
        %v467 = vpack.c.b16 %v428, %v427
        %v468 = vpack.c.b16 %v430, %v429
        %v469 = vpack.c.b16 %v432, %v431
        %v470 = vpack.c.b16 %v434, %v433
        %v471 = vpack.c.b16 %v436, %v435
        %v472 = vpack.c.b16 %v438, %v437
        %v473 = vpack.c.b16 %v440, %v439
        %v474 = vpack.c.b16 %v442, %v441
        %v475 = vpack.c.b16 %v444, %v443
        %v476 = vpack.c.b16 %v446, %v445
        %v477 = vpack.c.b16 %v448, %v447
        %v478 = vpack.c.b16 %v450, %v449
        %v479 = vpack.c.b16 %v452, %v451
        %v480 = vpack.c.b16 %v454, %v453
        %v481 = vpack.c.b16 %v456, %v455
        %v482 = vpack.c.b16 %v458, %v457
        %v483 = vpack.c.b16 %v460, %v459
        %v484 = vpack.c.b16 %v462, %v461
        %v485 = vpack.c.b16 %v464, %v463
        %v486 = vpack.c.b16 %v466, %v465
        %507 = vst [vmem:[#allocation2] sm:$0xff] %v467
        %508 = vst [vmem:[#allocation2 + $0x8] sm:$0xff] %v468
        %509 = vst [vmem:[#allocation2 + $0x10] sm:$0xff] %v469
        %510 = vst [vmem:[#allocation2 + $0x18] sm:$0xff] %v470
        %511 = vst [vmem:[#allocation2 + $0x20] sm:$0xff] %v471
        %512 = vst [vmem:[#allocation2 + $0x28] sm:$0xff] %v472
        %513 = vst [vmem:[#allocation2 + $0x30] sm:$0xff] %v473
        %514 = vst [vmem:[#allocation2 + $0x38] sm:$0xff] %v474
        %515 = vst [vmem:[#allocation2 + $0x40] sm:$0xff] %v475
        %516 = vst [vmem:[#allocation2 + $0x48] sm:$0xff] %v476
        %517 = vst [vmem:[#allocation2 + $0x50] sm:$0xff] %v477
        %518 = vst [vmem:[#allocation2 + $0x58] sm:$0xff] %v478
        %519 = vst [vmem:[#allocation2 + $0x60] sm:$0xff] %v479
        %520 = vst [vmem:[#allocation2 + $0x68] sm:$0xff] %v480
        %521 = vst [vmem:[#allocation2 + $0x70] sm:$0xff] %v481
        %522 = vst [vmem:[#allocation2 + $0x78] sm:$0xff] %v482
        %523 = vst [vmem:[#allocation2 + $0x80] sm:$0xff] %v483
        %524 = vst [vmem:[#allocation2 + $0x88] sm:$0xff] %v484
        %525 = vst [vmem:[#allocation2 + $0x90] sm:$0xff] %v485
        %526 = vst [vmem:[#allocation2 + $0x98] sm:$0xff] %v486
        %v527 = vld [vmem:[#allocation2 + $0x8] sm:$0x80]
        %v528 = vld [vmem:[#allocation2 + $0x10] sm:$0xff]
        %v529 = vld [vmem:[#allocation2 + $0x18] sm:$0xff]
        %v530 = vld [vmem:[#allocation2 + $0x20] sm:$0xff]
        %v531 = vld [vmem:[#allocation2 + $0x28] sm:$0xff]
        %v532 = vld [vmem:[#allocation2 + $0x30] sm:$0xff]
        %v533 = vld [vmem:[#allocation2 + $0x38] sm:$0xff]
        %v534 = vld [vmem:[#allocation2 + $0x40] sm:$0xff]
        %v535 = vld [vmem:[#allocation2 + $0x48] sm:$0xff]
        %v536 = vld [vmem:[#allocation2 + $0x50] sm:$0xff]
        %v537 = vld [vmem:[#allocation2 + $0x58] sm:$0xff]
        %v538 = vld [vmem:[#allocation2 + $0x60] sm:$0xff]
        %v539 = vld [vmem:[#allocation2 + $0x68] sm:$0xff]
        %v540 = vld [vmem:[#allocation7] sm:$0xf]
        %v541 = vld [vmem:[#allocation7 + $0x4] sm:$0xf]
        %v542 = vld [vmem:[#allocation7 + $0x8] sm:$0xf]
        %v543 = vld [vmem:[#allocation7 + $0xc] sm:$0xf]
        %v544 = vld [vmem:[#allocation7 + $0x10] sm:$0xf]
        %v545 = vld [vmem:[#allocation7 + $0x14] sm:$0xf]
        %v546 = vld [vmem:[#allocation7 + $0x18] sm:$0xf]
        %v547 = vld [vmem:[#allocation7 + $0x1c] sm:$0xf]
        %v548 = vld [vmem:[#allocation7 + $0x20] sm:$0xf]
        %v549 = vld [vmem:[#allocation7 + $0x24] sm:$0xf]
        %v550 = vld [vmem:[#allocation7 + $0x28] sm:$0xf]
        %v551 = vld [vmem:[#allocation7 + $0x2c] sm:$0xf]
        %v552 = vld [vmem:[#allocation7 + $0x30] sm:$0xf]
        %v553 = vld [vmem:[#allocation7 + $0x34] sm:$0xf]
        %v554 = vld [vmem:[#allocation7 + $0x38] sm:$0xf]
        %v555 = vld [vmem:[#allocation7 + $0x3c] sm:$0xf]
        %s556 = scalar_lea.vmem [#allocation7], 64
        %v557 = vld [vmem:[%s556] sm:$0xf]
        %v558 = vld [vmem:[%s556 + $0x4] sm:$0xf]
        %v559 = vld [vmem:[%s556 + $0x8] sm:$0xf]
        %v560 = vld [vmem:[%s556 + $0xc] sm:$0xf]
        %v561 = vld [vmem:[%s556 + $0x10] sm:$0xf]
        %v562 = vld [vmem:[%s556 + $0x14] sm:$0xf]
        %v563 = vld [vmem:[%s556 + $0x18] sm:$0xf]
        %v564 = vld [vmem:[%s556 + $0x1c] sm:$0xf]
        %v565 = vld [vmem:[%s556 + $0x20] sm:$0xf]
        %v566 = vld [vmem:[%s556 + $0x24] sm:$0xf]
        %v567 = vld [vmem:[%s556 + $0x28] sm:$0xf]
        %v568 = vld [vmem:[%s556 + $0x2c] sm:$0xf]
        %v569 = vld [vmem:[%s556 + $0x30] sm:$0xf]
        %v570 = vld [vmem:[%s556 + $0x34] sm:$0xf]
        %v571 = vld [vmem:[%s556 + $0x38] sm:$0xf]
        %v572 = vld [vmem:[%s556 + $0x3c] sm:$0xf]
        %v589 = vunpack.c.l.b16 %v557
        %v590 = vunpack.c.l.b16 %v558
        %v591 = vunpack.c.l.b16 %v559
        %v592 = vunpack.c.l.b16 %v560
        %v593 = vunpack.c.l.b16 %v561
        %v594 = vunpack.c.l.b16 %v562
        %v595 = vunpack.c.l.b16 %v563
        %v596 = vunpack.c.l.b16 %v564
        %v597 = vunpack.c.l.b16 %v565
        %v598 = vunpack.c.l.b16 %v566
        %v599 = vunpack.c.l.b16 %v567
        %v600 = vunpack.c.l.b16 %v568
        %v601 = vunpack.c.l.b16 %v569
        %v602 = vunpack.c.l.b16 %v570
        %v603 = vunpack.c.l.b16 %v571
        %v604 = vunpack.c.l.b16 %v572
        %v605 = vpack.c.b16 %v590, %v589
        %v606 = vpack.c.b16 %v592, %v591
        %v607 = vpack.c.b16 %v594, %v593
        %v608 = vpack.c.b16 %v596, %v595
        %v609 = vpack.c.b16 %v598, %v597
        %v610 = vpack.c.b16 %v600, %v599
        %v611 = vpack.c.b16 %v602, %v601
        %v612 = vpack.c.b16 %v604, %v603
        %621 = vmatprep.subr.bf16.mxu0 0
        %622 = vmatpush1.bf16.msra.mxu0 %v605
        %623 = vmatprep.subr.bf16.mxu0 0
        %624 = vmatpush1.bf16.msra.mxu0 %v606
        %625 = vmatprep.subr.bf16.mxu0 0
        %626 = vmatpush1.bf16.msra.mxu0 %v607
        %627 = vmatprep.subr.bf16.mxu0 0
        %628 = vmatpush1.bf16.msra.mxu0 %v608
        %629 = vmatprep.subr.bf16.mxu0 0
        %630 = vmatpush1.bf16.msra.mxu0 %v609
        %631 = vmatprep.subr.bf16.mxu0 0
        %632 = vmatpush1.bf16.msra.mxu0 %v610
        %633 = vmatprep.subr.bf16.mxu0 0
        %634 = vmatpush1.bf16.msra.mxu0 %v611
        %635 = vmatprep.subr.bf16.mxu0 0
        %636 = vmatpush1.bf16.msra.mxu0 %v612
        %637 = vmatprep.subr.bf16.mxu0 0
        %638 = vmatpush1.bf16.msra.mxu0 0
        %639 = vmatprep.subr.bf16.mxu0 0
        %640 = vmatpush1.bf16.msra.mxu0 0
        %641 = vmatprep.subr.bf16.mxu0 0
        %642 = vmatpush1.bf16.msra.mxu0 0
        %643 = vmatprep.subr.bf16.mxu0 0
        %644 = vmatpush1.bf16.msra.mxu0 0
        %645 = vmatprep.subr.bf16.mxu0 0
        %646 = vmatpush1.bf16.msra.mxu0 0
        %647 = vmatprep.subr.bf16.mxu0 0
        %648 = vmatpush1.bf16.msra.mxu0 0
        %649 = vmatprep.subr.bf16.mxu0 0
        %650 = vmatpush1.bf16.msra.mxu0 0
        %651 = vmatprep.subr.bf16.mxu0 0
        %652 = vmatpush1.bf16.msra.mxu0 0
        %653 = vmatprep.mubr.bf16.mxu0 0
        %654 = vmatmul.mubr.bf16.gmra.mrb[0].mxu0 %v528
        %v655 = vpop.f32.mrb[0].mxu0
        %v656 = vadd.f32 0.0, %v655
        %v657 = vpop.f32.mrb[0].mxu0
        %v658 = vpop.f32.mrb[0].mxu0
        %v659 = vadd.f32 0.0, %v658
        %v660 = vpop.f32.mrb[0].mxu0
        %661 = vmatprep.mubr.bf16.mxu0 0
        %662 = vmatmul.mubr.bf16.gmra.mrb[0].mxu0 %v529
        %v663 = vpop.f32.mrb[0].mxu0
        %v664 = vadd.f32 0.0, %v663
        %v665 = vpop.f32.mrb[0].mxu0
        %v666 = vpop.f32.mrb[0].mxu0
        %v667 = vadd.f32 0.0, %v666
        %v668 = vpop.f32.mrb[0].mxu0
        %669 = vmatprep.mubr.bf16.mxu0 0
        %670 = vmatmul.mubr.bf16.gmra.mrb[0].mxu0 %v530
        %v671 = vpop.f32.mrb[0].mxu0
        %v672 = vadd.f32 0.0, %v671
        %v673 = vpop.f32.mrb[0].mxu0
        %v674 = vpop.f32.mrb[0].mxu0
        %v675 = vadd.f32 0.0, %v674
        %v676 = vpop.f32.mrb[0].mxu0
        %677 = vmatprep.mubr.bf16.mxu0 0
        %678 = vmatmul.mubr.bf16.gmra.mrb[0].mxu0 %v531
        %v679 = vpop.f32.mrb[0].mxu0
        %v680 = vadd.f32 0.0, %v679
        %v681 = vpop.f32.mrb[0].mxu0
        %v682 = vpop.f32.mrb[0].mxu0
        %v683 = vadd.f32 0.0, %v682
        %v684 = vpop.f32.mrb[0].mxu0
        %685 = vmatprep.mubr.bf16.mxu0 0
        %686 = vmatmul.mubr.bf16.gmra.mrb[0].mxu0 %v532
        %v687 = vpop.f32.mrb[0].mxu0
        %v688 = vadd.f32 0.0, %v687
        %v689 = vpop.f32.mrb[0].mxu0
        %v690 = vpop.f32.mrb[0].mxu0
        %v691 = vadd.f32 0.0, %v690
        %v692 = vpop.f32.mrb[0].mxu0
        %693 = vmatprep.mubr.bf16.mxu0 0
        %694 = vmatmul.mubr.bf16.gmra.mrb[0].mxu0 %v533
        %v695 = vpop.f32.mrb[0].mxu0
        %v696 = vadd.f32 0.0, %v695
        %v697 = vpop.f32.mrb[0].mxu0
        %v698 = vpop.f32.mrb[0].mxu0
        %v699 = vadd.f32 0.0, %v698
        %v700 = vpop.f32.mrb[0].mxu0
        %701 = vmatprep.mubr.bf16.mxu0 0
        %702 = vmatmul.mubr.bf16.gmra.mrb[0].mxu0 %v534
        %v703 = vpop.f32.mrb[0].mxu0
        %v704 = vadd.f32 0.0, %v703
        %v705 = vpop.f32.mrb[0].mxu0
        %v706 = vpop.f32.mrb[0].mxu0
        %v707 = vadd.f32 0.0, %v706
        %v708 = vpop.f32.mrb[0].mxu0
        %709 = vmatprep.mubr.bf16.mxu0 0
        %710 = vmatmul.mubr.bf16.gmra.mrb[0].mxu0 %v535
        %v711 = vpop.f32.mrb[0].mxu0
        %v712 = vadd.f32 0.0, %v711
        %v713 = vpop.f32.mrb[0].mxu0
        %v714 = vpop.f32.mrb[0].mxu0
        %v715 = vadd.f32 0.0, %v714
        %v716 = vpop.f32.mrb[0].mxu0
        %717 = vmatprep.mubr.bf16.mxu0 0
        %718 = vmatmul.mubr.bf16.gmra.mrb[0].mxu0 %v536
        %v719 = vpop.f32.mrb[0].mxu0
        %v720 = vadd.f32 0.0, %v719
        %v721 = vpop.f32.mrb[0].mxu0
        %v722 = vpop.f32.mrb[0].mxu0
        %v723 = vadd.f32 0.0, %v722
        %v724 = vpop.f32.mrb[0].mxu0
        %725 = vmatprep.mubr.bf16.mxu0 0
        %726 = vmatmul.mubr.bf16.gmra.mrb[0].mxu0 %v537
        %v727 = vpop.f32.mrb[0].mxu0
        %v728 = vadd.f32 0.0, %v727
        %v729 = vpop.f32.mrb[0].mxu0
        %v730 = vpop.f32.mrb[0].mxu0
        %v731 = vadd.f32 0.0, %v730
        %v732 = vpop.f32.mrb[0].mxu0
        %733 = vmatprep.mubr.bf16.mxu0 0
        %734 = vmatmul.mubr.bf16.gmra.mrb[0].mxu0 %v538
        %v735 = vpop.f32.mrb[0].mxu0
        %v736 = vadd.f32 0.0, %v735
        %v737 = vpop.f32.mrb[0].mxu0
        %v738 = vpop.f32.mrb[0].mxu0
        %v739 = vadd.f32 0.0, %v738
        %v740 = vpop.f32.mrb[0].mxu0
        %741 = vmatprep.mubr.bf16.mxu0 0
        %742 = vmatmul.mubr.bf16.gmra.mrb[0].mxu0 %v539
        %v743 = vpop.f32.mrb[0].mxu0
        %v744 = vadd.f32 0.0, %v743
        %v745 = vpop.f32.mrb[0].mxu0
        %v746 = vpop.f32.mrb[0].mxu0
        %v747 = vadd.f32 0.0, %v746
        %v748 = vpop.f32.mrb[0].mxu0
        %749 = vdwg.mxu0
        %vm750 = vsmask.f32 256
        %v752 = vshrl.u32 %v527, 16
        %v754 = vrot.slane %v752, 7
        %v756 = vshrl.u32 %v528, 16
        %v758 = vrot.slane %v756, 7
        %v759 = vshll.u32 %v528, 16
        %v761 = vor.u32 %v758, %v759
        %v762 = vsel %vm750, %v754, %v761
        %v764 = vshrl.u32 %v529, 16
        %v766 = vrot.slane %v764, 7
        %v767 = vshll.u32 %v529, 16
        %v769 = vor.u32 %v766, %v767
        %v770 = vsel %vm750, %v758, %v769
        %v772 = vshrl.u32 %v530, 16
        %v774 = vrot.slane %v772, 7
        %v775 = vshll.u32 %v530, 16
        %v777 = vor.u32 %v774, %v775
        %v778 = vsel %vm750, %v766, %v777
        %v780 = vshrl.u32 %v531, 16
        %v782 = vrot.slane %v780, 7
        %v783 = vshll.u32 %v531, 16
        %v785 = vor.u32 %v782, %v783
        %v786 = vsel %vm750, %v774, %v785
        %v788 = vshrl.u32 %v532, 16
        %v790 = vrot.slane %v788, 7
        %v791 = vshll.u32 %v532, 16
        %v793 = vor.u32 %v790, %v791
        %v794 = vsel %vm750, %v782, %v793
        %v796 = vshrl.u32 %v533, 16
        %v798 = vrot.slane %v796, 7
        %v799 = vshll.u32 %v533, 16
        %v801 = vor.u32 %v798, %v799
        %v802 = vsel %vm750, %v790, %v801
        %v804 = vshrl.u32 %v534, 16
        %v806 = vrot.slane %v804, 7
        %v807 = vshll.u32 %v534, 16
        %v809 = vor.u32 %v806, %v807
        %v810 = vsel %vm750, %v798, %v809
        %v812 = vshrl.u32 %v535, 16
        %v814 = vrot.slane %v812, 7
        %v815 = vshll.u32 %v535, 16
        %v817 = vor.u32 %v814, %v815
        %v818 = vsel %vm750, %v806, %v817
        %v820 = vshrl.u32 %v536, 16
        %v822 = vrot.slane %v820, 7
        %v823 = vshll.u32 %v536, 16
        %v825 = vor.u32 %v822, %v823
        %v826 = vsel %vm750, %v814, %v825
        %v828 = vshrl.u32 %v537, 16
        %v830 = vrot.slane %v828, 7
        %v831 = vshll.u32 %v537, 16
        %v833 = vor.u32 %v830, %v831
        %v834 = vsel %vm750, %v822, %v833
        %v836 = vshrl.u32 %v538, 16
        %v838 = vrot.slane %v836, 7
        %v839 = vshll.u32 %v538, 16
        %v841 = vor.u32 %v838, %v839
        %v842 = vsel %vm750, %v830, %v841
        %v844 = vshrl.u32 %v539, 16
        %v846 = vrot.slane %v844, 7
        %v847 = vshll.u32 %v539, 16
        %v849 = vor.u32 %v846, %v847
        %v850 = vsel %vm750, %v838, %v849
        %v879 = vunpack.c.l.b16 %v540
        %v880 = vunpack.c.l.b16 %v541
        %v881 = vunpack.c.l.b16 %v542
        %v882 = vunpack.c.l.b16 %v543
        %v883 = vunpack.c.l.b16 %v544
        %v884 = vunpack.c.l.b16 %v545
        %v885 = vunpack.c.l.b16 %v546
        %v886 = vunpack.c.l.b16 %v547
        %v887 = vunpack.c.l.b16 %v548
        %v888 = vunpack.c.l.b16 %v549
        %v889 = vunpack.c.l.b16 %v550
        %v890 = vunpack.c.l.b16 %v551
        %v891 = vunpack.c.l.b16 %v552
        %v892 = vunpack.c.l.b16 %v553
        %v893 = vunpack.c.l.b16 %v554
        %v894 = vunpack.c.l.b16 %v555
        %v895 = vpack.c.b16 %v880, %v879
        %v896 = vpack.c.b16 %v882, %v881
        %v897 = vpack.c.b16 %v884, %v883
        %v898 = vpack.c.b16 %v886, %v885
        %v899 = vpack.c.b16 %v888, %v887
        %v900 = vpack.c.b16 %v890, %v889
        %v901 = vpack.c.b16 %v892, %v891
        %v902 = vpack.c.b16 %v894, %v893
        %911 = vmatprep.subr.bf16.mxu0 0
        %912 = vmatpush1.bf16.msra.mxu0 %v895
        %913 = vmatprep.subr.bf16.mxu0 0
        %914 = vmatpush1.bf16.msra.mxu0 %v896
        %915 = vmatprep.subr.bf16.mxu0 0
        %916 = vmatpush1.bf16.msra.mxu0 %v897
        %917 = vmatprep.subr.bf16.mxu0 0
        %918 = vmatpush1.bf16.msra.mxu0 %v898
        %919 = vmatprep.subr.bf16.mxu0 0
        %920 = vmatpush1.bf16.msra.mxu0 %v899
        %921 = vmatprep.subr.bf16.mxu0 0
        %922 = vmatpush1.bf16.msra.mxu0 %v900
        %923 = vmatprep.subr.bf16.mxu0 0
        %924 = vmatpush1.bf16.msra.mxu0 %v901
        %925 = vmatprep.subr.bf16.mxu0 0
        %926 = vmatpush1.bf16.msra.mxu0 %v902
        %927 = vmatprep.subr.bf16.mxu0 0
        %928 = vmatpush1.bf16.msra.mxu0 0
        %929 = vmatprep.subr.bf16.mxu0 0
        %930 = vmatpush1.bf16.msra.mxu0 0
        %931 = vmatprep.subr.bf16.mxu0 0
        %932 = vmatpush1.bf16.msra.mxu0 0
        %933 = vmatprep.subr.bf16.mxu0 0
        %934 = vmatpush1.bf16.msra.mxu0 0
        %935 = vmatprep.subr.bf16.mxu0 0
        %936 = vmatpush1.bf16.msra.mxu0 0
        %937 = vmatprep.subr.bf16.mxu0 0
        %938 = vmatpush1.bf16.msra.mxu0 0
        %939 = vmatprep.subr.bf16.mxu0 0
        %940 = vmatpush1.bf16.msra.mxu0 0
        %941 = vmatprep.subr.bf16.mxu0 0
        %942 = vmatpush1.bf16.msra.mxu0 0
        %943 = vmatprep.mubr.bf16.mxu0 0
        %944 = vmatmul.mubr.bf16.gmra.mrb[0].mxu0 %v762
        %v945 = vpop.f32.mrb[0].mxu0
        %v946 = vadd.f32 %v656, %v945
        %v947 = vpop.f32.mrb[0].mxu0
        %v948 = vpop.f32.mrb[0].mxu0
        %v949 = vadd.f32 %v659, %v948
        %v950 = vpop.f32.mrb[0].mxu0
        %951 = vmatprep.mubr.bf16.mxu0 0
        %952 = vmatmul.mubr.bf16.gmra.mrb[0].mxu0 %v770
        %v953 = vpop.f32.mrb[0].mxu0
        %v954 = vadd.f32 %v664, %v953
        %v955 = vpop.f32.mrb[0].mxu0
        %v956 = vpop.f32.mrb[0].mxu0
        %v957 = vadd.f32 %v667, %v956
        %v958 = vpop.f32.mrb[0].mxu0
        %959 = vmatprep.mubr.bf16.mxu0 0
        %960 = vmatmul.mubr.bf16.gmra.mrb[0].mxu0 %v778
        %v961 = vpop.f32.mrb[0].mxu0
        %v962 = vadd.f32 %v672, %v961
        %v963 = vpop.f32.mrb[0].mxu0
        %v964 = vpop.f32.mrb[0].mxu0
        %v965 = vadd.f32 %v675, %v964
        %v966 = vpop.f32.mrb[0].mxu0
        %967 = vmatprep.mubr.bf16.mxu0 0
        %968 = vmatmul.mubr.bf16.gmra.mrb[0].mxu0 %v786
        %v969 = vpop.f32.mrb[0].mxu0
        %v970 = vadd.f32 %v680, %v969
        %v971 = vpop.f32.mrb[0].mxu0
        %v972 = vpop.f32.mrb[0].mxu0
        %v973 = vadd.f32 %v683, %v972
        %v974 = vpop.f32.mrb[0].mxu0
        %975 = vmatprep.mubr.bf16.mxu0 0
        %976 = vmatmul.mubr.bf16.gmra.mrb[0].mxu0 %v794
        %v977 = vpop.f32.mrb[0].mxu0
        %v978 = vadd.f32 %v688, %v977
        %v979 = vpop.f32.mrb[0].mxu0
        %v980 = vpop.f32.mrb[0].mxu0
        %v981 = vadd.f32 %v691, %v980
        %v982 = vpop.f32.mrb[0].mxu0
        %983 = vmatprep.mubr.bf16.mxu0 0
        %984 = vmatmul.mubr.bf16.gmra.mrb[0].mxu0 %v802
        %v985 = vpop.f32.mrb[0].mxu0
        %v986 = vadd.f32 %v696, %v985
        %v987 = vpop.f32.mrb[0].mxu0
        %v988 = vpop.f32.mrb[0].mxu0
        %v989 = vadd.f32 %v699, %v988
        %v990 = vpop.f32.mrb[0].mxu0
        %991 = vmatprep.mubr.bf16.mxu0 0
        %992 = vmatmul.mubr.bf16.gmra.mrb[0].mxu0 %v810
        %v993 = vpop.f32.mrb[0].mxu0
        %v994 = vadd.f32 %v704, %v993
        %v995 = vpop.f32.mrb[0].mxu0
        %v996 = vpop.f32.mrb[0].mxu0
        %v997 = vadd.f32 %v707, %v996
        %v998 = vpop.f32.mrb[0].mxu0
        %999 = vmatprep.mubr.bf16.mxu0 0
        %1000 = vmatmul.mubr.bf16.gmra.mrb[0].mxu0 %v818
        %v1001 = vpop.f32.mrb[0].mxu0
        %v1002 = vadd.f32 %v712, %v1001
        %v1003 = vpop.f32.mrb[0].mxu0
        %v1004 = vpop.f32.mrb[0].mxu0
        %v1005 = vadd.f32 %v715, %v1004
        %v1006 = vpop.f32.mrb[0].mxu0
        %1007 = vmatprep.mubr.bf16.mxu0 0
        %1008 = vmatmul.mubr.bf16.gmra.mrb[0].mxu0 %v826
        %v1009 = vpop.f32.mrb[0].mxu0
        %v1010 = vadd.f32 %v720, %v1009
        %v1011 = vpop.f32.mrb[0].mxu0
        %v1012 = vpop.f32.mrb[0].mxu0
        %v1013 = vadd.f32 %v723, %v1012
        %v1014 = vpop.f32.mrb[0].mxu0
        %1015 = vmatprep.mubr.bf16.mxu0 0
        %1016 = vmatmul.mubr.bf16.gmra.mrb[0].mxu0 %v834
        %v1017 = vpop.f32.mrb[0].mxu0
        %v1018 = vadd.f32 %v728, %v1017
        %v1019 = vpop.f32.mrb[0].mxu0
        %v1020 = vpop.f32.mrb[0].mxu0
        %v1021 = vadd.f32 %v731, %v1020
        %v1022 = vpop.f32.mrb[0].mxu0
        %1023 = vmatprep.mubr.bf16.mxu0 0
        %1024 = vmatmul.mubr.bf16.gmra.mrb[0].mxu0 %v842
        %v1025 = vpop.f32.mrb[0].mxu0
        %v1026 = vadd.f32 %v736, %v1025
        %v1027 = vpop.f32.mrb[0].mxu0
        %v1028 = vpop.f32.mrb[0].mxu0
        %v1029 = vadd.f32 %v739, %v1028
        %v1030 = vpop.f32.mrb[0].mxu0
        %1031 = vmatprep.mubr.bf16.mxu0 0
        %1032 = vmatmul.mubr.bf16.gmra.mrb[0].mxu0 %v850
        %v1033 = vpop.f32.mrb[0].mxu0
        %v1034 = vadd.f32 %v744, %v1033
        %v1035 = vpop.f32.mrb[0].mxu0
        %v1036 = vpop.f32.mrb[0].mxu0
        %v1037 = vadd.f32 %v747, %v1036
        %v1038 = vpop.f32.mrb[0].mxu0
        %1039 = vdwg.mxu0
        %v1040 = vld [vmem:[#allocation2 + $0x10] sm:$0xff]
        %v1041 = vld [vmem:[#allocation2 + $0x18] sm:$0xff]
        %v1042 = vld [vmem:[#allocation2 + $0x20] sm:$0xff]
        %v1043 = vld [vmem:[#allocation2 + $0x28] sm:$0xff]
        %v1044 = vld [vmem:[#allocation2 + $0x30] sm:$0xff]
        %v1045 = vld [vmem:[#allocation2 + $0x38] sm:$0xff]
        %v1046 = vld [vmem:[#allocation2 + $0x40] sm:$0xff]
        %v1047 = vld [vmem:[#allocation2 + $0x48] sm:$0xff]
        %v1048 = vld [vmem:[#allocation2 + $0x50] sm:$0xff]
        %v1049 = vld [vmem:[#allocation2 + $0x58] sm:$0xff]
        %v1050 = vld [vmem:[#allocation2 + $0x60] sm:$0xff]
        %v1051 = vld [vmem:[#allocation2 + $0x68] sm:$0xff]
        %v1052 = vld [vmem:[#allocation2 + $0x70] sm:$0x1]
        %s1053 = scalar_lea.vmem [#allocation7], 128
        %v1054 = vld [vmem:[%s1053] sm:$0xf]
        %v1055 = vld [vmem:[%s1053 + $0x4] sm:$0xf]
        %v1056 = vld [vmem:[%s1053 + $0x8] sm:$0xf]
        %v1057 = vld [vmem:[%s1053 + $0xc] sm:$0xf]
        %v1058 = vld [vmem:[%s1053 + $0x10] sm:$0xf]
        %v1059 = vld [vmem:[%s1053 + $0x14] sm:$0xf]
        %v1060 = vld [vmem:[%s1053 + $0x18] sm:$0xf]
        %v1061 = vld [vmem:[%s1053 + $0x1c] sm:$0xf]
        %v1062 = vld [vmem:[%s1053 + $0x20] sm:$0xf]
        %v1063 = vld [vmem:[%s1053 + $0x24] sm:$0xf]
        %v1064 = vld [vmem:[%s1053 + $0x28] sm:$0xf]
        %v1065 = vld [vmem:[%s1053 + $0x2c] sm:$0xf]
        %v1066 = vld [vmem:[%s1053 + $0x30] sm:$0xf]
        %v1067 = vld [vmem:[%s1053 + $0x34] sm:$0xf]
        %v1068 = vld [vmem:[%s1053 + $0x38] sm:$0xf]
        %v1069 = vld [vmem:[%s1053 + $0x3c] sm:$0xf]
        %vm1070 = vsmask.f32 7424
        %v1072 = vshrl.u32 %v1040, 16
        %v1074 = vshll.u32 %v1040, 16
        %v1076 = vrot.slane %v1074, 1
        %v1077 = vor.u32 %v1072, %v1076
        %v1079 = vshll.u32 %v1041, 16
        %v1081 = vrot.slane %v1079, 1
        %v1082 = vsel %vm1070, %v1077, %v1081
        %v1083 = vshrl.u32 %v1041, 16
        %v1085 = vor.u32 %v1083, %v1081
        %v1087 = vshll.u32 %v1042, 16
        %v1089 = vrot.slane %v1087, 1
        %v1090 = vsel %vm1070, %v1085, %v1089
        %v1091 = vshrl.u32 %v1042, 16
        %v1093 = vor.u32 %v1091, %v1089
        %v1095 = vshll.u32 %v1043, 16
        %v1097 = vrot.slane %v1095, 1
        %v1098 = vsel %vm1070, %v1093, %v1097
        %v1099 = vshrl.u32 %v1043, 16
        %v1101 = vor.u32 %v1099, %v1097
        %v1103 = vshll.u32 %v1044, 16
        %v1105 = vrot.slane %v1103, 1
        %v1106 = vsel %vm1070, %v1101, %v1105
        %v1107 = vshrl.u32 %v1044, 16
        %v1109 = vor.u32 %v1107, %v1105
        %v1111 = vshll.u32 %v1045, 16
        %v1113 = vrot.slane %v1111, 1
        %v1114 = vsel %vm1070, %v1109, %v1113
        %v1115 = vshrl.u32 %v1045, 16
        %v1117 = vor.u32 %v1115, %v1113
        %v1119 = vshll.u32 %v1046, 16
        %v1121 = vrot.slane %v1119, 1
        %v1122 = vsel %vm1070, %v1117, %v1121
        %v1123 = vshrl.u32 %v1046, 16
        %v1125 = vor.u32 %v1123, %v1121
        %v1127 = vshll.u32 %v1047, 16
        %v1129 = vrot.slane %v1127, 1
        %v1130 = vsel %vm1070, %v1125, %v1129
        %v1131 = vshrl.u32 %v1047, 16
        %v1133 = vor.u32 %v1131, %v1129
        %v1135 = vshll.u32 %v1048, 16
        %v1137 = vrot.slane %v1135, 1
        %v1138 = vsel %vm1070, %v1133, %v1137
        %v1139 = vshrl.u32 %v1048, 16
        %v1141 = vor.u32 %v1139, %v1137
        %v1143 = vshll.u32 %v1049, 16
        %v1145 = vrot.slane %v1143, 1
        %v1146 = vsel %vm1070, %v1141, %v1145
        %v1147 = vshrl.u32 %v1049, 16
        %v1149 = vor.u32 %v1147, %v1145
        %v1151 = vshll.u32 %v1050, 16
        %v1153 = vrot.slane %v1151, 1
        %v1154 = vsel %vm1070, %v1149, %v1153
        %v1155 = vshrl.u32 %v1050, 16
        %v1157 = vor.u32 %v1155, %v1153
        %v1159 = vshll.u32 %v1051, 16
        %v1161 = vrot.slane %v1159, 1
        %v1162 = vsel %vm1070, %v1157, %v1161
        %v1163 = vshrl.u32 %v1051, 16
        %v1165 = vor.u32 %v1163, %v1161
        %v1167 = vshll.u32 %v1052, 16
        %v1169 = vrot.slane %v1167, 1
        %v1170 = vsel %vm1070, %v1165, %v1169
        %v1199 = vunpack.c.l.b16 %v1054
        %v1200 = vunpack.c.l.b16 %v1055
        %v1201 = vunpack.c.l.b16 %v1056
        %v1202 = vunpack.c.l.b16 %v1057
        %v1203 = vunpack.c.l.b16 %v1058
        %v1204 = vunpack.c.l.b16 %v1059
        %v1205 = vunpack.c.l.b16 %v1060
        %v1206 = vunpack.c.l.b16 %v1061
        %v1207 = vunpack.c.l.b16 %v1062
        %v1208 = vunpack.c.l.b16 %v1063
        %v1209 = vunpack.c.l.b16 %v1064
        %v1210 = vunpack.c.l.b16 %v1065
        %v1211 = vunpack.c.l.b16 %v1066
        %v1212 = vunpack.c.l.b16 %v1067
        %v1213 = vunpack.c.l.b16 %v1068
        %v1214 = vunpack.c.l.b16 %v1069
        %v1215 = vpack.c.b16 %v1200, %v1199
        %v1216 = vpack.c.b16 %v1202, %v1201
        %v1217 = vpack.c.b16 %v1204, %v1203
        %v1218 = vpack.c.b16 %v1206, %v1205
        %v1219 = vpack.c.b16 %v1208, %v1207
        %v1220 = vpack.c.b16 %v1210, %v1209
        %v1221 = vpack.c.b16 %v1212, %v1211
        %v1222 = vpack.c.b16 %v1214, %v1213
        %1231 = vmatprep.subr.bf16.mxu0 0
        %1232 = vmatpush1.bf16.msra.mxu0 %v1215
        %1233 = vmatprep.subr.bf16.mxu0 0
        %1234 = vmatpush1.bf16.msra.mxu0 %v1216
        %1235 = vmatprep.subr.bf16.mxu0 0
        %1236 = vmatpush1.bf16.msra.mxu0 %v1217
        %1237 = vmatprep.subr.bf16.mxu0 0
        %1238 = vmatpush1.bf16.msra.mxu0 %v1218
        %1239 = vmatprep.subr.bf16.mxu0 0
        %1240 = vmatpush1.bf16.msra.mxu0 %v1219
        %1241 = vmatprep.subr.bf16.mxu0 0
        %1242 = vmatpush1.bf16.msra.mxu0 %v1220
        %1243 = vmatprep.subr.bf16.mxu0 0
        %1244 = vmatpush1.bf16.msra.mxu0 %v1221
        %1245 = vmatprep.subr.bf16.mxu0 0
        %1246 = vmatpush1.bf16.msra.mxu0 %v1222
        %1247 = vmatprep.subr.bf16.mxu0 0
        %1248 = vmatpush1.bf16.msra.mxu0 0
        %1249 = vmatprep.subr.bf16.mxu0 0
        %1250 = vmatpush1.bf16.msra.mxu0 0
        %1251 = vmatprep.subr.bf16.mxu0 0
        %1252 = vmatpush1.bf16.msra.mxu0 0
        %1253 = vmatprep.subr.bf16.mxu0 0
        %1254 = vmatpush1.bf16.msra.mxu0 0
        %1255 = vmatprep.subr.bf16.mxu0 0
        %1256 = vmatpush1.bf16.msra.mxu0 0
        %1257 = vmatprep.subr.bf16.mxu0 0
        %1258 = vmatpush1.bf16.msra.mxu0 0
        %1259 = vmatprep.subr.bf16.mxu0 0
        %1260 = vmatpush1.bf16.msra.mxu0 0
        %1261 = vmatprep.subr.bf16.mxu0 0
        %1262 = vmatpush1.bf16.msra.mxu0 0
        %1263 = vmatprep.mubr.bf16.mxu0 0
        %1264 = vmatmul.mubr.bf16.gmra.mrb[0].mxu0 %v1082
        %v1265 = vpop.f32.mrb[0].mxu0
        %v1266 = vadd.f32 0.0, %v1265
        %v1267 = vpop.f32.mrb[0].mxu0
        %v1268 = vpop.f32.mrb[0].mxu0
        %v1269 = vadd.f32 0.0, %v1268
        %v1270 = vpop.f32.mrb[0].mxu0
        %1271 = vmatprep.mubr.bf16.mxu0 0
        %1272 = vmatmul.mubr.bf16.gmra.mrb[0].mxu0 %v1090
        %v1273 = vpop.f32.mrb[0].mxu0
        %v1274 = vadd.f32 0.0, %v1273
        %v1275 = vpop.f32.mrb[0].mxu0
        %v1276 = vpop.f32.mrb[0].mxu0
        %v1277 = vadd.f32 0.0, %v1276
        %v1278 = vpop.f32.mrb[0].mxu0
        %1279 = vmatprep.mubr.bf16.mxu0 0
        %1280 = vmatmul.mubr.bf16.gmra.mrb[0].mxu0 %v1098
        %v1281 = vpop.f32.mrb[0].mxu0
        %v1282 = vadd.f32 0.0, %v1281
        %v1283 = vpop.f32.mrb[0].mxu0
        %v1284 = vpop.f32.mrb[0].mxu0
        %v1285 = vadd.f32 0.0, %v1284
        %v1286 = vpop.f32.mrb[0].mxu0
        %1287 = vmatprep.mubr.bf16.mxu0 0
        %1288 = vmatmul.mubr.bf16.gmra.mrb[0].mxu0 %v1106
        %v1289 = vpop.f32.mrb[0].mxu0
        %v1290 = vadd.f32 0.0, %v1289
        %v1291 = vpop.f32.mrb[0].mxu0
        %v1292 = vpop.f32.mrb[0].mxu0
        %v1293 = vadd.f32 0.0, %v1292
        %v1294 = vpop.f32.mrb[0].mxu0
        %1295 = vmatprep.mubr.bf16.mxu0 0
        %1296 = vmatmul.mubr.bf16.gmra.mrb[0].mxu0 %v1114
        %v1297 = vpop.f32.mrb[0].mxu0
        %v1298 = vadd.f32 0.0, %v1297
        %v1299 = vpop.f32.mrb[0].mxu0
        %v1300 = vpop.f32.mrb[0].mxu0
        %v1301 = vadd.f32 0.0, %v1300
        %v1302 = vpop.f32.mrb[0].mxu0
        %1303 = vmatprep.mubr.bf16.mxu0 0
        %1304 = vmatmul.mubr.bf16.gmra.mrb[0].mxu0 %v1122
        %v1305 = vpop.f32.mrb[0].mxu0
        %v1306 = vadd.f32 0.0, %v1305
        %v1307 = vpop.f32.mrb[0].mxu0
        %v1308 = vpop.f32.mrb[0].mxu0
        %v1309 = vadd.f32 0.0, %v1308
        %v1310 = vpop.f32.mrb[0].mxu0
        %1311 = vmatprep.mubr.bf16.mxu0 0
        %1312 = vmatmul.mubr.bf16.gmra.mrb[0].mxu0 %v1130
        %v1313 = vpop.f32.mrb[0].mxu0
        %v1314 = vadd.f32 0.0, %v1313
        %v1315 = vpop.f32.mrb[0].mxu0
        %v1316 = vpop.f32.mrb[0].mxu0
        %v1317 = vadd.f32 0.0, %v1316
        %v1318 = vpop.f32.mrb[0].mxu0
        %1319 = vmatprep.mubr.bf16.mxu0 0
        %1320 = vmatmul.mubr.bf16.gmra.mrb[0].mxu0 %v1138
        %v1321 = vpop.f32.mrb[0].mxu0
        %v1322 = vadd.f32 0.0, %v1321
        %v1323 = vpop.f32.mrb[0].mxu0
        %v1324 = vpop.f32.mrb[0].mxu0
        %v1325 = vadd.f32 0.0, %v1324
        %v1326 = vpop.f32.mrb[0].mxu0
        %1327 = vmatprep.mubr.bf16.mxu0 0
        %1328 = vmatmul.mubr.bf16.gmra.mrb[0].mxu0 %v1146
        %v1329 = vpop.f32.mrb[0].mxu0
        %v1330 = vadd.f32 0.0, %v1329
        %v1331 = vpop.f32.mrb[0].mxu0
        %v1332 = vpop.f32.mrb[0].mxu0
        %v1333 = vadd.f32 0.0, %v1332
        %v1334 = vpop.f32.mrb[0].mxu0
        %1335 = vmatprep.mubr.bf16.mxu0 0
        %1336 = vmatmul.mubr.bf16.gmra.mrb[0].mxu0 %v1154
        %v1337 = vpop.f32.mrb[0].mxu0
        %v1338 = vadd.f32 0.0, %v1337
        %v1339 = vpop.f32.mrb[0].mxu0
        %v1340 = vpop.f32.mrb[0].mxu0
        %v1341 = vadd.f32 0.0, %v1340
        %v1342 = vpop.f32.mrb[0].mxu0
        %1343 = vmatprep.mubr.bf16.mxu0 0
        %1344 = vmatmul.mubr.bf16.gmra.mrb[0].mxu0 %v1162
        %v1345 = vpop.f32.mrb[0].mxu0
        %v1346 = vadd.f32 0.0, %v1345
        %v1347 = vpop.f32.mrb[0].mxu0
        %v1348 = vpop.f32.mrb[0].mxu0
        %v1349 = vadd.f32 0.0, %v1348
        %v1350 = vpop.f32.mrb[0].mxu0
        %1351 = vmatprep.mubr.bf16.mxu0 0
        %1352 = vmatmul.mubr.bf16.gmra.mrb[0].mxu0 %v1170
        %v1353 = vpop.f32.mrb[0].mxu0
        %v1354 = vadd.f32 0.0, %v1353
        %v1355 = vpop.f32.mrb[0].mxu0
        %v1356 = vpop.f32.mrb[0].mxu0
        %v1357 = vadd.f32 0.0, %v1356
        %v1358 = vpop.f32.mrb[0].mxu0
        %1359 = vdwg.mxu0
        %v1360 = vadd.f32 %v946, %v1266
        %v1361 = vadd.f32 %v949, %v1269
        %v1362 = vadd.f32 %v954, %v1274
        %v1363 = vadd.f32 %v957, %v1277
        %v1364 = vadd.f32 %v962, %v1282
        %v1365 = vadd.f32 %v965, %v1285
        %v1366 = vadd.f32 %v970, %v1290
        %v1367 = vadd.f32 %v973, %v1293
        %v1368 = vadd.f32 %v978, %v1298
        %v1369 = vadd.f32 %v981, %v1301
        %v1370 = vadd.f32 %v986, %v1306
        %v1371 = vadd.f32 %v989, %v1309
        %v1372 = vadd.f32 %v994, %v1314
        %v1373 = vadd.f32 %v997, %v1317
        %v1374 = vadd.f32 %v1002, %v1322
        %v1375 = vadd.f32 %v1005, %v1325
        %v1376 = vadd.f32 %v1010, %v1330
        %v1377 = vadd.f32 %v1013, %v1333
        %v1378 = vadd.f32 %v1018, %v1338
        %v1379 = vadd.f32 %v1021, %v1341
        %v1380 = vadd.f32 %v1026, %v1346
        %v1381 = vadd.f32 %v1029, %v1349
        %v1382 = vadd.f32 %v1034, %v1354
        %v1383 = vadd.f32 %v1037, %v1357
        %v1384 = vld [vmem:[#allocation2 + $0x18] sm:$0x80]
        %v1385 = vld [vmem:[#allocation2 + $0x20] sm:$0xff]
        %v1386 = vld [vmem:[#allocation2 + $0x28] sm:$0xff]
        %v1387 = vld [vmem:[#allocation2 + $0x30] sm:$0xff]
        %v1388 = vld [vmem:[#allocation2 + $0x38] sm:$0xff]
        %v1389 = vld [vmem:[#allocation2 + $0x40] sm:$0xff]
        %v1390 = vld [vmem:[#allocation2 + $0x48] sm:$0xff]
        %v1391 = vld [vmem:[#allocation2 + $0x50] sm:$0xff]
        %v1392 = vld [vmem:[#allocation2 + $0x58] sm:$0xff]
        %v1393 = vld [vmem:[#allocation2 + $0x60] sm:$0xff]
        %v1394 = vld [vmem:[#allocation2 + $0x68] sm:$0xff]
        %v1395 = vld [vmem:[#allocation2 + $0x70] sm:$0xff]
        %v1396 = vld [vmem:[#allocation2 + $0x78] sm:$0xff]
        %s1397 = scalar_lea.vmem [#allocation7], 192
        %v1398 = vld [vmem:[%s1397] sm:$0xf]
        %v1399 = vld [vmem:[%s1397 + $0x4] sm:$0xf]
        %v1400 = vld [vmem:[%s1397 + $0x8] sm:$0xf]
        %v1401 = vld [vmem:[%s1397 + $0xc] sm:$0xf]
        %v1402 = vld [vmem:[%s1397 + $0x10] sm:$0xf]
        %v1403 = vld [vmem:[%s1397 + $0x14] sm:$0xf]
        %v1404 = vld [vmem:[%s1397 + $0x18] sm:$0xf]
        %v1405 = vld [vmem:[%s1397 + $0x1c] sm:$0xf]
        %v1406 = vld [vmem:[%s1397 + $0x20] sm:$0xf]
        %v1407 = vld [vmem:[%s1397 + $0x24] sm:$0xf]
        %v1408 = vld [vmem:[%s1397 + $0x28] sm:$0xf]
        %v1409 = vld [vmem:[%s1397 + $0x2c] sm:$0xf]
        %v1410 = vld [vmem:[%s1397 + $0x30] sm:$0xf]
        %v1411 = vld [vmem:[%s1397 + $0x34] sm:$0xf]
        %v1412 = vld [vmem:[%s1397 + $0x38] sm:$0xf]
        %v1413 = vld [vmem:[%s1397 + $0x3c] sm:$0xf]
        %v1415 = vshrl.u32 %v1384, 16
        %v1417 = vrot.slane %v1415, 7
        %v1419 = vshrl.u32 %v1385, 16
        %v1421 = vrot.slane %v1419, 7
        %v1422 = vshll.u32 %v1385, 16
        %v1424 = vor.u32 %v1421, %v1422
        %v1425 = vsel %vm750, %v1417, %v1424
        %v1427 = vshrl.u32 %v1386, 16
        %v1429 = vrot.slane %v1427, 7
        %v1430 = vshll.u32 %v1386, 16
        %v1432 = vor.u32 %v1429, %v1430
        %v1433 = vsel %vm750, %v1421, %v1432
        %v1435 = vshrl.u32 %v1387, 16
        %v1437 = vrot.slane %v1435, 7
        %v1438 = vshll.u32 %v1387, 16
        %v1440 = vor.u32 %v1437, %v1438
        %v1441 = vsel %vm750, %v1429, %v1440
        %v1443 = vshrl.u32 %v1388, 16
        %v1445 = vrot.slane %v1443, 7
        %v1446 = vshll.u32 %v1388, 16
        %v1448 = vor.u32 %v1445, %v1446
        %v1449 = vsel %vm750, %v1437, %v1448
        %v1451 = vshrl.u32 %v1389, 16
        %v1453 = vrot.slane %v1451, 7
        %v1454 = vshll.u32 %v1389, 16
        %v1456 = vor.u32 %v1453, %v1454
        %v1457 = vsel %vm750, %v1445, %v1456
        %v1459 = vshrl.u32 %v1390, 16
        %v1461 = vrot.slane %v1459, 7
        %v1462 = vshll.u32 %v1390, 16
        %v1464 = vor.u32 %v1461, %v1462
        %v1465 = vsel %vm750, %v1453, %v1464
        %v1467 = vshrl.u32 %v1391, 16
        %v1469 = vrot.slane %v1467, 7
        %v1470 = vshll.u32 %v1391, 16
        %v1472 = vor.u32 %v1469, %v1470
        %v1473 = vsel %vm750, %v1461, %v1472
        %v1475 = vshrl.u32 %v1392, 16
        %v1477 = vrot.slane %v1475, 7
        %v1478 = vshll.u32 %v1392, 16
        %v1480 = vor.u32 %v1477, %v1478
        %v1481 = vsel %vm750, %v1469, %v1480
        %v1483 = vshrl.u32 %v1393, 16
        %v1485 = vrot.slane %v1483, 7
        %v1486 = vshll.u32 %v1393, 16
        %v1488 = vor.u32 %v1485, %v1486
        %v1489 = vsel %vm750, %v1477, %v1488
        %v1491 = vshrl.u32 %v1394, 16
        %v1493 = vrot.slane %v1491, 7
        %v1494 = vshll.u32 %v1394, 16
        %v1496 = vor.u32 %v1493, %v1494
        %v1497 = vsel %vm750, %v1485, %v1496
        %v1499 = vshrl.u32 %v1395, 16
        %v1501 = vrot.slane %v1499, 7
        %v1502 = vshll.u32 %v1395, 16
        %v1504 = vor.u32 %v1501, %v1502
        %v1505 = vsel %vm750, %v1493, %v1504
        %v1507 = vshrl.u32 %v1396, 16
        %v1509 = vrot.slane %v1507, 7
        %v1510 = vshll.u32 %v1396, 16
        %v1512 = vor.u32 %v1509, %v1510
        %v1513 = vsel %vm750, %v1501, %v1512
        %v1542 = vunpack.c.l.b16 %v1398
        %v1543 = vunpack.c.l.b16 %v1399
        %v1544 = vunpack.c.l.b16 %v1400
        %v1545 = vunpack.c.l.b16 %v1401
        %v1546 = vunpack.c.l.b16 %v1402
        %v1547 = vunpack.c.l.b16 %v1403
        %v1548 = vunpack.c.l.b16 %v1404
        %v1549 = vunpack.c.l.b16 %v1405
        %v1550 = vunpack.c.l.b16 %v1406
        %v1551 = vunpack.c.l.b16 %v1407
        %v1552 = vunpack.c.l.b16 %v1408
        %v1553 = vunpack.c.l.b16 %v1409
        %v1554 = vunpack.c.l.b16 %v1410
        %v1555 = vunpack.c.l.b16 %v1411
        %v1556 = vunpack.c.l.b16 %v1412
        %v1557 = vunpack.c.l.b16 %v1413
        %v1558 = vpack.c.b16 %v1543, %v1542
        %v1559 = vpack.c.b16 %v1545, %v1544
        %v1560 = vpack.c.b16 %v1547, %v1546
        %v1561 = vpack.c.b16 %v1549, %v1548
        %v1562 = vpack.c.b16 %v1551, %v1550
        %v1563 = vpack.c.b16 %v1553, %v1552
        %v1564 = vpack.c.b16 %v1555, %v1554
        %v1565 = vpack.c.b16 %v1557, %v1556
        %1574 = vmatprep.subr.bf16.mxu0 0
        %1575 = vmatpush1.bf16.msra.mxu0 %v1558
        %1576 = vmatprep.subr.bf16.mxu0 0
        %1577 = vmatpush1.bf16.msra.mxu0 %v1559
        %1578 = vmatprep.subr.bf16.mxu0 0
        %1579 = vmatpush1.bf16.msra.mxu0 %v1560
        %1580 = vmatprep.subr.bf16.mxu0 0
        %1581 = vmatpush1.bf16.msra.mxu0 %v1561
        %1582 = vmatprep.subr.bf16.mxu0 0
        %1583 = vmatpush1.bf16.msra.mxu0 %v1562
        %1584 = vmatprep.subr.bf16.mxu0 0
        %1585 = vmatpush1.bf16.msra.mxu0 %v1563
        %1586 = vmatprep.subr.bf16.mxu0 0
        %1587 = vmatpush1.bf16.msra.mxu0 %v1564
        %1588 = vmatprep.subr.bf16.mxu0 0
        %1589 = vmatpush1.bf16.msra.mxu0 %v1565
        %1590 = vmatprep.subr.bf16.mxu0 0
        %1591 = vmatpush1.bf16.msra.mxu0 0
        %1592 = vmatprep.subr.bf16.mxu0 0
        %1593 = vmatpush1.bf16.msra.mxu0 0
        %1594 = vmatprep.subr.bf16.mxu0 0
        %1595 = vmatpush1.bf16.msra.mxu0 0
        %1596 = vmatprep.subr.bf16.mxu0 0
        %1597 = vmatpush1.bf16.msra.mxu0 0
        %1598 = vmatprep.subr.bf16.mxu0 0
        %1599 = vmatpush1.bf16.msra.mxu0 0
        %1600 = vmatprep.subr.bf16.mxu0 0
        %1601 = vmatpush1.bf16.msra.mxu0 0
        %1602 = vmatprep.subr.bf16.mxu0 0
        %1603 = vmatpush1.bf16.msra.mxu0 0
        %1604 = vmatprep.subr.bf16.mxu0 0
        %1605 = vmatpush1.bf16.msra.mxu0 0
        %1606 = vmatprep.mubr.bf16.mxu0 0
        %1607 = vmatmul.mubr.bf16.gmra.mrb[0].mxu0 %v1425
        %v1608 = vpop.f32.mrb[0].mxu0
        %v1609 = vadd.f32 0.0, %v1608
        %v1610 = vpop.f32.mrb[0].mxu0
        %v1611 = vpop.f32.mrb[0].mxu0
        %v1612 = vadd.f32 0.0, %v1611
        %v1613 = vpop.f32.mrb[0].mxu0
        %1614 = vmatprep.mubr.bf16.mxu0 0
        %1615 = vmatmul.mubr.bf16.gmra.mrb[0].mxu0 %v1433
        %v1616 = vpop.f32.mrb[0].mxu0
        %v1617 = vadd.f32 0.0, %v1616
        %v1618 = vpop.f32.mrb[0].mxu0
        %v1619 = vpop.f32.mrb[0].mxu0
        %v1620 = vadd.f32 0.0, %v1619
        %v1621 = vpop.f32.mrb[0].mxu0
        %1622 = vmatprep.mubr.bf16.mxu0 0
        %1623 = vmatmul.mubr.bf16.gmra.mrb[0].mxu0 %v1441
        %v1624 = vpop.f32.mrb[0].mxu0
        %v1625 = vadd.f32 0.0, %v1624
        %v1626 = vpop.f32.mrb[0].mxu0
        %v1627 = vpop.f32.mrb[0].mxu0
        %v1628 = vadd.f32 0.0, %v1627
        %v1629 = vpop.f32.mrb[0].mxu0
        %1630 = vmatprep.mubr.bf16.mxu0 0
        %1631 = vmatmul.mubr.bf16.gmra.mrb[0].mxu0 %v1449
        %v1632 = vpop.f32.mrb[0].mxu0
        %v1633 = vadd.f32 0.0, %v1632
        %v1634 = vpop.f32.mrb[0].mxu0
        %v1635 = vpop.f32.mrb[0].mxu0
        %v1636 = vadd.f32 0.0, %v1635
        %v1637 = vpop.f32.mrb[0].mxu0
        %1638 = vmatprep.mubr.bf16.mxu0 0
        %1639 = vmatmul.mubr.bf16.gmra.mrb[0].mxu0 %v1457
        %v1640 = vpop.f32.mrb[0].mxu0
        %v1641 = vadd.f32 0.0, %v1640
        %v1642 = vpop.f32.mrb[0].mxu0
        %v1643 = vpop.f32.mrb[0].mxu0
        %v1644 = vadd.f32 0.0, %v1643
        %v1645 = vpop.f32.mrb[0].mxu0
        %1646 = vmatprep.mubr.bf16.mxu0 0
        %1647 = vmatmul.mubr.bf16.gmra.mrb[0].mxu0 %v1465
        %v1648 = vpop.f32.mrb[0].mxu0
        %v1649 = vadd.f32 0.0, %v1648
        %v1650 = vpop.f32.mrb[0].mxu0
        %v1651 = vpop.f32.mrb[0].mxu0
        %v1652 = vadd.f32 0.0, %v1651
        %v1653 = vpop.f32.mrb[0].mxu0
        %1654 = vmatprep.mubr.bf16.mxu0 0
        %1655 = vmatmul.mubr.bf16.gmra.mrb[0].mxu0 %v1473
        %v1656 = vpop.f32.mrb[0].mxu0
        %v1657 = vadd.f32 0.0, %v1656
        %v1658 = vpop.f32.mrb[0].mxu0
        %v1659 = vpop.f32.mrb[0].mxu0
        %v1660 = vadd.f32 0.0, %v1659
        %v1661 = vpop.f32.mrb[0].mxu0
        %1662 = vmatprep.mubr.bf16.mxu0 0
        %1663 = vmatmul.mubr.bf16.gmra.mrb[0].mxu0 %v1481
        %v1664 = vpop.f32.mrb[0].mxu0
        %v1665 = vadd.f32 0.0, %v1664
        %v1666 = vpop.f32.mrb[0].mxu0
        %v1667 = vpop.f32.mrb[0].mxu0
        %v1668 = vadd.f32 0.0, %v1667
        %v1669 = vpop.f32.mrb[0].mxu0
        %1670 = vmatprep.mubr.bf16.mxu0 0
        %1671 = vmatmul.mubr.bf16.gmra.mrb[0].mxu0 %v1489
        %v1672 = vpop.f32.mrb[0].mxu0
        %v1673 = vadd.f32 0.0, %v1672
        %v1674 = vpop.f32.mrb[0].mxu0
        %v1675 = vpop.f32.mrb[0].mxu0
        %v1676 = vadd.f32 0.0, %v1675
        %v1677 = vpop.f32.mrb[0].mxu0
        %1678 = vmatprep.mubr.bf16.mxu0 0
        %1679 = vmatmul.mubr.bf16.gmra.mrb[0].mxu0 %v1497
        %v1680 = vpop.f32.mrb[0].mxu0
        %v1681 = vadd.f32 0.0, %v1680
        %v1682 = vpop.f32.mrb[0].mxu0
        %v1683 = vpop.f32.mrb[0].mxu0
        %v1684 = vadd.f32 0.0, %v1683
        %v1685 = vpop.f32.mrb[0].mxu0
        %1686 = vmatprep.mubr.bf16.mxu0 0
        %1687 = vmatmul.mubr.bf16.gmra.mrb[0].mxu0 %v1505
        %v1688 = vpop.f32.mrb[0].mxu0
        %v1689 = vadd.f32 0.0, %v1688
        %v1690 = vpop.f32.mrb[0].mxu0
        %v1691 = vpop.f32.mrb[0].mxu0
        %v1692 = vadd.f32 0.0, %v1691
        %v1693 = vpop.f32.mrb[0].mxu0
        %1694 = vmatprep.mubr.bf16.mxu0 0
        %1695 = vmatmul.mubr.bf16.gmra.mrb[0].mxu0 %v1513
        %v1696 = vpop.f32.mrb[0].mxu0
        %v1697 = vadd.f32 0.0, %v1696
        %v1698 = vpop.f32.mrb[0].mxu0
        %v1699 = vpop.f32.mrb[0].mxu0
        %v1700 = vadd.f32 0.0, %v1699
        %v1701 = vpop.f32.mrb[0].mxu0
        %1702 = vdwg.mxu0
        %v1703 = vadd.f32 %v1360, %v1609
        %v1704 = vadd.f32 %v1361, %v1612
        %v1705 = vadd.f32 %v1362, %v1617
        %v1706 = vadd.f32 %v1363, %v1620
        %v1707 = vadd.f32 %v1364, %v1625
        %v1708 = vadd.f32 %v1365, %v1628
        %v1709 = vadd.f32 %v1366, %v1633
        %v1710 = vadd.f32 %v1367, %v1636
        %v1711 = vadd.f32 %v1368, %v1641
        %v1712 = vadd.f32 %v1369, %v1644
        %v1713 = vadd.f32 %v1370, %v1649
        %v1714 = vadd.f32 %v1371, %v1652
        %v1715 = vadd.f32 %v1372, %v1657
        %v1716 = vadd.f32 %v1373, %v1660
        %v1717 = vadd.f32 %v1374, %v1665
        %v1718 = vadd.f32 %v1375, %v1668
        %v1719 = vadd.f32 %v1376, %v1673
        %v1720 = vadd.f32 %v1377, %v1676
        %v1721 = vadd.f32 %v1378, %v1681
        %v1722 = vadd.f32 %v1379, %v1684
        %v1723 = vadd.f32 %v1380, %v1689
        %v1724 = vadd.f32 %v1381, %v1692
        %v1725 = vadd.f32 %v1382, %v1697
        %v1726 = vadd.f32 %v1383, %v1700
        %s1727 = scalar_lea.vmem [#allocation7], 256
        %v1728 = vld [vmem:[%s1727] sm:$0xf]
        %v1729 = vld [vmem:[%s1727 + $0x4] sm:$0xf]
        %v1730 = vld [vmem:[%s1727 + $0x8] sm:$0xf]
        %v1731 = vld [vmem:[%s1727 + $0xc] sm:$0xf]
        %v1732 = vld [vmem:[%s1727 + $0x10] sm:$0xf]
        %v1733 = vld [vmem:[%s1727 + $0x14] sm:$0xf]
        %v1734 = vld [vmem:[%s1727 + $0x18] sm:$0xf]
        %v1735 = vld [vmem:[%s1727 + $0x1c] sm:$0xf]
        %v1736 = vld [vmem:[%s1727 + $0x20] sm:$0xf]
        %v1737 = vld [vmem:[%s1727 + $0x24] sm:$0xf]
        %v1738 = vld [vmem:[%s1727 + $0x28] sm:$0xf]
        %v1739 = vld [vmem:[%s1727 + $0x2c] sm:$0xf]
        %v1740 = vld [vmem:[%s1727 + $0x30] sm:$0xf]
        %v1741 = vld [vmem:[%s1727 + $0x34] sm:$0xf]
        %v1742 = vld [vmem:[%s1727 + $0x38] sm:$0xf]
        %v1743 = vld [vmem:[%s1727 + $0x3c] sm:$0xf]
        %v1760 = vunpack.c.l.b16 %v1728
        %v1761 = vunpack.c.l.b16 %v1729
        %v1762 = vunpack.c.l.b16 %v1730
        %v1763 = vunpack.c.l.b16 %v1731
        %v1764 = vunpack.c.l.b16 %v1732
        %v1765 = vunpack.c.l.b16 %v1733
        %v1766 = vunpack.c.l.b16 %v1734
        %v1767 = vunpack.c.l.b16 %v1735
        %v1768 = vunpack.c.l.b16 %v1736
        %v1769 = vunpack.c.l.b16 %v1737
        %v1770 = vunpack.c.l.b16 %v1738
        %v1771 = vunpack.c.l.b16 %v1739
        %v1772 = vunpack.c.l.b16 %v1740
        %v1773 = vunpack.c.l.b16 %v1741
        %v1774 = vunpack.c.l.b16 %v1742
        %v1775 = vunpack.c.l.b16 %v1743
        %v1776 = vpack.c.b16 %v1761, %v1760
        %v1777 = vpack.c.b16 %v1763, %v1762
        %v1778 = vpack.c.b16 %v1765, %v1764
        %v1779 = vpack.c.b16 %v1767, %v1766
        %v1780 = vpack.c.b16 %v1769, %v1768
        %v1781 = vpack.c.b16 %v1771, %v1770
        %v1782 = vpack.c.b16 %v1773, %v1772
        %v1783 = vpack.c.b16 %v1775, %v1774
        %1792 = vmatprep.subr.bf16.mxu0 0
        %1793 = vmatpush1.bf16.msra.mxu0 %v1776
        %1794 = vmatprep.subr.bf16.mxu0 0
        %1795 = vmatpush1.bf16.msra.mxu0 %v1777
        %1796 = vmatprep.subr.bf16.mxu0 0
        %1797 = vmatpush1.bf16.msra.mxu0 %v1778
        %1798 = vmatprep.subr.bf16.mxu0 0
        %1799 = vmatpush1.bf16.msra.mxu0 %v1779
        %1800 = vmatprep.subr.bf16.mxu0 0
        %1801 = vmatpush1.bf16.msra.mxu0 %v1780
        %1802 = vmatprep.subr.bf16.mxu0 0
        %1803 = vmatpush1.bf16.msra.mxu0 %v1781
        %1804 = vmatprep.subr.bf16.mxu0 0
        %1805 = vmatpush1.bf16.msra.mxu0 %v1782
        %1806 = vmatprep.subr.bf16.mxu0 0
        %1807 = vmatpush1.bf16.msra.mxu0 %v1783
        %1808 = vmatprep.subr.bf16.mxu0 0
        %1809 = vmatpush1.bf16.msra.mxu0 0
        %1810 = vmatprep.subr.bf16.mxu0 0
        %1811 = vmatpush1.bf16.msra.mxu0 0
        %1812 = vmatprep.subr.bf16.mxu0 0
        %1813 = vmatpush1.bf16.msra.mxu0 0
        %1814 = vmatprep.subr.bf16.mxu0 0
        %1815 = vmatpush1.bf16.msra.mxu0 0
        %1816 = vmatprep.subr.bf16.mxu0 0
        %1817 = vmatpush1.bf16.msra.mxu0 0
        %1818 = vmatprep.subr.bf16.mxu0 0
        %1819 = vmatpush1.bf16.msra.mxu0 0
        %1820 = vmatprep.subr.bf16.mxu0 0
        %1821 = vmatpush1.bf16.msra.mxu0 0
        %1822 = vmatprep.subr.bf16.mxu0 0
        %1823 = vmatpush1.bf16.msra.mxu0 0
        %1824 = vmatprep.mubr.bf16.mxu0 0
        %1825 = vmatmul.mubr.bf16.gmra.mrb[0].mxu0 %v1385
        %v1826 = vpop.f32.mrb[0].mxu0
        %v1827 = vadd.f32 0.0, %v1826
        %v1828 = vpop.f32.mrb[0].mxu0
        %v1829 = vpop.f32.mrb[0].mxu0
        %v1830 = vadd.f32 0.0, %v1829
        %v1831 = vpop.f32.mrb[0].mxu0
        %1832 = vmatprep.mubr.bf16.mxu0 0
        %1833 = vmatmul.mubr.bf16.gmra.mrb[0].mxu0 %v1386
        %v1834 = vpop.f32.mrb[0].mxu0
        %v1835 = vadd.f32 0.0, %v1834
        %v1836 = vpop.f32.mrb[0].mxu0
        %v1837 = vpop.f32.mrb[0].mxu0
        %v1838 = vadd.f32 0.0, %v1837
        %v1839 = vpop.f32.mrb[0].mxu0
        %1840 = vmatprep.mubr.bf16.mxu0 0
        %1841 = vmatmul.mubr.bf16.gmra.mrb[0].mxu0 %v1387
        %v1842 = vpop.f32.mrb[0].mxu0
        %v1843 = vadd.f32 0.0, %v1842
        %v1844 = vpop.f32.mrb[0].mxu0
        %v1845 = vpop.f32.mrb[0].mxu0
        %v1846 = vadd.f32 0.0, %v1845
        %v1847 = vpop.f32.mrb[0].mxu0
        %1848 = vmatprep.mubr.bf16.mxu0 0
        %1849 = vmatmul.mubr.bf16.gmra.mrb[0].mxu0 %v1388
        %v1850 = vpop.f32.mrb[0].mxu0
        %v1851 = vadd.f32 0.0, %v1850
        %v1852 = vpop.f32.mrb[0].mxu0
        %v1853 = vpop.f32.mrb[0].mxu0
        %v1854 = vadd.f32 0.0, %v1853
        %v1855 = vpop.f32.mrb[0].mxu0
        %1856 = vmatprep.mubr.bf16.mxu0 0
        %1857 = vmatmul.mubr.bf16.gmra.mrb[0].mxu0 %v1389
        %v1858 = vpop.f32.mrb[0].mxu0
        %v1859 = vadd.f32 0.0, %v1858
        %v1860 = vpop.f32.mrb[0].mxu0
        %v1861 = vpop.f32.mrb[0].mxu0
        %v1862 = vadd.f32 0.0, %v1861
        %v1863 = vpop.f32.mrb[0].mxu0
        %1864 = vmatprep.mubr.bf16.mxu0 0
        %1865 = vmatmul.mubr.bf16.gmra.mrb[0].mxu0 %v1390
        %v1866 = vpop.f32.mrb[0].mxu0
        %v1867 = vadd.f32 0.0, %v1866
        %v1868 = vpop.f32.mrb[0].mxu0
        %v1869 = vpop.f32.mrb[0].mxu0
        %v1870 = vadd.f32 0.0, %v1869
        %v1871 = vpop.f32.mrb[0].mxu0
        %1872 = vmatprep.mubr.bf16.mxu0 0
        %1873 = vmatmul.mubr.bf16.gmra.mrb[0].mxu0 %v1391
        %v1874 = vpop.f32.mrb[0].mxu0
        %v1875 = vadd.f32 0.0, %v1874
        %v1876 = vpop.f32.mrb[0].mxu0
        %v1877 = vpop.f32.mrb[0].mxu0
        %v1878 = vadd.f32 0.0, %v1877
        %v1879 = vpop.f32.mrb[0].mxu0
        %1880 = vmatprep.mubr.bf16.mxu0 0
        %1881 = vmatmul.mubr.bf16.gmra.mrb[0].mxu0 %v1392
        %v1882 = vpop.f32.mrb[0].mxu0
        %v1883 = vadd.f32 0.0, %v1882
        %v1884 = vpop.f32.mrb[0].mxu0
        %v1885 = vpop.f32.mrb[0].mxu0
        %v1886 = vadd.f32 0.0, %v1885
        %v1887 = vpop.f32.mrb[0].mxu0
        %1888 = vmatprep.mubr.bf16.mxu0 0
        %1889 = vmatmul.mubr.bf16.gmra.mrb[0].mxu0 %v1393
        %v1890 = vpop.f32.mrb[0].mxu0
        %v1891 = vadd.f32 0.0, %v1890
        %v1892 = vpop.f32.mrb[0].mxu0
        %v1893 = vpop.f32.mrb[0].mxu0
        %v1894 = vadd.f32 0.0, %v1893
        %v1895 = vpop.f32.mrb[0].mxu0
        %1896 = vmatprep.mubr.bf16.mxu0 0
        %1897 = vmatmul.mubr.bf16.gmra.mrb[0].mxu0 %v1394
        %v1898 = vpop.f32.mrb[0].mxu0
        %v1899 = vadd.f32 0.0, %v1898
        %v1900 = vpop.f32.mrb[0].mxu0
        %v1901 = vpop.f32.mrb[0].mxu0
        %v1902 = vadd.f32 0.0, %v1901
        %v1903 = vpop.f32.mrb[0].mxu0
        %1904 = vmatprep.mubr.bf16.mxu0 0
        %1905 = vmatmul.mubr.bf16.gmra.mrb[0].mxu0 %v1395
        %v1906 = vpop.f32.mrb[0].mxu0
        %v1907 = vadd.f32 0.0, %v1906
        %v1908 = vpop.f32.mrb[0].mxu0
        %v1909 = vpop.f32.mrb[0].mxu0
        %v1910 = vadd.f32 0.0, %v1909
        %v1911 = vpop.f32.mrb[0].mxu0
        %1912 = vmatprep.mubr.bf16.mxu0 0
        %1913 = vmatmul.mubr.bf16.gmra.mrb[0].mxu0 %v1396
        %v1914 = vpop.f32.mrb[0].mxu0
        %v1915 = vadd.f32 0.0, %v1914
        %v1916 = vpop.f32.mrb[0].mxu0
        %v1917 = vpop.f32.mrb[0].mxu0
        %v1918 = vadd.f32 0.0, %v1917
        %v1919 = vpop.f32.mrb[0].mxu0
        %1920 = vdwg.mxu0
        %v1921 = vadd.f32 %v1703, %v1827
        %v1922 = vadd.f32 %v1704, %v1830
        %v1923 = vadd.f32 %v1705, %v1835
        %v1924 = vadd.f32 %v1706, %v1838
        %v1925 = vadd.f32 %v1707, %v1843
        %v1926 = vadd.f32 %v1708, %v1846
        %v1927 = vadd.f32 %v1709, %v1851
        %v1928 = vadd.f32 %v1710, %v1854
        %v1929 = vadd.f32 %v1711, %v1859
        %v1930 = vadd.f32 %v1712, %v1862
        %v1931 = vadd.f32 %v1713, %v1867
        %v1932 = vadd.f32 %v1714, %v1870
        %v1933 = vadd.f32 %v1715, %v1875
        %v1934 = vadd.f32 %v1716, %v1878
        %v1935 = vadd.f32 %v1717, %v1883
        %v1936 = vadd.f32 %v1718, %v1886
        %v1937 = vadd.f32 %v1719, %v1891
        %v1938 = vadd.f32 %v1720, %v1894
        %v1939 = vadd.f32 %v1721, %v1899
        %v1940 = vadd.f32 %v1722, %v1902
        %v1941 = vadd.f32 %v1723, %v1907
        %v1942 = vadd.f32 %v1724, %v1910
        %v1943 = vadd.f32 %v1725, %v1915
        %v1944 = vadd.f32 %v1726, %v1918
        %v1945 = vld [vmem:[#allocation2 + $0x20] sm:$0xff]
        %v1946 = vld [vmem:[#allocation2 + $0x28] sm:$0xff]
        %v1947 = vld [vmem:[#allocation2 + $0x30] sm:$0xff]
        %v1948 = vld [vmem:[#allocation2 + $0x38] sm:$0xff]
        %v1949 = vld [vmem:[#allocation2 + $0x40] sm:$0xff]
        %v1950 = vld [vmem:[#allocation2 + $0x48] sm:$0xff]
        %v1951 = vld [vmem:[#allocation2 + $0x50] sm:$0xff]
        %v1952 = vld [vmem:[#allocation2 + $0x58] sm:$0xff]
        %v1953 = vld [vmem:[#allocation2 + $0x60] sm:$0xff]
        %v1954 = vld [vmem:[#allocation2 + $0x68] sm:$0xff]
        %v1955 = vld [vmem:[#allocation2 + $0x70] sm:$0xff]
        %v1956 = vld [vmem:[#allocation2 + $0x78] sm:$0xff]
        %v1957 = vld [vmem:[#allocation2 + $0x80] sm:$0x1]
        %s1958 = scalar_lea.vmem [#allocation7], 320
        %v1959 = vld [vmem:[%s1958] sm:$0xf]
        %v1960 = vld [vmem:[%s1958 + $0x4] sm:$0xf]
        %v1961 = vld [vmem:[%s1958 + $0x8] sm:$0xf]
        %v1962 = vld [vmem:[%s1958 + $0xc] sm:$0xf]
        %v1963 = vld [vmem:[%s1958 + $0x10] sm:$0xf]
        %v1964 = vld [vmem:[%s1958 + $0x14] sm:$0xf]
        %v1965 = vld [vmem:[%s1958 + $0x18] sm:$0xf]
        %v1966 = vld [vmem:[%s1958 + $0x1c] sm:$0xf]
        %v1967 = vld [vmem:[%s1958 + $0x20] sm:$0xf]
        %v1968 = vld [vmem:[%s1958 + $0x24] sm:$0xf]
        %v1969 = vld [vmem:[%s1958 + $0x28] sm:$0xf]
        %v1970 = vld [vmem:[%s1958 + $0x2c] sm:$0xf]
        %v1971 = vld [vmem:[%s1958 + $0x30] sm:$0xf]
        %v1972 = vld [vmem:[%s1958 + $0x34] sm:$0xf]
        %v1973 = vld [vmem:[%s1958 + $0x38] sm:$0xf]
        %v1974 = vld [vmem:[%s1958 + $0x3c] sm:$0xf]
        %v1976 = vshrl.u32 %v1945, 16
        %v1978 = vshll.u32 %v1945, 16
        %v1980 = vrot.slane %v1978, 1
        %v1981 = vor.u32 %v1976, %v1980
        %v1983 = vshll.u32 %v1946, 16
        %v1985 = vrot.slane %v1983, 1
        %v1986 = vsel %vm1070, %v1981, %v1985
        %v1987 = vshrl.u32 %v1946, 16
        %v1989 = vor.u32 %v1987, %v1985
        %v1991 = vshll.u32 %v1947, 16
        %v1993 = vrot.slane %v1991, 1
        %v1994 = vsel %vm1070, %v1989, %v1993
        %v1995 = vshrl.u32 %v1947, 16
        %v1997 = vor.u32 %v1995, %v1993
        %v1999 = vshll.u32 %v1948, 16
        %v2001 = vrot.slane %v1999, 1
        %v2002 = vsel %vm1070, %v1997, %v2001
        %v2003 = vshrl.u32 %v1948, 16
        %v2005 = vor.u32 %v2003, %v2001
        %v2007 = vshll.u32 %v1949, 16
        %v2009 = vrot.slane %v2007, 1
        %v2010 = vsel %vm1070, %v2005, %v2009
        %v2011 = vshrl.u32 %v1949, 16
        %v2013 = vor.u32 %v2011, %v2009
        %v2015 = vshll.u32 %v1950, 16
        %v2017 = vrot.slane %v2015, 1
        %v2018 = vsel %vm1070, %v2013, %v2017
        %v2019 = vshrl.u32 %v1950, 16
        %v2021 = vor.u32 %v2019, %v2017
        %v2023 = vshll.u32 %v1951, 16
        %v2025 = vrot.slane %v2023, 1
        %v2026 = vsel %vm1070, %v2021, %v2025
        %v2027 = vshrl.u32 %v1951, 16
        %v2029 = vor.u32 %v2027, %v2025
        %v2031 = vshll.u32 %v1952, 16
        %v2033 = vrot.slane %v2031, 1
        %v2034 = vsel %vm1070, %v2029, %v2033
        %v2035 = vshrl.u32 %v1952, 16
        %v2037 = vor.u32 %v2035, %v2033
        %v2039 = vshll.u32 %v1953, 16
        %v2041 = vrot.slane %v2039, 1
        %v2042 = vsel %vm1070, %v2037, %v2041
        %v2043 = vshrl.u32 %v1953, 16
        %v2045 = vor.u32 %v2043, %v2041
        %v2047 = vshll.u32 %v1954, 16
        %v2049 = vrot.slane %v2047, 1
        %v2050 = vsel %vm1070, %v2045, %v2049
        %v2051 = vshrl.u32 %v1954, 16
        %v2053 = vor.u32 %v2051, %v2049
        %v2055 = vshll.u32 %v1955, 16
        %v2057 = vrot.slane %v2055, 1
        %v2058 = vsel %vm1070, %v2053, %v2057
        %v2059 = vshrl.u32 %v1955, 16
        %v2061 = vor.u32 %v2059, %v2057
        %v2063 = vshll.u32 %v1956, 16
        %v2065 = vrot.slane %v2063, 1
        %v2066 = vsel %vm1070, %v2061, %v2065
        %v2067 = vshrl.u32 %v1956, 16
        %v2069 = vor.u32 %v2067, %v2065
        %v2071 = vshll.u32 %v1957, 16
        %v2073 = vrot.slane %v2071, 1
        %v2074 = vsel %vm1070, %v2069, %v2073
        %v2103 = vunpack.c.l.b16 %v1959
        %v2104 = vunpack.c.l.b16 %v1960
        %v2105 = vunpack.c.l.b16 %v1961
        %v2106 = vunpack.c.l.b16 %v1962
        %v2107 = vunpack.c.l.b16 %v1963
        %v2108 = vunpack.c.l.b16 %v1964
        %v2109 = vunpack.c.l.b16 %v1965
        %v2110 = vunpack.c.l.b16 %v1966
        %v2111 = vunpack.c.l.b16 %v1967
        %v2112 = vunpack.c.l.b16 %v1968
        %v2113 = vunpack.c.l.b16 %v1969
        %v2114 = vunpack.c.l.b16 %v1970
        %v2115 = vunpack.c.l.b16 %v1971
        %v2116 = vunpack.c.l.b16 %v1972
        %v2117 = vunpack.c.l.b16 %v1973
        %v2118 = vunpack.c.l.b16 %v1974
        %v2119 = vpack.c.b16 %v2104, %v2103
        %v2120 = vpack.c.b16 %v2106, %v2105
        %v2121 = vpack.c.b16 %v2108, %v2107
        %v2122 = vpack.c.b16 %v2110, %v2109
        %v2123 = vpack.c.b16 %v2112, %v2111
        %v2124 = vpack.c.b16 %v2114, %v2113
        %v2125 = vpack.c.b16 %v2116, %v2115
        %v2126 = vpack.c.b16 %v2118, %v2117
        %2135 = vmatprep.subr.bf16.mxu0 0
        %2136 = vmatpush1.bf16.msra.mxu0 %v2119
        %2137 = vmatprep.subr.bf16.mxu0 0
        %2138 = vmatpush1.bf16.msra.mxu0 %v2120
        %2139 = vmatprep.subr.bf16.mxu0 0
        %2140 = vmatpush1.bf16.msra.mxu0 %v2121
        %2141 = vmatprep.subr.bf16.mxu0 0
        %2142 = vmatpush1.bf16.msra.mxu0 %v2122
        %2143 = vmatprep.subr.bf16.mxu0 0
        %2144 = vmatpush1.bf16.msra.mxu0 %v2123
        %2145 = vmatprep.subr.bf16.mxu0 0
        %2146 = vmatpush1.bf16.msra.mxu0 %v2124
        %2147 = vmatprep.subr.bf16.mxu0 0
        %2148 = vmatpush1.bf16.msra.mxu0 %v2125
        %2149 = vmatprep.subr.bf16.mxu0 0
        %2150 = vmatpush1.bf16.msra.mxu0 %v2126
        %2151 = vmatprep.subr.bf16.mxu0 0
        %2152 = vmatpush1.bf16.msra.mxu0 0
        %2153 = vmatprep.subr.bf16.mxu0 0
        %2154 = vmatpush1.bf16.msra.mxu0 0
        %2155 = vmatprep.subr.bf16.mxu0 0
        %2156 = vmatpush1.bf16.msra.mxu0 0
        %2157 = vmatprep.subr.bf16.mxu0 0
        %2158 = vmatpush1.bf16.msra.mxu0 0
        %2159 = vmatprep.subr.bf16.mxu0 0
        %2160 = vmatpush1.bf16.msra.mxu0 0
        %2161 = vmatprep.subr.bf16.mxu0 0
        %2162 = vmatpush1.bf16.msra.mxu0 0
        %2163 = vmatprep.subr.bf16.mxu0 0
        %2164 = vmatpush1.bf16.msra.mxu0 0
        %2165 = vmatprep.subr.bf16.mxu0 0
        %2166 = vmatpush1.bf16.msra.mxu0 0
        %2167 = vmatprep.mubr.bf16.mxu0 0
        %2168 = vmatmul.mubr.bf16.gmra.mrb[0].mxu0 %v1986
        %v2169 = vpop.f32.mrb[0].mxu0
        %v2170 = vadd.f32 0.0, %v2169
        %v2171 = vpop.f32.mrb[0].mxu0
        %v2172 = vpop.f32.mrb[0].mxu0
        %v2173 = vadd.f32 0.0, %v2172
        %v2174 = vpop.f32.mrb[0].mxu0
        %2175 = vmatprep.mubr.bf16.mxu0 0
        %2176 = vmatmul.mubr.bf16.gmra.mrb[0].mxu0 %v1994
        %v2177 = vpop.f32.mrb[0].mxu0
        %v2178 = vadd.f32 0.0, %v2177
        %v2179 = vpop.f32.mrb[0].mxu0
        %v2180 = vpop.f32.mrb[0].mxu0
        %v2181 = vadd.f32 0.0, %v2180
        %v2182 = vpop.f32.mrb[0].mxu0
        %2183 = vmatprep.mubr.bf16.mxu0 0
        %2184 = vmatmul.mubr.bf16.gmra.mrb[0].mxu0 %v2002
        %v2185 = vpop.f32.mrb[0].mxu0
        %v2186 = vadd.f32 0.0, %v2185
        %v2187 = vpop.f32.mrb[0].mxu0
        %v2188 = vpop.f32.mrb[0].mxu0
        %v2189 = vadd.f32 0.0, %v2188
        %v2190 = vpop.f32.mrb[0].mxu0
        %2191 = vmatprep.mubr.bf16.mxu0 0
        %2192 = vmatmul.mubr.bf16.gmra.mrb[0].mxu0 %v2010
        %v2193 = vpop.f32.mrb[0].mxu0
        %v2194 = vadd.f32 0.0, %v2193
        %v2195 = vpop.f32.mrb[0].mxu0
        %v2196 = vpop.f32.mrb[0].mxu0
        %v2197 = vadd.f32 0.0, %v2196
        %v2198 = vpop.f32.mrb[0].mxu0
        %2199 = vmatprep.mubr.bf16.mxu0 0
        %2200 = vmatmul.mubr.bf16.gmra.mrb[0].mxu0 %v2018
        %v2201 = vpop.f32.mrb[0].mxu0
        %v2202 = vadd.f32 0.0, %v2201
        %v2203 = vpop.f32.mrb[0].mxu0
        %v2204 = vpop.f32.mrb[0].mxu0
        %v2205 = vadd.f32 0.0, %v2204
        %v2206 = vpop.f32.mrb[0].mxu0
        %2207 = vmatprep.mubr.bf16.mxu0 0
        %2208 = vmatmul.mubr.bf16.gmra.mrb[0].mxu0 %v2026
        %v2209 = vpop.f32.mrb[0].mxu0
        %v2210 = vadd.f32 0.0, %v2209
        %v2211 = vpop.f32.mrb[0].mxu0
        %v2212 = vpop.f32.mrb[0].mxu0
        %v2213 = vadd.f32 0.0, %v2212
        %v2214 = vpop.f32.mrb[0].mxu0
        %2215 = vmatprep.mubr.bf16.mxu0 0
        %2216 = vmatmul.mubr.bf16.gmra.mrb[0].mxu0 %v2034
        %v2217 = vpop.f32.mrb[0].mxu0
        %v2218 = vadd.f32 0.0, %v2217
        %v2219 = vpop.f32.mrb[0].mxu0
        %v2220 = vpop.f32.mrb[0].mxu0
        %v2221 = vadd.f32 0.0, %v2220
        %v2222 = vpop.f32.mrb[0].mxu0
        %2223 = vmatprep.mubr.bf16.mxu0 0
        %2224 = vmatmul.mubr.bf16.gmra.mrb[0].mxu0 %v2042
        %v2225 = vpop.f32.mrb[0].mxu0
        %v2226 = vadd.f32 0.0, %v2225
        %v2227 = vpop.f32.mrb[0].mxu0
        %v2228 = vpop.f32.mrb[0].mxu0
        %v2229 = vadd.f32 0.0, %v2228
        %v2230 = vpop.f32.mrb[0].mxu0
        %2231 = vmatprep.mubr.bf16.mxu0 0
        %2232 = vmatmul.mubr.bf16.gmra.mrb[0].mxu0 %v2050
        %v2233 = vpop.f32.mrb[0].mxu0
        %v2234 = vadd.f32 0.0, %v2233
        %v2235 = vpop.f32.mrb[0].mxu0
        %v2236 = vpop.f32.mrb[0].mxu0
        %v2237 = vadd.f32 0.0, %v2236
        %v2238 = vpop.f32.mrb[0].mxu0
        %2239 = vmatprep.mubr.bf16.mxu0 0
        %2240 = vmatmul.mubr.bf16.gmra.mrb[0].mxu0 %v2058
        %v2241 = vpop.f32.mrb[0].mxu0
        %v2242 = vadd.f32 0.0, %v2241
        %v2243 = vpop.f32.mrb[0].mxu0
        %v2244 = vpop.f32.mrb[0].mxu0
        %v2245 = vadd.f32 0.0, %v2244
        %v2246 = vpop.f32.mrb[0].mxu0
        %2247 = vmatprep.mubr.bf16.mxu0 0
        %2248 = vmatmul.mubr.bf16.gmra.mrb[0].mxu0 %v2066
        %v2249 = vpop.f32.mrb[0].mxu0
        %v2250 = vadd.f32 0.0, %v2249
        %v2251 = vpop.f32.mrb[0].mxu0
        %v2252 = vpop.f32.mrb[0].mxu0
        %v2253 = vadd.f32 0.0, %v2252
        %v2254 = vpop.f32.mrb[0].mxu0
        %2255 = vmatprep.mubr.bf16.mxu0 0
        %2256 = vmatmul.mubr.bf16.gmra.mrb[0].mxu0 %v2074
        %v2257 = vpop.f32.mrb[0].mxu0
        %v2258 = vadd.f32 0.0, %v2257
        %v2259 = vpop.f32.mrb[0].mxu0
        %v2260 = vpop.f32.mrb[0].mxu0
        %v2261 = vadd.f32 0.0, %v2260
        %v2262 = vpop.f32.mrb[0].mxu0
        %2263 = vdwg.mxu0
        %v2264 = vadd.f32 %v1921, %v2170
        %v2265 = vadd.f32 %v1922, %v2173
        %v2266 = vadd.f32 %v1923, %v2178
        %v2267 = vadd.f32 %v1924, %v2181
        %v2268 = vadd.f32 %v1925, %v2186
        %v2269 = vadd.f32 %v1926, %v2189
        %v2270 = vadd.f32 %v1927, %v2194
        %v2271 = vadd.f32 %v1928, %v2197
        %v2272 = vadd.f32 %v1929, %v2202
        %v2273 = vadd.f32 %v1930, %v2205
        %v2274 = vadd.f32 %v1931, %v2210
        %v2275 = vadd.f32 %v1932, %v2213
        %v2276 = vadd.f32 %v1933, %v2218
        %v2277 = vadd.f32 %v1934, %v2221
        %v2278 = vadd.f32 %v1935, %v2226
        %v2279 = vadd.f32 %v1936, %v2229
        %v2280 = vadd.f32 %v1937, %v2234
        %v2281 = vadd.f32 %v1938, %v2237
        %v2282 = vadd.f32 %v1939, %v2242
        %v2283 = vadd.f32 %v1940, %v2245
        %v2284 = vadd.f32 %v1941, %v2250
        %v2285 = vadd.f32 %v1942, %v2253
        %v2286 = vadd.f32 %v1943, %v2258
        %v2287 = vadd.f32 %v1944, %v2261
        %v2288 = vld [vmem:[#allocation2 + $0x28] sm:$0x80]
        %v2289 = vld [vmem:[#allocation2 + $0x30] sm:$0xff]
        %v2290 = vld [vmem:[#allocation2 + $0x38] sm:$0xff]
        %v2291 = vld [vmem:[#allocation2 + $0x40] sm:$0xff]
        %v2292 = vld [vmem:[#allocation2 + $0x48] sm:$0xff]
        %v2293 = vld [vmem:[#allocation2 + $0x50] sm:$0xff]
        %v2294 = vld [vmem:[#allocation2 + $0x58] sm:$0xff]
        %v2295 = vld [vmem:[#allocation2 + $0x60] sm:$0xff]
        %v2296 = vld [vmem:[#allocation2 + $0x68] sm:$0xff]
        %v2297 = vld [vmem:[#allocation2 + $0x70] sm:$0xff]
        %v2298 = vld [vmem:[#allocation2 + $0x78] sm:$0xff]
        %v2299 = vld [vmem:[#allocation2 + $0x80] sm:$0xff]
        %v2300 = vld [vmem:[#allocation2 + $0x88] sm:$0xff]
        %s2301 = scalar_lea.vmem [#allocation7], 384
        %v2302 = vld [vmem:[%s2301] sm:$0xf]
        %v2303 = vld [vmem:[%s2301 + $0x4] sm:$0xf]
        %v2304 = vld [vmem:[%s2301 + $0x8] sm:$0xf]
        %v2305 = vld [vmem:[%s2301 + $0xc] sm:$0xf]
        %v2306 = vld [vmem:[%s2301 + $0x10] sm:$0xf]
        %v2307 = vld [vmem:[%s2301 + $0x14] sm:$0xf]
        %v2308 = vld [vmem:[%s2301 + $0x18] sm:$0xf]
        %v2309 = vld [vmem:[%s2301 + $0x1c] sm:$0xf]
        %v2310 = vld [vmem:[%s2301 + $0x20] sm:$0xf]
        %v2311 = vld [vmem:[%s2301 + $0x24] sm:$0xf]
        %v2312 = vld [vmem:[%s2301 + $0x28] sm:$0xf]
        %v2313 = vld [vmem:[%s2301 + $0x2c] sm:$0xf]
        %v2314 = vld [vmem:[%s2301 + $0x30] sm:$0xf]
        %v2315 = vld [vmem:[%s2301 + $0x34] sm:$0xf]
        %v2316 = vld [vmem:[%s2301 + $0x38] sm:$0xf]
        %v2317 = vld [vmem:[%s2301 + $0x3c] sm:$0xf]
        %v2319 = vshrl.u32 %v2288, 16
        %v2321 = vrot.slane %v2319, 7
        %v2323 = vshrl.u32 %v2289, 16
        %v2325 = vrot.slane %v2323, 7
        %v2326 = vshll.u32 %v2289, 16
        %v2328 = vor.u32 %v2325, %v2326
        %v2329 = vsel %vm750, %v2321, %v2328
        %v2331 = vshrl.u32 %v2290, 16
        %v2333 = vrot.slane %v2331, 7
        %v2334 = vshll.u32 %v2290, 16
        %v2336 = vor.u32 %v2333, %v2334
        %v2337 = vsel %vm750, %v2325, %v2336
        %v2339 = vshrl.u32 %v2291, 16
        %v2341 = vrot.slane %v2339, 7
        %v2342 = vshll.u32 %v2291, 16
        %v2344 = vor.u32 %v2341, %v2342
        %v2345 = vsel %vm750, %v2333, %v2344
        %v2347 = vshrl.u32 %v2292, 16
        %v2349 = vrot.slane %v2347, 7
        %v2350 = vshll.u32 %v2292, 16
        %v2352 = vor.u32 %v2349, %v2350
        %v2353 = vsel %vm750, %v2341, %v2352
        %v2355 = vshrl.u32 %v2293, 16
        %v2357 = vrot.slane %v2355, 7
        %v2358 = vshll.u32 %v2293, 16
        %v2360 = vor.u32 %v2357, %v2358
        %v2361 = vsel %vm750, %v2349, %v2360
        %v2363 = vshrl.u32 %v2294, 16
        %v2365 = vrot.slane %v2363, 7
        %v2366 = vshll.u32 %v2294, 16
        %v2368 = vor.u32 %v2365, %v2366
        %v2369 = vsel %vm750, %v2357, %v2368
        %v2371 = vshrl.u32 %v2295, 16
        %v2373 = vrot.slane %v2371, 7
        %v2374 = vshll.u32 %v2295, 16
        %v2376 = vor.u32 %v2373, %v2374
        %v2377 = vsel %vm750, %v2365, %v2376
        %v2379 = vshrl.u32 %v2296, 16
        %v2381 = vrot.slane %v2379, 7
        %v2382 = vshll.u32 %v2296, 16
        %v2384 = vor.u32 %v2381, %v2382
        %v2385 = vsel %vm750, %v2373, %v2384
        %v2387 = vshrl.u32 %v2297, 16
        %v2389 = vrot.slane %v2387, 7
        %v2390 = vshll.u32 %v2297, 16
        %v2392 = vor.u32 %v2389, %v2390
        %v2393 = vsel %vm750, %v2381, %v2392
        %v2395 = vshrl.u32 %v2298, 16
        %v2397 = vrot.slane %v2395, 7
        %v2398 = vshll.u32 %v2298, 16
        %v2400 = vor.u32 %v2397, %v2398
        %v2401 = vsel %vm750, %v2389, %v2400
        %v2403 = vshrl.u32 %v2299, 16
        %v2405 = vrot.slane %v2403, 7
        %v2406 = vshll.u32 %v2299, 16
        %v2408 = vor.u32 %v2405, %v2406
        %v2409 = vsel %vm750, %v2397, %v2408
        %v2411 = vshrl.u32 %v2300, 16
        %v2413 = vrot.slane %v2411, 7
        %v2414 = vshll.u32 %v2300, 16
        %v2416 = vor.u32 %v2413, %v2414
        %v2417 = vsel %vm750, %v2405, %v2416
        %v2446 = vunpack.c.l.b16 %v2302
        %v2447 = vunpack.c.l.b16 %v2303
        %v2448 = vunpack.c.l.b16 %v2304
        %v2449 = vunpack.c.l.b16 %v2305
        %v2450 = vunpack.c.l.b16 %v2306
        %v2451 = vunpack.c.l.b16 %v2307
        %v2452 = vunpack.c.l.b16 %v2308
        %v2453 = vunpack.c.l.b16 %v2309
        %v2454 = vunpack.c.l.b16 %v2310
        %v2455 = vunpack.c.l.b16 %v2311
        %v2456 = vunpack.c.l.b16 %v2312
        %v2457 = vunpack.c.l.b16 %v2313
        %v2458 = vunpack.c.l.b16 %v2314
        %v2459 = vunpack.c.l.b16 %v2315
        %v2460 = vunpack.c.l.b16 %v2316
        %v2461 = vunpack.c.l.b16 %v2317
        %v2462 = vpack.c.b16 %v2447, %v2446
        %v2463 = vpack.c.b16 %v2449, %v2448
        %v2464 = vpack.c.b16 %v2451, %v2450
        %v2465 = vpack.c.b16 %v2453, %v2452
        %v2466 = vpack.c.b16 %v2455, %v2454
        %v2467 = vpack.c.b16 %v2457, %v2456
        %v2468 = vpack.c.b16 %v2459, %v2458
        %v2469 = vpack.c.b16 %v2461, %v2460
        %2478 = vmatprep.subr.bf16.mxu0 0
        %2479 = vmatpush1.bf16.msra.mxu0 %v2462
        %2480 = vmatprep.subr.bf16.mxu0 0
        %2481 = vmatpush1.bf16.msra.mxu0 %v2463
        %2482 = vmatprep.subr.bf16.mxu0 0
        %2483 = vmatpush1.bf16.msra.mxu0 %v2464
        %2484 = vmatprep.subr.bf16.mxu0 0
        %2485 = vmatpush1.bf16.msra.mxu0 %v2465
        %2486 = vmatprep.subr.bf16.mxu0 0
        %2487 = vmatpush1.bf16.msra.mxu0 %v2466
        %2488 = vmatprep.subr.bf16.mxu0 0
        %2489 = vmatpush1.bf16.msra.mxu0 %v2467
        %2490 = vmatprep.subr.bf16.mxu0 0
        %2491 = vmatpush1.bf16.msra.mxu0 %v2468
        %2492 = vmatprep.subr.bf16.mxu0 0
        %2493 = vmatpush1.bf16.msra.mxu0 %v2469
        %2494 = vmatprep.subr.bf16.mxu0 0
        %2495 = vmatpush1.bf16.msra.mxu0 0
        %2496 = vmatprep.subr.bf16.mxu0 0
        %2497 = vmatpush1.bf16.msra.mxu0 0
        %2498 = vmatprep.subr.bf16.mxu0 0
        %2499 = vmatpush1.bf16.msra.mxu0 0
        %2500 = vmatprep.subr.bf16.mxu0 0
        %2501 = vmatpush1.bf16.msra.mxu0 0
        %2502 = vmatprep.subr.bf16.mxu0 0
        %2503 = vmatpush1.bf16.msra.mxu0 0
        %2504 = vmatprep.subr.bf16.mxu0 0
        %2505 = vmatpush1.bf16.msra.mxu0 0
        %2506 = vmatprep.subr.bf16.mxu0 0
        %2507 = vmatpush1.bf16.msra.mxu0 0
        %2508 = vmatprep.subr.bf16.mxu0 0
        %2509 = vmatpush1.bf16.msra.mxu0 0
        %2510 = vmatprep.mubr.bf16.mxu0 0
        %2511 = vmatmul.mubr.bf16.gmra.mrb[0].mxu0 %v2329
        %v2512 = vpop.f32.mrb[0].mxu0
        %v2513 = vadd.f32 0.0, %v2512
        %v2514 = vpop.f32.mrb[0].mxu0
        %v2515 = vpop.f32.mrb[0].mxu0
        %v2516 = vadd.f32 0.0, %v2515
        %v2517 = vpop.f32.mrb[0].mxu0
        %2518 = vmatprep.mubr.bf16.mxu0 0
        %2519 = vmatmul.mubr.bf16.gmra.mrb[0].mxu0 %v2337
        %v2520 = vpop.f32.mrb[0].mxu0
        %v2521 = vadd.f32 0.0, %v2520
        %v2522 = vpop.f32.mrb[0].mxu0
        %v2523 = vpop.f32.mrb[0].mxu0
        %v2524 = vadd.f32 0.0, %v2523
        %v2525 = vpop.f32.mrb[0].mxu0
        %2526 = vmatprep.mubr.bf16.mxu0 0
        %2527 = vmatmul.mubr.bf16.gmra.mrb[0].mxu0 %v2345
        %v2528 = vpop.f32.mrb[0].mxu0
        %v2529 = vadd.f32 0.0, %v2528
        %v2530 = vpop.f32.mrb[0].mxu0
        %v2531 = vpop.f32.mrb[0].mxu0
        %v2532 = vadd.f32 0.0, %v2531
        %v2533 = vpop.f32.mrb[0].mxu0
        %2534 = vmatprep.mubr.bf16.mxu0 0
        %2535 = vmatmul.mubr.bf16.gmra.mrb[0].mxu0 %v2353
        %v2536 = vpop.f32.mrb[0].mxu0
        %v2537 = vadd.f32 0.0, %v2536
        %v2538 = vpop.f32.mrb[0].mxu0
        %v2539 = vpop.f32.mrb[0].mxu0
        %v2540 = vadd.f32 0.0, %v2539
        %v2541 = vpop.f32.mrb[0].mxu0
        %2542 = vmatprep.mubr.bf16.mxu0 0
        %2543 = vmatmul.mubr.bf16.gmra.mrb[0].mxu0 %v2361
        %v2544 = vpop.f32.mrb[0].mxu0
        %v2545 = vadd.f32 0.0, %v2544
        %v2546 = vpop.f32.mrb[0].mxu0
        %v2547 = vpop.f32.mrb[0].mxu0
        %v2548 = vadd.f32 0.0, %v2547
        %v2549 = vpop.f32.mrb[0].mxu0
        %2550 = vmatprep.mubr.bf16.mxu0 0
        %2551 = vmatmul.mubr.bf16.gmra.mrb[0].mxu0 %v2369
        %v2552 = vpop.f32.mrb[0].mxu0
        %v2553 = vadd.f32 0.0, %v2552
        %v2554 = vpop.f32.mrb[0].mxu0
        %v2555 = vpop.f32.mrb[0].mxu0
        %v2556 = vadd.f32 0.0, %v2555
        %v2557 = vpop.f32.mrb[0].mxu0
        %2558 = vmatprep.mubr.bf16.mxu0 0
        %2559 = vmatmul.mubr.bf16.gmra.mrb[0].mxu0 %v2377
        %v2560 = vpop.f32.mrb[0].mxu0
        %v2561 = vadd.f32 0.0, %v2560
        %v2562 = vpop.f32.mrb[0].mxu0
        %v2563 = vpop.f32.mrb[0].mxu0
        %v2564 = vadd.f32 0.0, %v2563
        %v2565 = vpop.f32.mrb[0].mxu0
        %2566 = vmatprep.mubr.bf16.mxu0 0
        %2567 = vmatmul.mubr.bf16.gmra.mrb[0].mxu0 %v2385
        %v2568 = vpop.f32.mrb[0].mxu0
        %v2569 = vadd.f32 0.0, %v2568
        %v2570 = vpop.f32.mrb[0].mxu0
        %v2571 = vpop.f32.mrb[0].mxu0
        %v2572 = vadd.f32 0.0, %v2571
        %v2573 = vpop.f32.mrb[0].mxu0
        %2574 = vmatprep.mubr.bf16.mxu0 0
        %2575 = vmatmul.mubr.bf16.gmra.mrb[0].mxu0 %v2393
        %v2576 = vpop.f32.mrb[0].mxu0
        %v2577 = vadd.f32 0.0, %v2576
        %v2578 = vpop.f32.mrb[0].mxu0
        %v2579 = vpop.f32.mrb[0].mxu0
        %v2580 = vadd.f32 0.0, %v2579
        %v2581 = vpop.f32.mrb[0].mxu0
        %2582 = vmatprep.mubr.bf16.mxu0 0
        %2583 = vmatmul.mubr.bf16.gmra.mrb[0].mxu0 %v2401
        %v2584 = vpop.f32.mrb[0].mxu0
        %v2585 = vadd.f32 0.0, %v2584
        %v2586 = vpop.f32.mrb[0].mxu0
        %v2587 = vpop.f32.mrb[0].mxu0
        %v2588 = vadd.f32 0.0, %v2587
        %v2589 = vpop.f32.mrb[0].mxu0
        %2590 = vmatprep.mubr.bf16.mxu0 0
        %2591 = vmatmul.mubr.bf16.gmra.mrb[0].mxu0 %v2409
        %v2592 = vpop.f32.mrb[0].mxu0
        %v2593 = vadd.f32 0.0, %v2592
        %v2594 = vpop.f32.mrb[0].mxu0
        %v2595 = vpop.f32.mrb[0].mxu0
        %v2596 = vadd.f32 0.0, %v2595
        %v2597 = vpop.f32.mrb[0].mxu0
        %2598 = vmatprep.mubr.bf16.mxu0 0
        %2599 = vmatmul.mubr.bf16.gmra.mrb[0].mxu0 %v2417
        %v2600 = vpop.f32.mrb[0].mxu0
        %v2601 = vadd.f32 0.0, %v2600
        %v2602 = vpop.f32.mrb[0].mxu0
        %v2603 = vpop.f32.mrb[0].mxu0
        %v2604 = vadd.f32 0.0, %v2603
        %v2605 = vpop.f32.mrb[0].mxu0
        %2606 = vdwg.mxu0
        %v2607 = vadd.f32 %v2264, %v2513
        %v2608 = vadd.f32 %v2265, %v2516
        %v2609 = vadd.f32 %v2266, %v2521
        %v2610 = vadd.f32 %v2267, %v2524
        %v2611 = vadd.f32 %v2268, %v2529
        %v2612 = vadd.f32 %v2269, %v2532
        %v2613 = vadd.f32 %v2270, %v2537
        %v2614 = vadd.f32 %v2271, %v2540
        %v2615 = vadd.f32 %v2272, %v2545
        %v2616 = vadd.f32 %v2273, %v2548
        %v2617 = vadd.f32 %v2274, %v2553
        %v2618 = vadd.f32 %v2275, %v2556
        %v2619 = vadd.f32 %v2276, %v2561
        %v2620 = vadd.f32 %v2277, %v2564
        %v2621 = vadd.f32 %v2278, %v2569
        %v2622 = vadd.f32 %v2279, %v2572
        %v2623 = vadd.f32 %v2280, %v2577
        %v2624 = vadd.f32 %v2281, %v2580
        %v2625 = vadd.f32 %v2282, %v2585
        %v2626 = vadd.f32 %v2283, %v2588
        %v2627 = vadd.f32 %v2284, %v2593
        %v2628 = vadd.f32 %v2285, %v2596
        %v2629 = vadd.f32 %v2286, %v2601
        %v2630 = vadd.f32 %v2287, %v2604
        %s2631 = scalar_lea.vmem [#allocation7], 448
        %v2632 = vld [vmem:[%s2631] sm:$0xf]
        %v2633 = vld [vmem:[%s2631 + $0x4] sm:$0xf]
        %v2634 = vld [vmem:[%s2631 + $0x8] sm:$0xf]
        %v2635 = vld [vmem:[%s2631 + $0xc] sm:$0xf]
        %v2636 = vld [vmem:[%s2631 + $0x10] sm:$0xf]
        %v2637 = vld [vmem:[%s2631 + $0x14] sm:$0xf]
        %v2638 = vld [vmem:[%s2631 + $0x18] sm:$0xf]
        %v2639 = vld [vmem:[%s2631 + $0x1c] sm:$0xf]
        %v2640 = vld [vmem:[%s2631 + $0x20] sm:$0xf]
        %v2641 = vld [vmem:[%s2631 + $0x24] sm:$0xf]
        %v2642 = vld [vmem:[%s2631 + $0x28] sm:$0xf]
        %v2643 = vld [vmem:[%s2631 + $0x2c] sm:$0xf]
        %v2644 = vld [vmem:[%s2631 + $0x30] sm:$0xf]
        %v2645 = vld [vmem:[%s2631 + $0x34] sm:$0xf]
        %v2646 = vld [vmem:[%s2631 + $0x38] sm:$0xf]
        %v2647 = vld [vmem:[%s2631 + $0x3c] sm:$0xf]
        %v2664 = vunpack.c.l.b16 %v2632
        %v2665 = vunpack.c.l.b16 %v2633
        %v2666 = vunpack.c.l.b16 %v2634
        %v2667 = vunpack.c.l.b16 %v2635
        %v2668 = vunpack.c.l.b16 %v2636
        %v2669 = vunpack.c.l.b16 %v2637
        %v2670 = vunpack.c.l.b16 %v2638
        %v2671 = vunpack.c.l.b16 %v2639
        %v2672 = vunpack.c.l.b16 %v2640
        %v2673 = vunpack.c.l.b16 %v2641
        %v2674 = vunpack.c.l.b16 %v2642
        %v2675 = vunpack.c.l.b16 %v2643
        %v2676 = vunpack.c.l.b16 %v2644
        %v2677 = vunpack.c.l.b16 %v2645
        %v2678 = vunpack.c.l.b16 %v2646
        %v2679 = vunpack.c.l.b16 %v2647
        %v2680 = vpack.c.b16 %v2665, %v2664
        %v2681 = vpack.c.b16 %v2667, %v2666
        %v2682 = vpack.c.b16 %v2669, %v2668
        %v2683 = vpack.c.b16 %v2671, %v2670
        %v2684 = vpack.c.b16 %v2673, %v2672
        %v2685 = vpack.c.b16 %v2675, %v2674
        %v2686 = vpack.c.b16 %v2677, %v2676
        %v2687 = vpack.c.b16 %v2679, %v2678
        %2696 = vmatprep.subr.bf16.mxu0 0
        %2697 = vmatpush1.bf16.msra.mxu0 %v2680
        %2698 = vmatprep.subr.bf16.mxu0 0
        %2699 = vmatpush1.bf16.msra.mxu0 %v2681
        %2700 = vmatprep.subr.bf16.mxu0 0
        %2701 = vmatpush1.bf16.msra.mxu0 %v2682
        %2702 = vmatprep.subr.bf16.mxu0 0
        %2703 = vmatpush1.bf16.msra.mxu0 %v2683
        %2704 = vmatprep.subr.bf16.mxu0 0
        %2705 = vmatpush1.bf16.msra.mxu0 %v2684
        %2706 = vmatprep.subr.bf16.mxu0 0
        %2707 = vmatpush1.bf16.msra.mxu0 %v2685
        %2708 = vmatprep.subr.bf16.mxu0 0
        %2709 = vmatpush1.bf16.msra.mxu0 %v2686
        %2710 = vmatprep.subr.bf16.mxu0 0
        %2711 = vmatpush1.bf16.msra.mxu0 %v2687
        %2712 = vmatprep.subr.bf16.mxu0 0
        %2713 = vmatpush1.bf16.msra.mxu0 0
        %2714 = vmatprep.subr.bf16.mxu0 0
        %2715 = vmatpush1.bf16.msra.mxu0 0
        %2716 = vmatprep.subr.bf16.mxu0 0
        %2717 = vmatpush1.bf16.msra.mxu0 0
        %2718 = vmatprep.subr.bf16.mxu0 0
        %2719 = vmatpush1.bf16.msra.mxu0 0
        %2720 = vmatprep.subr.bf16.mxu0 0
        %2721 = vmatpush1.bf16.msra.mxu0 0
        %2722 = vmatprep.subr.bf16.mxu0 0
        %2723 = vmatpush1.bf16.msra.mxu0 0
        %2724 = vmatprep.subr.bf16.mxu0 0
        %2725 = vmatpush1.bf16.msra.mxu0 0
        %2726 = vmatprep.subr.bf16.mxu0 0
        %2727 = vmatpush1.bf16.msra.mxu0 0
        %2728 = vmatprep.mubr.bf16.mxu0 0
        %2729 = vmatmul.mubr.bf16.gmra.mrb[0].mxu0 %v2289
        %v2730 = vpop.f32.mrb[0].mxu0
        %v2731 = vadd.f32 0.0, %v2730
        %v2732 = vpop.f32.mrb[0].mxu0
        %v2733 = vpop.f32.mrb[0].mxu0
        %v2734 = vadd.f32 0.0, %v2733
        %v2735 = vpop.f32.mrb[0].mxu0
        %2736 = vmatprep.mubr.bf16.mxu0 0
        %2737 = vmatmul.mubr.bf16.gmra.mrb[0].mxu0 %v2290
        %v2738 = vpop.f32.mrb[0].mxu0
        %v2739 = vadd.f32 0.0, %v2738
        %v2740 = vpop.f32.mrb[0].mxu0
        %v2741 = vpop.f32.mrb[0].mxu0
        %v2742 = vadd.f32 0.0, %v2741
        %v2743 = vpop.f32.mrb[0].mxu0
        %2744 = vmatprep.mubr.bf16.mxu0 0
        %2745 = vmatmul.mubr.bf16.gmra.mrb[0].mxu0 %v2291
        %v2746 = vpop.f32.mrb[0].mxu0
        %v2747 = vadd.f32 0.0, %v2746
        %v2748 = vpop.f32.mrb[0].mxu0
        %v2749 = vpop.f32.mrb[0].mxu0
        %v2750 = vadd.f32 0.0, %v2749
        %v2751 = vpop.f32.mrb[0].mxu0
        %2752 = vmatprep.mubr.bf16.mxu0 0
        %2753 = vmatmul.mubr.bf16.gmra.mrb[0].mxu0 %v2292
        %v2754 = vpop.f32.mrb[0].mxu0
        %v2755 = vadd.f32 0.0, %v2754
        %v2756 = vpop.f32.mrb[0].mxu0
        %v2757 = vpop.f32.mrb[0].mxu0
        %v2758 = vadd.f32 0.0, %v2757
        %v2759 = vpop.f32.mrb[0].mxu0
        %2760 = vmatprep.mubr.bf16.mxu0 0
        %2761 = vmatmul.mubr.bf16.gmra.mrb[0].mxu0 %v2293
        %v2762 = vpop.f32.mrb[0].mxu0
        %v2763 = vadd.f32 0.0, %v2762
        %v2764 = vpop.f32.mrb[0].mxu0
        %v2765 = vpop.f32.mrb[0].mxu0
        %v2766 = vadd.f32 0.0, %v2765
        %v2767 = vpop.f32.mrb[0].mxu0
        %2768 = vmatprep.mubr.bf16.mxu0 0
        %2769 = vmatmul.mubr.bf16.gmra.mrb[0].mxu0 %v2294
        %v2770 = vpop.f32.mrb[0].mxu0
        %v2771 = vadd.f32 0.0, %v2770
        %v2772 = vpop.f32.mrb[0].mxu0
        %v2773 = vpop.f32.mrb[0].mxu0
        %v2774 = vadd.f32 0.0, %v2773
        %v2775 = vpop.f32.mrb[0].mxu0
        %2776 = vmatprep.mubr.bf16.mxu0 0
        %2777 = vmatmul.mubr.bf16.gmra.mrb[0].mxu0 %v2295
        %v2778 = vpop.f32.mrb[0].mxu0
        %v2779 = vadd.f32 0.0, %v2778
        %v2780 = vpop.f32.mrb[0].mxu0
        %v2781 = vpop.f32.mrb[0].mxu0
        %v2782 = vadd.f32 0.0, %v2781
        %v2783 = vpop.f32.mrb[0].mxu0
        %2784 = vmatprep.mubr.bf16.mxu0 0
        %2785 = vmatmul.mubr.bf16.gmra.mrb[0].mxu0 %v2296
        %v2786 = vpop.f32.mrb[0].mxu0
        %v2787 = vadd.f32 0.0, %v2786
        %v2788 = vpop.f32.mrb[0].mxu0
        %v2789 = vpop.f32.mrb[0].mxu0
        %v2790 = vadd.f32 0.0, %v2789
        %v2791 = vpop.f32.mrb[0].mxu0
        %2792 = vmatprep.mubr.bf16.mxu0 0
        %2793 = vmatmul.mubr.bf16.gmra.mrb[0].mxu0 %v2297
        %v2794 = vpop.f32.mrb[0].mxu0
        %v2795 = vadd.f32 0.0, %v2794
        %v2796 = vpop.f32.mrb[0].mxu0
        %v2797 = vpop.f32.mrb[0].mxu0
        %v2798 = vadd.f32 0.0, %v2797
        %v2799 = vpop.f32.mrb[0].mxu0
        %2800 = vmatprep.mubr.bf16.mxu0 0
        %2801 = vmatmul.mubr.bf16.gmra.mrb[0].mxu0 %v2298
        %v2802 = vpop.f32.mrb[0].mxu0
        %v2803 = vadd.f32 0.0, %v2802
        %v2804 = vpop.f32.mrb[0].mxu0
        %v2805 = vpop.f32.mrb[0].mxu0
        %v2806 = vadd.f32 0.0, %v2805
        %v2807 = vpop.f32.mrb[0].mxu0
        %2808 = vmatprep.mubr.bf16.mxu0 0
        %2809 = vmatmul.mubr.bf16.gmra.mrb[0].mxu0 %v2299
        %v2810 = vpop.f32.mrb[0].mxu0
        %v2811 = vadd.f32 0.0, %v2810
        %v2812 = vpop.f32.mrb[0].mxu0
        %v2813 = vpop.f32.mrb[0].mxu0
        %v2814 = vadd.f32 0.0, %v2813
        %v2815 = vpop.f32.mrb[0].mxu0
        %2816 = vmatprep.mubr.bf16.mxu0 0
        %2817 = vmatmul.mubr.bf16.gmra.mrb[0].mxu0 %v2300
        %v2818 = vpop.f32.mrb[0].mxu0
        %v2819 = vadd.f32 0.0, %v2818
        %v2820 = vpop.f32.mrb[0].mxu0
        %v2821 = vpop.f32.mrb[0].mxu0
        %v2822 = vadd.f32 0.0, %v2821
        %v2823 = vpop.f32.mrb[0].mxu0
        %2824 = vdwg.mxu0
        %v2825 = vadd.f32 %v2607, %v2731
        %v2826 = vadd.f32 %v2608, %v2734
        %v2827 = vadd.f32 %v2609, %v2739
        %v2828 = vadd.f32 %v2610, %v2742
        %v2829 = vadd.f32 %v2611, %v2747
        %v2830 = vadd.f32 %v2612, %v2750
        %v2831 = vadd.f32 %v2613, %v2755
        %v2832 = vadd.f32 %v2614, %v2758
        %v2833 = vadd.f32 %v2615, %v2763
        %v2834 = vadd.f32 %v2616, %v2766
        %v2835 = vadd.f32 %v2617, %v2771
        %v2836 = vadd.f32 %v2618, %v2774
        %v2837 = vadd.f32 %v2619, %v2779
        %v2838 = vadd.f32 %v2620, %v2782
        %v2839 = vadd.f32 %v2621, %v2787
        %v2840 = vadd.f32 %v2622, %v2790
        %v2841 = vadd.f32 %v2623, %v2795
        %v2842 = vadd.f32 %v2624, %v2798
        %v2843 = vadd.f32 %v2625, %v2803
        %v2844 = vadd.f32 %v2626, %v2806
        %v2845 = vadd.f32 %v2627, %v2811
        %v2846 = vadd.f32 %v2628, %v2814
        %v2847 = vadd.f32 %v2629, %v2819
        %v2848 = vadd.f32 %v2630, %v2822
        %v2849 = vld [vmem:[#allocation2 + $0x30] sm:$0xff]
        %v2850 = vld [vmem:[#allocation2 + $0x38] sm:$0xff]
        %v2851 = vld [vmem:[#allocation2 + $0x40] sm:$0xff]
        %v2852 = vld [vmem:[#allocation2 + $0x48] sm:$0xff]
        %v2853 = vld [vmem:[#allocation2 + $0x50] sm:$0xff]
        %v2854 = vld [vmem:[#allocation2 + $0x58] sm:$0xff]
        %v2855 = vld [vmem:[#allocation2 + $0x60] sm:$0xff]
        %v2856 = vld [vmem:[#allocation2 + $0x68] sm:$0xff]
        %v2857 = vld [vmem:[#allocation2 + $0x70] sm:$0xff]
        %v2858 = vld [vmem:[#allocation2 + $0x78] sm:$0xff]
        %v2859 = vld [vmem:[#allocation2 + $0x80] sm:$0xff]
        %v2860 = vld [vmem:[#allocation2 + $0x88] sm:$0xff]
        %v2861 = vld [vmem:[#allocation2 + $0x90] sm:$0x1]
        %s2862 = scalar_lea.vmem [#allocation7], 512
        %v2863 = vld [vmem:[%s2862] sm:$0xf]
        %v2864 = vld [vmem:[%s2862 + $0x4] sm:$0xf]
        %v2865 = vld [vmem:[%s2862 + $0x8] sm:$0xf]
        %v2866 = vld [vmem:[%s2862 + $0xc] sm:$0xf]
        %v2867 = vld [vmem:[%s2862 + $0x10] sm:$0xf]
        %v2868 = vld [vmem:[%s2862 + $0x14] sm:$0xf]
        %v2869 = vld [vmem:[%s2862 + $0x18] sm:$0xf]
        %v2870 = vld [vmem:[%s2862 + $0x1c] sm:$0xf]
        %v2871 = vld [vmem:[%s2862 + $0x20] sm:$0xf]
        %v2872 = vld [vmem:[%s2862 + $0x24] sm:$0xf]
        %v2873 = vld [vmem:[%s2862 + $0x28] sm:$0xf]
        %v2874 = vld [vmem:[%s2862 + $0x2c] sm:$0xf]
        %v2875 = vld [vmem:[%s2862 + $0x30] sm:$0xf]
        %v2876 = vld [vmem:[%s2862 + $0x34] sm:$0xf]
        %v2877 = vld [vmem:[%s2862 + $0x38] sm:$0xf]
        %v2878 = vld [vmem:[%s2862 + $0x3c] sm:$0xf]
        %v2880 = vshrl.u32 %v2849, 16
        %v2882 = vshll.u32 %v2849, 16
        %v2884 = vrot.slane %v2882, 1
        %v2885 = vor.u32 %v2880, %v2884
        %v2887 = vshll.u32 %v2850, 16
        %v2889 = vrot.slane %v2887, 1
        %v2890 = vsel %vm1070, %v2885, %v2889
        %v2891 = vshrl.u32 %v2850, 16
        %v2893 = vor.u32 %v2891, %v2889
        %v2895 = vshll.u32 %v2851, 16
        %v2897 = vrot.slane %v2895, 1
        %v2898 = vsel %vm1070, %v2893, %v2897
        %v2899 = vshrl.u32 %v2851, 16
        %v2901 = vor.u32 %v2899, %v2897
        %v2903 = vshll.u32 %v2852, 16
        %v2905 = vrot.slane %v2903, 1
        %v2906 = vsel %vm1070, %v2901, %v2905
        %v2907 = vshrl.u32 %v2852, 16
        %v2909 = vor.u32 %v2907, %v2905
        %v2911 = vshll.u32 %v2853, 16
        %v2913 = vrot.slane %v2911, 1
        %v2914 = vsel %vm1070, %v2909, %v2913
        %v2915 = vshrl.u32 %v2853, 16
        %v2917 = vor.u32 %v2915, %v2913
        %v2919 = vshll.u32 %v2854, 16
        %v2921 = vrot.slane %v2919, 1
        %v2922 = vsel %vm1070, %v2917, %v2921
        %v2923 = vshrl.u32 %v2854, 16
        %v2925 = vor.u32 %v2923, %v2921
        %v2927 = vshll.u32 %v2855, 16
        %v2929 = vrot.slane %v2927, 1
        %v2930 = vsel %vm1070, %v2925, %v2929
        %v2931 = vshrl.u32 %v2855, 16
        %v2933 = vor.u32 %v2931, %v2929
        %v2935 = vshll.u32 %v2856, 16
        %v2937 = vrot.slane %v2935, 1
        %v2938 = vsel %vm1070, %v2933, %v2937
        %v2939 = vshrl.u32 %v2856, 16
        %v2941 = vor.u32 %v2939, %v2937
        %v2943 = vshll.u32 %v2857, 16
        %v2945 = vrot.slane %v2943, 1
        %v2946 = vsel %vm1070, %v2941, %v2945
        %v2947 = vshrl.u32 %v2857, 16
        %v2949 = vor.u32 %v2947, %v2945
        %v2951 = vshll.u32 %v2858, 16
        %v2953 = vrot.slane %v2951, 1
        %v2954 = vsel %vm1070, %v2949, %v2953
        %v2955 = vshrl.u32 %v2858, 16
        %v2957 = vor.u32 %v2955, %v2953
        %v2959 = vshll.u32 %v2859, 16
        %v2961 = vrot.slane %v2959, 1
        %v2962 = vsel %vm1070, %v2957, %v2961
        %v2963 = vshrl.u32 %v2859, 16
        %v2965 = vor.u32 %v2963, %v2961
        %v2967 = vshll.u32 %v2860, 16
        %v2969 = vrot.slane %v2967, 1
        %v2970 = vsel %vm1070, %v2965, %v2969
        %v2971 = vshrl.u32 %v2860, 16
        %v2973 = vor.u32 %v2971, %v2969
        %v2975 = vshll.u32 %v2861, 16
        %v2977 = vrot.slane %v2975, 1
        %v2978 = vsel %vm1070, %v2973, %v2977
        %v3007 = vunpack.c.l.b16 %v2863
        %v3008 = vunpack.c.l.b16 %v2864
        %v3009 = vunpack.c.l.b16 %v2865
        %v3010 = vunpack.c.l.b16 %v2866
        %v3011 = vunpack.c.l.b16 %v2867
        %v3012 = vunpack.c.l.b16 %v2868
        %v3013 = vunpack.c.l.b16 %v2869
        %v3014 = vunpack.c.l.b16 %v2870
        %v3015 = vunpack.c.l.b16 %v2871
        %v3016 = vunpack.c.l.b16 %v2872
        %v3017 = vunpack.c.l.b16 %v2873
        %v3018 = vunpack.c.l.b16 %v2874
        %v3019 = vunpack.c.l.b16 %v2875
        %v3020 = vunpack.c.l.b16 %v2876
        %v3021 = vunpack.c.l.b16 %v2877
        %v3022 = vunpack.c.l.b16 %v2878
        %v3023 = vpack.c.b16 %v3008, %v3007
        %v3024 = vpack.c.b16 %v3010, %v3009
        %v3025 = vpack.c.b16 %v3012, %v3011
        %v3026 = vpack.c.b16 %v3014, %v3013
        %v3027 = vpack.c.b16 %v3016, %v3015
        %v3028 = vpack.c.b16 %v3018, %v3017
        %v3029 = vpack.c.b16 %v3020, %v3019
        %v3030 = vpack.c.b16 %v3022, %v3021
        %3039 = vmatprep.subr.bf16.mxu0 0
        %3040 = vmatpush1.bf16.msra.mxu0 %v3023
        %3041 = vmatprep.subr.bf16.mxu0 0
        %3042 = vmatpush1.bf16.msra.mxu0 %v3024
        %3043 = vmatprep.subr.bf16.mxu0 0
        %3044 = vmatpush1.bf16.msra.mxu0 %v3025
        %3045 = vmatprep.subr.bf16.mxu0 0
        %3046 = vmatpush1.bf16.msra.mxu0 %v3026
        %3047 = vmatprep.subr.bf16.mxu0 0
        %3048 = vmatpush1.bf16.msra.mxu0 %v3027
        %3049 = vmatprep.subr.bf16.mxu0 0
        %3050 = vmatpush1.bf16.msra.mxu0 %v3028
        %3051 = vmatprep.subr.bf16.mxu0 0
        %3052 = vmatpush1.bf16.msra.mxu0 %v3029
        %3053 = vmatprep.subr.bf16.mxu0 0
        %3054 = vmatpush1.bf16.msra.mxu0 %v3030
        %3055 = vmatprep.subr.bf16.mxu0 0
        %3056 = vmatpush1.bf16.msra.mxu0 0
        %3057 = vmatprep.subr.bf16.mxu0 0
        %3058 = vmatpush1.bf16.msra.mxu0 0
        %3059 = vmatprep.subr.bf16.mxu0 0
        %3060 = vmatpush1.bf16.msra.mxu0 0
        %3061 = vmatprep.subr.bf16.mxu0 0
        %3062 = vmatpush1.bf16.msra.mxu0 0
        %3063 = vmatprep.subr.bf16.mxu0 0
        %3064 = vmatpush1.bf16.msra.mxu0 0
        %3065 = vmatprep.subr.bf16.mxu0 0
        %3066 = vmatpush1.bf16.msra.mxu0 0
        %3067 = vmatprep.subr.bf16.mxu0 0
        %3068 = vmatpush1.bf16.msra.mxu0 0
        %3069 = vmatprep.subr.bf16.mxu0 0
        %3070 = vmatpush1.bf16.msra.mxu0 0
        %3071 = vmatprep.mubr.bf16.mxu0 0
        %3072 = vmatmul.mubr.bf16.gmra.mrb[0].mxu0 %v2890
        %v3073 = vpop.f32.mrb[0].mxu0
        %v3074 = vadd.f32 0.0, %v3073
        %v3075 = vpop.f32.mrb[0].mxu0
        %v3076 = vpop.f32.mrb[0].mxu0
        %v3077 = vadd.f32 0.0, %v3076
        %v3078 = vpop.f32.mrb[0].mxu0
        %3079 = vmatprep.mubr.bf16.mxu0 0
        %3080 = vmatmul.mubr.bf16.gmra.mrb[0].mxu0 %v2898
        %v3081 = vpop.f32.mrb[0].mxu0
        %v3082 = vadd.f32 0.0, %v3081
        %v3083 = vpop.f32.mrb[0].mxu0
        %v3084 = vpop.f32.mrb[0].mxu0
        %v3085 = vadd.f32 0.0, %v3084
        %v3086 = vpop.f32.mrb[0].mxu0
        %3087 = vmatprep.mubr.bf16.mxu0 0
        %3088 = vmatmul.mubr.bf16.gmra.mrb[0].mxu0 %v2906
        %v3089 = vpop.f32.mrb[0].mxu0
        %v3090 = vadd.f32 0.0, %v3089
        %v3091 = vpop.f32.mrb[0].mxu0
        %v3092 = vpop.f32.mrb[0].mxu0
        %v3093 = vadd.f32 0.0, %v3092
        %v3094 = vpop.f32.mrb[0].mxu0
        %3095 = vmatprep.mubr.bf16.mxu0 0
        %3096 = vmatmul.mubr.bf16.gmra.mrb[0].mxu0 %v2914
        %v3097 = vpop.f32.mrb[0].mxu0
        %v3098 = vadd.f32 0.0, %v3097
        %v3099 = vpop.f32.mrb[0].mxu0
        %v3100 = vpop.f32.mrb[0].mxu0
        %v3101 = vadd.f32 0.0, %v3100
        %v3102 = vpop.f32.mrb[0].mxu0
        %3103 = vmatprep.mubr.bf16.mxu0 0
        %3104 = vmatmul.mubr.bf16.gmra.mrb[0].mxu0 %v2922
        %v3105 = vpop.f32.mrb[0].mxu0
        %v3106 = vadd.f32 0.0, %v3105
        %v3107 = vpop.f32.mrb[0].mxu0
        %v3108 = vpop.f32.mrb[0].mxu0
        %v3109 = vadd.f32 0.0, %v3108
        %v3110 = vpop.f32.mrb[0].mxu0
        %3111 = vmatprep.mubr.bf16.mxu0 0
        %3112 = vmatmul.mubr.bf16.gmra.mrb[0].mxu0 %v2930
        %v3113 = vpop.f32.mrb[0].mxu0
        %v3114 = vadd.f32 0.0, %v3113
        %v3115 = vpop.f32.mrb[0].mxu0
        %v3116 = vpop.f32.mrb[0].mxu0
        %v3117 = vadd.f32 0.0, %v3116
        %v3118 = vpop.f32.mrb[0].mxu0
        %3119 = vmatprep.mubr.bf16.mxu0 0
        %3120 = vmatmul.mubr.bf16.gmra.mrb[0].mxu0 %v2938
        %v3121 = vpop.f32.mrb[0].mxu0
        %v3122 = vadd.f32 0.0, %v3121
        %v3123 = vpop.f32.mrb[0].mxu0
        %v3124 = vpop.f32.mrb[0].mxu0
        %v3125 = vadd.f32 0.0, %v3124
        %v3126 = vpop.f32.mrb[0].mxu0
        %3127 = vmatprep.mubr.bf16.mxu0 0
        %3128 = vmatmul.mubr.bf16.gmra.mrb[0].mxu0 %v2946
        %v3129 = vpop.f32.mrb[0].mxu0
        %v3130 = vadd.f32 0.0, %v3129
        %v3131 = vpop.f32.mrb[0].mxu0
        %v3132 = vpop.f32.mrb[0].mxu0
        %v3133 = vadd.f32 0.0, %v3132
        %v3134 = vpop.f32.mrb[0].mxu0
        %3135 = vmatprep.mubr.bf16.mxu0 0
        %3136 = vmatmul.mubr.bf16.gmra.mrb[0].mxu0 %v2954
        %v3137 = vpop.f32.mrb[0].mxu0
        %v3138 = vadd.f32 0.0, %v3137
        %v3139 = vpop.f32.mrb[0].mxu0
        %v3140 = vpop.f32.mrb[0].mxu0
        %v3141 = vadd.f32 0.0, %v3140
        %v3142 = vpop.f32.mrb[0].mxu0
        %3143 = vmatprep.mubr.bf16.mxu0 0
        %3144 = vmatmul.mubr.bf16.gmra.mrb[0].mxu0 %v2962
        %v3145 = vpop.f32.mrb[0].mxu0
        %v3146 = vadd.f32 0.0, %v3145
        %v3147 = vpop.f32.mrb[0].mxu0
        %v3148 = vpop.f32.mrb[0].mxu0
        %v3149 = vadd.f32 0.0, %v3148
        %v3150 = vpop.f32.mrb[0].mxu0
        %3151 = vmatprep.mubr.bf16.mxu0 0
        %3152 = vmatmul.mubr.bf16.gmra.mrb[0].mxu0 %v2970
        %v3153 = vpop.f32.mrb[0].mxu0
        %v3154 = vadd.f32 0.0, %v3153
        %v3155 = vpop.f32.mrb[0].mxu0
        %v3156 = vpop.f32.mrb[0].mxu0
        %v3157 = vadd.f32 0.0, %v3156
        %v3158 = vpop.f32.mrb[0].mxu0
        %3159 = vmatprep.mubr.bf16.mxu0 0
        %3160 = vmatmul.mubr.bf16.gmra.mrb[0].mxu0 %v2978
        %v3161 = vpop.f32.mrb[0].mxu0
        %v3162 = vadd.f32 0.0, %v3161
        %v3163 = vpop.f32.mrb[0].mxu0
        %v3164 = vpop.f32.mrb[0].mxu0
        %v3165 = vadd.f32 0.0, %v3164
        %v3166 = vpop.f32.mrb[0].mxu0
        %3167 = vdwg.mxu0
        %v3168 = vadd.f32 %v2825, %v3074
        %v3169 = vadd.f32 %v2826, %v3077
        %v3170 = vadd.f32 %v2827, %v3082
        %v3171 = vadd.f32 %v2828, %v3085
        %v3172 = vadd.f32 %v2829, %v3090
        %v3173 = vadd.f32 %v2830, %v3093
        %v3174 = vadd.f32 %v2831, %v3098
        %v3175 = vadd.f32 %v2832, %v3101
        %v3176 = vadd.f32 %v2833, %v3106
        %v3177 = vadd.f32 %v2834, %v3109
        %v3178 = vadd.f32 %v2835, %v3114
        %v3179 = vadd.f32 %v2836, %v3117
        %v3180 = vadd.f32 %v2837, %v3122
        %v3181 = vadd.f32 %v2838, %v3125
        %v3182 = vadd.f32 %v2839, %v3130
        %v3183 = vadd.f32 %v2840, %v3133
        %v3184 = vadd.f32 %v2841, %v3138
        %v3185 = vadd.f32 %v2842, %v3141
        %v3186 = vadd.f32 %v2843, %v3146
        %v3187 = vadd.f32 %v2844, %v3149
        %v3188 = vadd.f32 %v2845, %v3154
        %v3189 = vadd.f32 %v2846, %v3157
        %v3190 = vadd.f32 %v2847, %v3162
        %v3191 = vadd.f32 %v2848, %v3165
        %v3192 = vlaneseq
        %v3193 = vshrl.u32 %v3192, 7
        %v3194 = vadd.s32 %v3193, 8
        %v3195 = vadd.s32 %v3193, 16
        %v3196 = vadd.s32 %v3193, 24
        %v3197 = vadd.s32 %v3193, 32
        %v3198 = vadd.s32 %v3193, 40
        %v3199 = vadd.s32 %v3193, 48
        %v3200 = vadd.s32 %v3193, 56
        %v3201 = vadd.s32 %v3193, 64
        %v3202 = vadd.s32 %v3193, 72
        %v3203 = vadd.s32 %v3193, 80
        %v3204 = vadd.s32 %v3193, 88
        %v3205 = vadd.s32 %v3193, 96
        %v3206 = vadd.s32 %v3193, 104
        %v3207 = vadd.s32 %v3193, 112
        %v3208 = vadd.s32 %v3193, 120
        %v3209 = vadd.s32 %v3193, 128
        %v3210 = vadd.s32 %v3193, 136
        %v3211 = vadd.s32 %v3193, 144
        %v3212 = vadd.s32 %v3193, 152
        %v3213 = vadd.s32 %v3193, 160
        %v3214 = vadd.s32 %v3193, 168
        %v3215 = vadd.s32 %v3193, 176
        %v3216 = vadd.s32 %v3193, 184
        %vm3217 = vcmp.lt.s32.totalorder %v3193, 0
        %v3218 = vsub.s32 0, %v3193
        %v3219 = vsel %vm3217, %v3218, %v3193
        %v3220 = vshrl.u32 %v3219, 5
        %v3221 = vand.u32 %v3219, 31
        %v3222 = vsub.s32 0, %v3221
        %v3223 = vsel %vm3217, %v3222, %v3221
        %vm3224 = vcmp.lt.s32.totalorder %v3194, 0
        %v3225 = vsub.s32 0, %v3194
        %v3226 = vsel %vm3224, %v3225, %v3194
        %v3227 = vshrl.u32 %v3226, 5
        %v3228 = vand.u32 %v3226, 31
        %v3229 = vsub.s32 0, %v3228
        %v3230 = vsel %vm3224, %v3229, %v3228
        %vm3231 = vcmp.lt.s32.totalorder %v3195, 0
        %v3232 = vsub.s32 0, %v3195
        %v3233 = vsel %vm3231, %v3232, %v3195
        %v3234 = vshrl.u32 %v3233, 5
        %v3235 = vand.u32 %v3233, 31
        %v3236 = vsub.s32 0, %v3235
        %v3237 = vsel %vm3231, %v3236, %v3235
        %vm3238 = vcmp.lt.s32.totalorder %v3196, 0
        %v3239 = vsub.s32 0, %v3196
        %v3240 = vsel %vm3238, %v3239, %v3196
        %v3241 = vshrl.u32 %v3240, 5
        %v3242 = vand.u32 %v3240, 31
        %v3243 = vsub.s32 0, %v3242
        %v3244 = vsel %vm3238, %v3243, %v3242
        %vm3245 = vcmp.lt.s32.totalorder %v3197, 0
        %v3246 = vsub.s32 0, %v3197
        %v3247 = vsel %vm3245, %v3246, %v3197
        %v3248 = vshrl.u32 %v3247, 5
        %v3249 = vand.u32 %v3247, 31
        %v3250 = vsub.s32 0, %v3249
        %v3251 = vsel %vm3245, %v3250, %v3249
        %vm3252 = vcmp.lt.s32.totalorder %v3198, 0
        %v3253 = vsub.s32 0, %v3198
        %v3254 = vsel %vm3252, %v3253, %v3198
        %v3255 = vshrl.u32 %v3254, 5
        %v3256 = vand.u32 %v3254, 31
        %v3257 = vsub.s32 0, %v3256
        %v3258 = vsel %vm3252, %v3257, %v3256
        %vm3259 = vcmp.lt.s32.totalorder %v3199, 0
        %v3260 = vsub.s32 0, %v3199
        %v3261 = vsel %vm3259, %v3260, %v3199
        %v3262 = vshrl.u32 %v3261, 5
        %v3263 = vand.u32 %v3261, 31
        %v3264 = vsub.s32 0, %v3263
        %v3265 = vsel %vm3259, %v3264, %v3263
        %vm3266 = vcmp.lt.s32.totalorder %v3200, 0
        %v3267 = vsub.s32 0, %v3200
        %v3268 = vsel %vm3266, %v3267, %v3200
        %v3269 = vshrl.u32 %v3268, 5
        %v3270 = vand.u32 %v3268, 31
        %v3271 = vsub.s32 0, %v3270
        %v3272 = vsel %vm3266, %v3271, %v3270
        %vm3273 = vcmp.lt.s32.totalorder %v3201, 0
        %v3274 = vsub.s32 0, %v3201
        %v3275 = vsel %vm3273, %v3274, %v3201
        %v3276 = vshrl.u32 %v3275, 5
        %v3277 = vand.u32 %v3275, 31
        %v3278 = vsub.s32 0, %v3277
        %v3279 = vsel %vm3273, %v3278, %v3277
        %vm3280 = vcmp.lt.s32.totalorder %v3202, 0
        %v3281 = vsub.s32 0, %v3202
        %v3282 = vsel %vm3280, %v3281, %v3202
        %v3283 = vshrl.u32 %v3282, 5
        %v3284 = vand.u32 %v3282, 31
        %v3285 = vsub.s32 0, %v3284
        %v3286 = vsel %vm3280, %v3285, %v3284
        %vm3287 = vcmp.lt.s32.totalorder %v3203, 0
        %v3288 = vsub.s32 0, %v3203
        %v3289 = vsel %vm3287, %v3288, %v3203
        %v3290 = vshrl.u32 %v3289, 5
        %v3291 = vand.u32 %v3289, 31
        %v3292 = vsub.s32 0, %v3291
        %v3293 = vsel %vm3287, %v3292, %v3291
        %vm3294 = vcmp.lt.s32.totalorder %v3204, 0
        %v3295 = vsub.s32 0, %v3204
        %v3296 = vsel %vm3294, %v3295, %v3204
        %v3297 = vshrl.u32 %v3296, 5
        %v3298 = vand.u32 %v3296, 31
        %v3299 = vsub.s32 0, %v3298
        %v3300 = vsel %vm3294, %v3299, %v3298
        %vm3301 = vcmp.lt.s32.totalorder %v3205, 0
        %v3302 = vsub.s32 0, %v3205
        %v3303 = vsel %vm3301, %v3302, %v3205
        %v3304 = vshrl.u32 %v3303, 5
        %v3305 = vand.u32 %v3303, 31
        %v3306 = vsub.s32 0, %v3305
        %v3307 = vsel %vm3301, %v3306, %v3305
        %vm3308 = vcmp.lt.s32.totalorder %v3206, 0
        %v3309 = vsub.s32 0, %v3206
        %v3310 = vsel %vm3308, %v3309, %v3206
        %v3311 = vshrl.u32 %v3310, 5
        %v3312 = vand.u32 %v3310, 31
        %v3313 = vsub.s32 0, %v3312
        %v3314 = vsel %vm3308, %v3313, %v3312
        %vm3315 = vcmp.lt.s32.totalorder %v3207, 0
        %v3316 = vsub.s32 0, %v3207
        %v3317 = vsel %vm3315, %v3316, %v3207
        %v3318 = vshrl.u32 %v3317, 5
        %v3319 = vand.u32 %v3317, 31
        %v3320 = vsub.s32 0, %v3319
        %v3321 = vsel %vm3315, %v3320, %v3319
        %vm3322 = vcmp.lt.s32.totalorder %v3208, 0
        %v3323 = vsub.s32 0, %v3208
        %v3324 = vsel %vm3322, %v3323, %v3208
        %v3325 = vshrl.u32 %v3324, 5
        %v3326 = vand.u32 %v3324, 31
        %v3327 = vsub.s32 0, %v3326
        %v3328 = vsel %vm3322, %v3327, %v3326
        %vm3329 = vcmp.lt.s32.totalorder %v3209, 0
        %v3330 = vsub.s32 0, %v3209
        %v3331 = vsel %vm3329, %v3330, %v3209
        %v3332 = vshrl.u32 %v3331, 5
        %v3333 = vand.u32 %v3331, 31
        %v3334 = vsub.s32 0, %v3333
        %v3335 = vsel %vm3329, %v3334, %v3333
        %vm3336 = vcmp.lt.s32.totalorder %v3210, 0
        %v3337 = vsub.s32 0, %v3210
        %v3338 = vsel %vm3336, %v3337, %v3210
        %v3339 = vshrl.u32 %v3338, 5
        %v3340 = vand.u32 %v3338, 31
        %v3341 = vsub.s32 0, %v3340
        %v3342 = vsel %vm3336, %v3341, %v3340
        %vm3343 = vcmp.lt.s32.totalorder %v3211, 0
        %v3344 = vsub.s32 0, %v3211
        %v3345 = vsel %vm3343, %v3344, %v3211
        %v3346 = vshrl.u32 %v3345, 5
        %v3347 = vand.u32 %v3345, 31
        %v3348 = vsub.s32 0, %v3347
        %v3349 = vsel %vm3343, %v3348, %v3347
        %vm3350 = vcmp.lt.s32.totalorder %v3212, 0
        %v3351 = vsub.s32 0, %v3212
        %v3352 = vsel %vm3350, %v3351, %v3212
        %v3353 = vshrl.u32 %v3352, 5
        %v3354 = vand.u32 %v3352, 31
        %v3355 = vsub.s32 0, %v3354
        %v3356 = vsel %vm3350, %v3355, %v3354
        %vm3357 = vcmp.lt.s32.totalorder %v3213, 0
        %v3358 = vsub.s32 0, %v3213
        %v3359 = vsel %vm3357, %v3358, %v3213
        %v3360 = vshrl.u32 %v3359, 5
        %v3361 = vand.u32 %v3359, 31
        %v3362 = vsub.s32 0, %v3361
        %v3363 = vsel %vm3357, %v3362, %v3361
        %vm3364 = vcmp.lt.s32.totalorder %v3214, 0
        %v3365 = vsub.s32 0, %v3214
        %v3366 = vsel %vm3364, %v3365, %v3214
        %v3367 = vshrl.u32 %v3366, 5
        %v3368 = vand.u32 %v3366, 31
        %v3369 = vsub.s32 0, %v3368
        %v3370 = vsel %vm3364, %v3369, %v3368
        %vm3371 = vcmp.lt.s32.totalorder %v3215, 0
        %v3372 = vsub.s32 0, %v3215
        %v3373 = vsel %vm3371, %v3372, %v3215
        %v3374 = vshrl.u32 %v3373, 5
        %v3375 = vand.u32 %v3373, 31
        %v3376 = vsub.s32 0, %v3375
        %v3377 = vsel %vm3371, %v3376, %v3375
        %vm3378 = vcmp.lt.s32.totalorder %v3216, 0
        %v3379 = vsub.s32 0, %v3216
        %v3380 = vsel %vm3378, %v3379, %v3216
        %v3381 = vshrl.u32 %v3380, 5
        %v3382 = vand.u32 %v3380, 31
        %v3383 = vsub.s32 0, %v3382
        %v3384 = vsel %vm3378, %v3383, %v3382
        %vm3385 = vcmp.ne.s32.totalorder %v3223, 0
        %vm3386 = vcmp.ne.s32.totalorder %v3230, 0
        %vm3387 = vcmp.ne.s32.totalorder %v3237, 0
        %vm3388 = vcmp.ne.s32.totalorder %v3244, 0
        %vm3389 = vcmp.ne.s32.totalorder %v3251, 0
        %vm3390 = vcmp.ne.s32.totalorder %v3258, 0
        %vm3391 = vcmp.ne.s32.totalorder %v3265, 0
        %vm3392 = vcmp.ne.s32.totalorder %v3272, 0
        %vm3393 = vcmp.ne.s32.totalorder %v3279, 0
        %vm3394 = vcmp.ne.s32.totalorder %v3286, 0
        %vm3395 = vcmp.ne.s32.totalorder %v3293, 0
        %vm3396 = vcmp.ne.s32.totalorder %v3300, 0
        %vm3397 = vcmp.ne.s32.totalorder %v3307, 0
        %vm3398 = vcmp.ne.s32.totalorder %v3314, 0
        %vm3399 = vcmp.ne.s32.totalorder %v3321, 0
        %vm3400 = vcmp.ne.s32.totalorder %v3328, 0
        %vm3401 = vcmp.ne.s32.totalorder %v3335, 0
        %vm3402 = vcmp.ne.s32.totalorder %v3342, 0
        %vm3403 = vcmp.ne.s32.totalorder %v3349, 0
        %vm3404 = vcmp.ne.s32.totalorder %v3356, 0
        %vm3405 = vcmp.ne.s32.totalorder %v3363, 0
        %vm3406 = vcmp.ne.s32.totalorder %v3370, 0
        %vm3407 = vcmp.ne.s32.totalorder %v3377, 0
        %vm3408 = vcmp.ne.s32.totalorder %v3384, 0
        %vm3409 = vcmp.lt.s32.totalorder %v3223, 0
        %vm3410 = vcmp.lt.s32.totalorder %v3230, 0
        %vm3411 = vcmp.lt.s32.totalorder %v3237, 0
        %vm3412 = vcmp.lt.s32.totalorder %v3244, 0
        %vm3413 = vcmp.lt.s32.totalorder %v3251, 0
        %vm3414 = vcmp.lt.s32.totalorder %v3258, 0
        %vm3415 = vcmp.lt.s32.totalorder %v3265, 0
        %vm3416 = vcmp.lt.s32.totalorder %v3272, 0
        %vm3417 = vcmp.lt.s32.totalorder %v3279, 0
        %vm3418 = vcmp.lt.s32.totalorder %v3286, 0
        %vm3419 = vcmp.lt.s32.totalorder %v3293, 0
        %vm3420 = vcmp.lt.s32.totalorder %v3300, 0
        %vm3421 = vcmp.lt.s32.totalorder %v3307, 0
        %vm3422 = vcmp.lt.s32.totalorder %v3314, 0
        %vm3423 = vcmp.lt.s32.totalorder %v3321, 0
        %vm3424 = vcmp.lt.s32.totalorder %v3328, 0
        %vm3425 = vcmp.lt.s32.totalorder %v3335, 0
        %vm3426 = vcmp.lt.s32.totalorder %v3342, 0
        %vm3427 = vcmp.lt.s32.totalorder %v3349, 0
        %vm3428 = vcmp.lt.s32.totalorder %v3356, 0
        %vm3429 = vcmp.lt.s32.totalorder %v3363, 0
        %vm3430 = vcmp.lt.s32.totalorder %v3370, 0
        %vm3431 = vcmp.lt.s32.totalorder %v3377, 0
        %vm3432 = vcmp.lt.s32.totalorder %v3384, 0
        %vm3433 = vmand %vm3409, %vm3385
        %vm3434 = vmand %vm3410, %vm3386
        %vm3435 = vmand %vm3411, %vm3387
        %vm3436 = vmand %vm3412, %vm3388
        %vm3437 = vmand %vm3413, %vm3389
        %vm3438 = vmand %vm3414, %vm3390
        %vm3439 = vmand %vm3415, %vm3391
        %vm3440 = vmand %vm3416, %vm3392
        %vm3441 = vmand %vm3417, %vm3393
        %vm3442 = vmand %vm3418, %vm3394
        %vm3443 = vmand %vm3419, %vm3395
        %vm3444 = vmand %vm3420, %vm3396
        %vm3445 = vmand %vm3421, %vm3397
        %vm3446 = vmand %vm3422, %vm3398
        %vm3447 = vmand %vm3423, %vm3399
        %vm3448 = vmand %vm3424, %vm3400
        %vm3449 = vmand %vm3425, %vm3401
        %vm3450 = vmand %vm3426, %vm3402
        %vm3451 = vmand %vm3427, %vm3403
        %vm3452 = vmand %vm3428, %vm3404
        %vm3453 = vmand %vm3429, %vm3405
        %vm3454 = vmand %vm3430, %vm3406
        %vm3455 = vmand %vm3431, %vm3407
        %vm3456 = vmand %vm3432, %vm3408
        %v3457 = vadd.s32 %v3223, 32
        %v3458 = vadd.s32 %v3230, 32
        %v3459 = vadd.s32 %v3237, 32
        %v3460 = vadd.s32 %v3244, 32
        %v3461 = vadd.s32 %v3251, 32
        %v3462 = vadd.s32 %v3258, 32
        %v3463 = vadd.s32 %v3265, 32
        %v3464 = vadd.s32 %v3272, 32
        %v3465 = vadd.s32 %v3279, 32
        %v3466 = vadd.s32 %v3286, 32
        %v3467 = vadd.s32 %v3293, 32
        %v3468 = vadd.s32 %v3300, 32
        %v3469 = vadd.s32 %v3307, 32
        %v3470 = vadd.s32 %v3314, 32
        %v3471 = vadd.s32 %v3321, 32
        %v3472 = vadd.s32 %v3328, 32
        %v3473 = vadd.s32 %v3335, 32
        %v3474 = vadd.s32 %v3342, 32
        %v3475 = vadd.s32 %v3349, 32
        %v3476 = vadd.s32 %v3356, 32
        %v3477 = vadd.s32 %v3363, 32
        %v3478 = vadd.s32 %v3370, 32
        %v3479 = vadd.s32 %v3377, 32
        %v3480 = vadd.s32 %v3384, 32
        %v3481 = vsel %vm3433, %v3457, %v3223
        %v3482 = vsel %vm3434, %v3458, %v3230
        %v3483 = vsel %vm3435, %v3459, %v3237
        %v3484 = vsel %vm3436, %v3460, %v3244
        %v3485 = vsel %vm3437, %v3461, %v3251
        %v3486 = vsel %vm3438, %v3462, %v3258
        %v3487 = vsel %vm3439, %v3463, %v3265
        %v3488 = vsel %vm3440, %v3464, %v3272
        %v3489 = vsel %vm3441, %v3465, %v3279
        %v3490 = vsel %vm3442, %v3466, %v3286
        %v3491 = vsel %vm3443, %v3467, %v3293
        %v3492 = vsel %vm3444, %v3468, %v3300
        %v3493 = vsel %vm3445, %v3469, %v3307
        %v3494 = vsel %vm3446, %v3470, %v3314
        %v3495 = vsel %vm3447, %v3471, %v3321
        %v3496 = vsel %vm3448, %v3472, %v3328
        %v3497 = vsel %vm3449, %v3473, %v3335
        %v3498 = vsel %vm3450, %v3474, %v3342
        %v3499 = vsel %vm3451, %v3475, %v3349
        %v3500 = vsel %vm3452, %v3476, %v3356
        %v3501 = vsel %vm3453, %v3477, %v3363
        %v3502 = vsel %vm3454, %v3478, %v3370
        %v3503 = vsel %vm3455, %v3479, %v3377
        %v3504 = vsel %vm3456, %v3480, %v3384
        %vm3505 = vcmp.ge.s32.totalorder %v3481, 1
        %vm3506 = vcmp.ge.s32.totalorder %v3482, 1
        %vm3507 = vcmp.ge.s32.totalorder %v3483, 1
        %vm3508 = vcmp.ge.s32.totalorder %v3484, 1
        %vm3509 = vcmp.ge.s32.totalorder %v3485, 1
        %vm3510 = vcmp.ge.s32.totalorder %v3486, 1
        %vm3511 = vcmp.ge.s32.totalorder %v3487, 1
        %vm3512 = vcmp.ge.s32.totalorder %v3488, 1
        %vm3513 = vcmp.ge.s32.totalorder %v3489, 1
        %vm3514 = vcmp.ge.s32.totalorder %v3490, 1
        %vm3515 = vcmp.ge.s32.totalorder %v3491, 1
        %vm3516 = vcmp.ge.s32.totalorder %v3492, 1
        %vm3517 = vcmp.ge.s32.totalorder %v3493, 1
        %vm3518 = vcmp.ge.s32.totalorder %v3494, 1
        %vm3519 = vcmp.ge.s32.totalorder %v3495, 1
        %vm3520 = vcmp.ge.s32.totalorder %v3496, 1
        %vm3521 = vcmp.ge.s32.totalorder %v3497, 1
        %vm3522 = vcmp.ge.s32.totalorder %v3498, 1
        %vm3523 = vcmp.ge.s32.totalorder %v3499, 1
        %vm3524 = vcmp.ge.s32.totalorder %v3500, 1
        %vm3525 = vcmp.ge.s32.totalorder %v3501, 1
        %vm3526 = vcmp.ge.s32.totalorder %v3502, 1
        %vm3527 = vcmp.ge.s32.totalorder %v3503, 1
        %vm3528 = vcmp.ge.s32.totalorder %v3504, 1
        %vm3529 = vcmp.le.s32.totalorder %v3481, 16
        %vm3530 = vcmp.le.s32.totalorder %v3482, 16
        %vm3531 = vcmp.le.s32.totalorder %v3483, 16
        %vm3532 = vcmp.le.s32.totalorder %v3484, 16
        %vm3533 = vcmp.le.s32.totalorder %v3485, 16
        %vm3534 = vcmp.le.s32.totalorder %v3486, 16
        %vm3535 = vcmp.le.s32.totalorder %v3487, 16
        %vm3536 = vcmp.le.s32.totalorder %v3488, 16
        %vm3537 = vcmp.le.s32.totalorder %v3489, 16
        %vm3538 = vcmp.le.s32.totalorder %v3490, 16
        %vm3539 = vcmp.le.s32.totalorder %v3491, 16
        %vm3540 = vcmp.le.s32.totalorder %v3492, 16
        %vm3541 = vcmp.le.s32.totalorder %v3493, 16
        %vm3542 = vcmp.le.s32.totalorder %v3494, 16
        %vm3543 = vcmp.le.s32.totalorder %v3495, 16
        %vm3544 = vcmp.le.s32.totalorder %v3496, 16
        %vm3545 = vcmp.le.s32.totalorder %v3497, 16
        %vm3546 = vcmp.le.s32.totalorder %v3498, 16
        %vm3547 = vcmp.le.s32.totalorder %v3499, 16
        %vm3548 = vcmp.le.s32.totalorder %v3500, 16
        %vm3549 = vcmp.le.s32.totalorder %v3501, 16
        %vm3550 = vcmp.le.s32.totalorder %v3502, 16
        %vm3551 = vcmp.le.s32.totalorder %v3503, 16
        %vm3552 = vcmp.le.s32.totalorder %v3504, 16
        %vm3553 = vmand %vm3505, %vm3529
        %vm3554 = vmand %vm3506, %vm3530
        %vm3555 = vmand %vm3507, %vm3531
        %vm3556 = vmand %vm3508, %vm3532
        %vm3557 = vmand %vm3509, %vm3533
        %vm3558 = vmand %vm3510, %vm3534
        %vm3559 = vmand %vm3511, %vm3535
        %vm3560 = vmand %vm3512, %vm3536
        %vm3561 = vmand %vm3513, %vm3537
        %vm3562 = vmand %vm3514, %vm3538
        %vm3563 = vmand %vm3515, %vm3539
        %vm3564 = vmand %vm3516, %vm3540
        %vm3565 = vmand %vm3517, %vm3541
        %vm3566 = vmand %vm3518, %vm3542
        %vm3567 = vmand %vm3519, %vm3543
        %vm3568 = vmand %vm3520, %vm3544
        %vm3569 = vmand %vm3521, %vm3545
        %vm3570 = vmand %vm3522, %vm3546
        %vm3571 = vmand %vm3523, %vm3547
        %vm3572 = vmand %vm3524, %vm3548
        %vm3573 = vmand %vm3525, %vm3549
        %vm3574 = vmand %vm3526, %vm3550
        %vm3575 = vmand %vm3527, %vm3551
        %vm3576 = vmand %vm3528, %vm3552
        %v3577 = vld [vmem:[%s2] sm:$0x1]
        %v3579 = vlaneseq
        %v3580 = vshrl.u32 %v3579, 7
        %v3581 = vsub.s32 0, %v3580
        %v3582 = vrot.slane %v3577, %v3581
        %v3584 = vmul.f32 %v3168, %v3582
        %v3585 = vmul.f32 %v3169, %v3582
        %v3586 = vmul.f32 %v3170, %v3582
        %v3587 = vmul.f32 %v3171, %v3582
        %v3588 = vmul.f32 %v3172, %v3582
        %v3589 = vmul.f32 %v3173, %v3582
        %v3590 = vmul.f32 %v3174, %v3582
        %v3591 = vmul.f32 %v3175, %v3582
        %v3592 = vmul.f32 %v3176, %v3582
        %v3593 = vmul.f32 %v3177, %v3582
        %v3594 = vmul.f32 %v3178, %v3582
        %v3595 = vmul.f32 %v3179, %v3582
        %v3596 = vmul.f32 %v3180, %v3582
        %v3597 = vmul.f32 %v3181, %v3582
        %v3598 = vmul.f32 %v3182, %v3582
        %v3599 = vmul.f32 %v3183, %v3582
        %v3600 = vmul.f32 %v3184, %v3582
        %v3601 = vmul.f32 %v3185, %v3582
        %v3602 = vmul.f32 %v3186, %v3582
        %v3603 = vmul.f32 %v3187, %v3582
        %v3604 = vmul.f32 %v3188, %v3582
        %v3605 = vmul.f32 %v3189, %v3582
        %v3606 = vmul.f32 %v3190, %v3582
        %v3607 = vmul.f32 %v3191, %v3582
        %v3608 = vld [vmem:[%s3] sm:$0x1]
        %v3610 = vlaneseq
        %v3611 = vshrl.u32 %v3610, 7
        %v3612 = vsub.s32 0, %v3611
        %v3613 = vrot.slane %v3608, %v3612
        %v3615 = vadd.f32 %v3584, %v3613
        %v3616 = vadd.f32 %v3585, %v3613
        %v3617 = vadd.f32 %v3586, %v3613
        %v3618 = vadd.f32 %v3587, %v3613
        %v3619 = vadd.f32 %v3588, %v3613
        %v3620 = vadd.f32 %v3589, %v3613
        %v3621 = vadd.f32 %v3590, %v3613
        %v3622 = vadd.f32 %v3591, %v3613
        %v3623 = vadd.f32 %v3592, %v3613
        %v3624 = vadd.f32 %v3593, %v3613
        %v3625 = vadd.f32 %v3594, %v3613
        %v3626 = vadd.f32 %v3595, %v3613
        %v3627 = vadd.f32 %v3596, %v3613
        %v3628 = vadd.f32 %v3597, %v3613
        %v3629 = vadd.f32 %v3598, %v3613
        %v3630 = vadd.f32 %v3599, %v3613
        %v3631 = vadd.f32 %v3600, %v3613
        %v3632 = vadd.f32 %v3601, %v3613
        %v3633 = vadd.f32 %v3602, %v3613
        %v3634 = vadd.f32 %v3603, %v3613
        %v3635 = vadd.f32 %v3604, %v3613
        %v3636 = vadd.f32 %v3605, %v3613
        %v3637 = vadd.f32 %v3606, %v3613
        %v3638 = vadd.f32 %v3607, %v3613
        %v3639 = vmax.f32 %v3615, 0.0
        %v3640 = vmax.f32 %v3616, 0.0
        %v3641 = vmax.f32 %v3617, 0.0
        %v3642 = vmax.f32 %v3618, 0.0
        %v3643 = vmax.f32 %v3619, 0.0
        %v3644 = vmax.f32 %v3620, 0.0
        %v3645 = vmax.f32 %v3621, 0.0
        %v3646 = vmax.f32 %v3622, 0.0
        %v3647 = vmax.f32 %v3623, 0.0
        %v3648 = vmax.f32 %v3624, 0.0
        %v3649 = vmax.f32 %v3625, 0.0
        %v3650 = vmax.f32 %v3626, 0.0
        %v3651 = vmax.f32 %v3627, 0.0
        %v3652 = vmax.f32 %v3628, 0.0
        %v3653 = vmax.f32 %v3629, 0.0
        %v3654 = vmax.f32 %v3630, 0.0
        %v3655 = vmax.f32 %v3631, 0.0
        %v3656 = vmax.f32 %v3632, 0.0
        %v3657 = vmax.f32 %v3633, 0.0
        %v3658 = vmax.f32 %v3634, 0.0
        %v3659 = vmax.f32 %v3635, 0.0
        %v3660 = vmax.f32 %v3636, 0.0
        %v3661 = vmax.f32 %v3637, 0.0
        %v3662 = vmax.f32 %v3638, 0.0
        %v3663 = vsel %vm3553, 1, 0
        %v3664 = vsel %vm3554, 1, 0
        %v3665 = vsel %vm3555, 1, 0
        %v3666 = vsel %vm3556, 1, 0
        %v3667 = vsel %vm3557, 1, 0
        %v3668 = vsel %vm3558, 1, 0
        %v3669 = vsel %vm3559, 1, 0
        %v3670 = vsel %vm3560, 1, 0
        %v3671 = vsel %vm3561, 1, 0
        %v3672 = vsel %vm3562, 1, 0
        %v3673 = vsel %vm3563, 1, 0
        %v3674 = vsel %vm3564, 1, 0
        %v3675 = vsel %vm3565, 1, 0
        %v3676 = vsel %vm3566, 1, 0
        %v3677 = vsel %vm3567, 1, 0
        %v3678 = vsel %vm3568, 1, 0
        %v3679 = vsel %vm3569, 1, 0
        %v3680 = vsel %vm3570, 1, 0
        %v3681 = vsel %vm3571, 1, 0
        %v3682 = vsel %vm3572, 1, 0
        %v3683 = vsel %vm3573, 1, 0
        %v3684 = vsel %vm3574, 1, 0
        %v3685 = vsel %vm3575, 1, 0
        %v3686 = vsel %vm3576, 1, 0
        %vm3687 = vcmp.eq.s32.totalorder %v3663, 1
        %vm3688 = vcmp.eq.s32.totalorder %v3664, 1
        %vm3689 = vcmp.eq.s32.totalorder %v3665, 1
        %vm3690 = vcmp.eq.s32.totalorder %v3666, 1
        %vm3691 = vcmp.eq.s32.totalorder %v3667, 1
        %vm3692 = vcmp.eq.s32.totalorder %v3668, 1
        %vm3693 = vcmp.eq.s32.totalorder %v3669, 1
        %vm3694 = vcmp.eq.s32.totalorder %v3670, 1
        %vm3695 = vcmp.eq.s32.totalorder %v3671, 1
        %vm3696 = vcmp.eq.s32.totalorder %v3672, 1
        %vm3697 = vcmp.eq.s32.totalorder %v3673, 1
        %vm3698 = vcmp.eq.s32.totalorder %v3674, 1
        %vm3699 = vcmp.eq.s32.totalorder %v3675, 1
        %vm3700 = vcmp.eq.s32.totalorder %v3676, 1
        %vm3701 = vcmp.eq.s32.totalorder %v3677, 1
        %vm3702 = vcmp.eq.s32.totalorder %v3678, 1
        %vm3703 = vcmp.eq.s32.totalorder %v3679, 1
        %vm3704 = vcmp.eq.s32.totalorder %v3680, 1
        %vm3705 = vcmp.eq.s32.totalorder %v3681, 1
        %vm3706 = vcmp.eq.s32.totalorder %v3682, 1
        %vm3707 = vcmp.eq.s32.totalorder %v3683, 1
        %vm3708 = vcmp.eq.s32.totalorder %v3684, 1
        %vm3709 = vcmp.eq.s32.totalorder %v3685, 1
        %vm3710 = vcmp.eq.s32.totalorder %v3686, 1
        %v3711 = vsel %vm3687, %v3639, 0.0
        %v3712 = vsel %vm3688, %v3640, 0.0
        %v3713 = vsel %vm3689, %v3641, 0.0
        %v3714 = vsel %vm3690, %v3642, 0.0
        %v3715 = vsel %vm3691, %v3643, 0.0
        %v3716 = vsel %vm3692, %v3644, 0.0
        %v3717 = vsel %vm3693, %v3645, 0.0
        %v3718 = vsel %vm3694, %v3646, 0.0
        %v3719 = vsel %vm3695, %v3647, 0.0
        %v3720 = vsel %vm3696, %v3648, 0.0
        %v3721 = vsel %vm3697, %v3649, 0.0
        %v3722 = vsel %vm3698, %v3650, 0.0
        %v3723 = vsel %vm3699, %v3651, 0.0
        %v3724 = vsel %vm3700, %v3652, 0.0
        %v3725 = vsel %vm3701, %v3653, 0.0
        %v3726 = vsel %vm3702, %v3654, 0.0
        %v3727 = vsel %vm3703, %v3655, 0.0
        %v3728 = vsel %vm3704, %v3656, 0.0
        %v3729 = vsel %vm3705, %v3657, 0.0
        %v3730 = vsel %vm3706, %v3658, 0.0
        %v3731 = vsel %vm3707, %v3659, 0.0
        %v3732 = vsel %vm3708, %v3660, 0.0
        %v3733 = vsel %vm3709, %v3661, 0.0
        %v3734 = vsel %vm3710, %v3662, 0.0
        %v3735 = vpack.c.bf16 %v3712, %v3711
        %v3736 = vpack.c.bf16 %v3714, %v3713
        %v3737 = vpack.c.bf16 %v3716, %v3715
        %v3738 = vpack.c.bf16 %v3718, %v3717
        %v3739 = vpack.c.bf16 %v3720, %v3719
        %v3740 = vpack.c.bf16 %v3722, %v3721
        %v3741 = vpack.c.bf16 %v3724, %v3723
        %v3742 = vpack.c.bf16 %v3726, %v3725
        %v3743 = vpack.c.bf16 %v3728, %v3727
        %v3744 = vpack.c.bf16 %v3730, %v3729
        %v3745 = vpack.c.bf16 %v3732, %v3731
        %v3746 = vpack.c.bf16 %v3734, %v3733
        %3747 = vst [vmem:[#allocation3 + $0x8] sm:$0xff] %v3735
        %3748 = vst [vmem:[#allocation3 + $0x10] sm:$0xff] %v3736
        %3749 = vst [vmem:[#allocation3 + $0x18] sm:$0xff] %v3737
        %3750 = vst [vmem:[#allocation3 + $0x20] sm:$0xff] %v3738
        %3751 = vst [vmem:[#allocation3 + $0x28] sm:$0xff] %v3739
        %3752 = vst [vmem:[#allocation3 + $0x30] sm:$0xff] %v3740
        %3753 = vst [vmem:[#allocation3 + $0x38] sm:$0xff] %v3741
        %3754 = vst [vmem:[#allocation3 + $0x40] sm:$0xff] %v3742
        %3755 = vst [vmem:[#allocation3 + $0x48] sm:$0xff] %v3743
        %3756 = vst [vmem:[#allocation3 + $0x50] sm:$0xff] %v3744
        %3757 = vst [vmem:[#allocation3 + $0x58] sm:$0xff] %v3745
        %3758 = vst [vmem:[#allocation3 + $0x60] sm:$0xff] %v3746
        %3759 = vst [vmem:[#allocation3] sm:$0xff] 0
        %3760 = vst [vmem:[#allocation3 + $0x68] sm:$0xff] 0
        %p3761 = scmp.eq.s32.totalorder %s30, 0
        // Predicated region
        $region61: #{tpu_custom_call.1} parent=47 // pred_check
          %p3762 = pneg %p3761
        $region62: #{tpu_custom_call.1} parent=47 // pred_check_branch
          %3764 = sbr.rel (%p3762) target = $region64
        $region63: #{tpu_custom_call.1} parent=47 // pred_region
          %3765 = vst [vmem:[#allocation3 + $0x8] sm:$0xff] 0
          %3766 = vst [vmem:[#allocation3 + $0x10] sm:$0xff] 0
        $region64: #{tpu_custom_call.1} parent=47 // pred_fallthru
          _
        %p3767 = scmp.eq.s32.totalorder %s30, 3
        // Predicated region
        $region65: #{tpu_custom_call.1} parent=47 // pred_check
          %p3768 = pneg %p3767
        $region66: #{tpu_custom_call.1} parent=47 // pred_check_branch
          %3770 = sbr.rel (%p3768) target = $region68
        $region67: #{tpu_custom_call.1} parent=47 // pred_region
          %3771 = vst [vmem:[#allocation3 + $0x58] sm:$0xff] 0
          %3772 = vst [vmem:[#allocation3 + $0x60] sm:$0xff] 0
        $region68: #{tpu_custom_call.1} parent=47 // pred_fallthru
          _
        %v3773 = vld [vmem:[#allocation3] sm:$0x80]
        %v3774 = vld [vmem:[#allocation3 + $0x8] sm:$0xff]
        %v3775 = vld [vmem:[#allocation3 + $0x10] sm:$0xff]
        %v3776 = vld [vmem:[#allocation3 + $0x18] sm:$0xff]
        %v3777 = vld [vmem:[#allocation3 + $0x20] sm:$0xff]
        %v3778 = vld [vmem:[#allocation3 + $0x28] sm:$0xff]
        %v3779 = vld [vmem:[#allocation3 + $0x30] sm:$0xff]
        %v3780 = vld [vmem:[#allocation3 + $0x38] sm:$0xff]
        %v3781 = vld [vmem:[#allocation3 + $0x40] sm:$0xff]
        %v3782 = vld [vmem:[#allocation9] sm:$0xf]
        %v3783 = vld [vmem:[#allocation9 + $0x4] sm:$0xf]
        %v3784 = vld [vmem:[#allocation9 + $0x8] sm:$0xf]
        %v3785 = vld [vmem:[#allocation9 + $0xc] sm:$0xf]
        %v3786 = vld [vmem:[#allocation9 + $0x10] sm:$0xf]
        %v3787 = vld [vmem:[#allocation9 + $0x14] sm:$0xf]
        %v3788 = vld [vmem:[#allocation9 + $0x18] sm:$0xf]
        %v3789 = vld [vmem:[#allocation9 + $0x1c] sm:$0xf]
        %v3790 = vld [vmem:[#allocation9 + $0x20] sm:$0xf]
        %v3791 = vld [vmem:[#allocation9 + $0x24] sm:$0xf]
        %v3792 = vld [vmem:[#allocation9 + $0x28] sm:$0xf]
        %v3793 = vld [vmem:[#allocation9 + $0x2c] sm:$0xf]
        %v3794 = vld [vmem:[#allocation9 + $0x30] sm:$0xf]
        %v3795 = vld [vmem:[#allocation9 + $0x34] sm:$0xf]
        %v3796 = vld [vmem:[#allocation9 + $0x38] sm:$0xf]
        %v3797 = vld [vmem:[#allocation9 + $0x3c] sm:$0xf]
        %s3798 = scalar_lea.vmem [#allocation9], 64
        %v3799 = vld [vmem:[%s3798] sm:$0xf]
        %v3800 = vld [vmem:[%s3798 + $0x4] sm:$0xf]
        %v3801 = vld [vmem:[%s3798 + $0x8] sm:$0xf]
        %v3802 = vld [vmem:[%s3798 + $0xc] sm:$0xf]
        %v3803 = vld [vmem:[%s3798 + $0x10] sm:$0xf]
        %v3804 = vld [vmem:[%s3798 + $0x14] sm:$0xf]
        %v3805 = vld [vmem:[%s3798 + $0x18] sm:$0xf]
        %v3806 = vld [vmem:[%s3798 + $0x1c] sm:$0xf]
        %v3807 = vld [vmem:[%s3798 + $0x20] sm:$0xf]
        %v3808 = vld [vmem:[%s3798 + $0x24] sm:$0xf]
        %v3809 = vld [vmem:[%s3798 + $0x28] sm:$0xf]
        %v3810 = vld [vmem:[%s3798 + $0x2c] sm:$0xf]
        %v3811 = vld [vmem:[%s3798 + $0x30] sm:$0xf]
        %v3812 = vld [vmem:[%s3798 + $0x34] sm:$0xf]
        %v3813 = vld [vmem:[%s3798 + $0x38] sm:$0xf]
        %v3814 = vld [vmem:[%s3798 + $0x3c] sm:$0xf]
        %v3831 = vunpack.c.l.b16 %v3799
        %v3832 = vunpack.c.l.b16 %v3800
        %v3833 = vunpack.c.l.b16 %v3801
        %v3834 = vunpack.c.l.b16 %v3802
        %v3835 = vunpack.c.l.b16 %v3803
        %v3836 = vunpack.c.l.b16 %v3804
        %v3837 = vunpack.c.l.b16 %v3805
        %v3838 = vunpack.c.l.b16 %v3806
        %v3839 = vunpack.c.l.b16 %v3807
        %v3840 = vunpack.c.l.b16 %v3808
        %v3841 = vunpack.c.l.b16 %v3809
        %v3842 = vunpack.c.l.b16 %v3810
        %v3843 = vunpack.c.l.b16 %v3811
        %v3844 = vunpack.c.l.b16 %v3812
        %v3845 = vunpack.c.l.b16 %v3813
        %v3846 = vunpack.c.l.b16 %v3814
        %v3847 = vpack.c.b16 %v3832, %v3831
        %v3848 = vpack.c.b16 %v3834, %v3833
        %v3849 = vpack.c.b16 %v3836, %v3835
        %v3850 = vpack.c.b16 %v3838, %v3837
        %v3851 = vpack.c.b16 %v3840, %v3839
        %v3852 = vpack.c.b16 %v3842, %v3841
        %v3853 = vpack.c.b16 %v3844, %v3843
        %v3854 = vpack.c.b16 %v3846, %v3845
        %3863 = vmatprep.subr.bf16.mxu0 0
        %3864 = vmatpush1.bf16.msra.mxu0 %v3847
        %3865 = vmatprep.subr.bf16.mxu0 0
        %3866 = vmatpush1.bf16.msra.mxu0 %v3848
        %3867 = vmatprep.subr.bf16.mxu0 0
        %3868 = vmatpush1.bf16.msra.mxu0 %v3849
        %3869 = vmatprep.subr.bf16.mxu0 0
        %3870 = vmatpush1.bf16.msra.mxu0 %v3850
        %3871 = vmatprep.subr.bf16.mxu0 0
        %3872 = vmatpush1.bf16.msra.mxu0 %v3851
        %3873 = vmatprep.subr.bf16.mxu0 0
        %3874 = vmatpush1.bf16.msra.mxu0 %v3852
        %3875 = vmatprep.subr.bf16.mxu0 0
        %3876 = vmatpush1.bf16.msra.mxu0 %v3853
        %3877 = vmatprep.subr.bf16.mxu0 0
        %3878 = vmatpush1.bf16.msra.mxu0 %v3854
        %3879 = vmatprep.subr.bf16.mxu0 0
        %3880 = vmatpush1.bf16.msra.mxu0 0
        %3881 = vmatprep.subr.bf16.mxu0 0
        %3882 = vmatpush1.bf16.msra.mxu0 0
        %3883 = vmatprep.subr.bf16.mxu0 0
        %3884 = vmatpush1.bf16.msra.mxu0 0
        %3885 = vmatprep.subr.bf16.mxu0 0
        %3886 = vmatpush1.bf16.msra.mxu0 0
        %3887 = vmatprep.subr.bf16.mxu0 0
        %3888 = vmatpush1.bf16.msra.mxu0 0
        %3889 = vmatprep.subr.bf16.mxu0 0
        %3890 = vmatpush1.bf16.msra.mxu0 0
        %3891 = vmatprep.subr.bf16.mxu0 0
        %3892 = vmatpush1.bf16.msra.mxu0 0
        %3893 = vmatprep.subr.bf16.mxu0 0
        %3894 = vmatpush1.bf16.msra.mxu0 0
        %3895 = vmatprep.mubr.bf16.mxu0 0
        %3896 = vmatmul.mubr.bf16.gmra.mrb[0].mxu0 %v3774
        %v3897 = vpop.f32.mrb[0].mxu0
        %v3898 = vadd.f32 0.0, %v3897
        %v3899 = vpop.f32.mrb[0].mxu0
        %v3900 = vpop.f32.mrb[0].mxu0
        %v3901 = vadd.f32 0.0, %v3900
        %v3902 = vpop.f32.mrb[0].mxu0
        %3903 = vmatprep.mubr.bf16.mxu0 0
        %3904 = vmatmul.mubr.bf16.gmra.mrb[0].mxu0 %v3775
        %v3905 = vpop.f32.mrb[0].mxu0
        %v3906 = vadd.f32 0.0, %v3905
        %v3907 = vpop.f32.mrb[0].mxu0
        %v3908 = vpop.f32.mrb[0].mxu0
        %v3909 = vadd.f32 0.0, %v3908
        %v3910 = vpop.f32.mrb[0].mxu0
        %3911 = vmatprep.mubr.bf16.mxu0 0
        %3912 = vmatmul.mubr.bf16.gmra.mrb[0].mxu0 %v3776
        %v3913 = vpop.f32.mrb[0].mxu0
        %v3914 = vadd.f32 0.0, %v3913
        %v3915 = vpop.f32.mrb[0].mxu0
        %v3916 = vpop.f32.mrb[0].mxu0
        %v3917 = vadd.f32 0.0, %v3916
        %v3918 = vpop.f32.mrb[0].mxu0
        %3919 = vmatprep.mubr.bf16.mxu0 0
        %3920 = vmatmul.mubr.bf16.gmra.mrb[0].mxu0 %v3777
        %v3921 = vpop.f32.mrb[0].mxu0
        %v3922 = vadd.f32 0.0, %v3921
        %v3923 = vpop.f32.mrb[0].mxu0
        %v3924 = vpop.f32.mrb[0].mxu0
        %v3925 = vadd.f32 0.0, %v3924
        %v3926 = vpop.f32.mrb[0].mxu0
        %3927 = vmatprep.mubr.bf16.mxu0 0
        %3928 = vmatmul.mubr.bf16.gmra.mrb[0].mxu0 %v3778
        %v3929 = vpop.f32.mrb[0].mxu0
        %v3930 = vadd.f32 0.0, %v3929
        %v3931 = vpop.f32.mrb[0].mxu0
        %v3932 = vpop.f32.mrb[0].mxu0
        %v3933 = vadd.f32 0.0, %v3932
        %v3934 = vpop.f32.mrb[0].mxu0
        %3935 = vmatprep.mubr.bf16.mxu0 0
        %3936 = vmatmul.mubr.bf16.gmra.mrb[0].mxu0 %v3779
        %v3937 = vpop.f32.mrb[0].mxu0
        %v3938 = vadd.f32 0.0, %v3937
        %v3939 = vpop.f32.mrb[0].mxu0
        %v3940 = vpop.f32.mrb[0].mxu0
        %v3941 = vadd.f32 0.0, %v3940
        %v3942 = vpop.f32.mrb[0].mxu0
        %3943 = vmatprep.mubr.bf16.mxu0 0
        %3944 = vmatmul.mubr.bf16.gmra.mrb[0].mxu0 %v3780
        %v3945 = vpop.f32.mrb[0].mxu0
        %v3946 = vadd.f32 0.0, %v3945
        %v3947 = vpop.f32.mrb[0].mxu0
        %v3948 = vpop.f32.mrb[0].mxu0
        %v3949 = vadd.f32 0.0, %v3948
        %v3950 = vpop.f32.mrb[0].mxu0
        %3951 = vmatprep.mubr.bf16.mxu0 0
        %3952 = vmatmul.mubr.bf16.gmra.mrb[0].mxu0 %v3781
        %v3953 = vpop.f32.mrb[0].mxu0
        %v3954 = vadd.f32 0.0, %v3953
        %v3955 = vpop.f32.mrb[0].mxu0
        %v3956 = vpop.f32.mrb[0].mxu0
        %v3957 = vadd.f32 0.0, %v3956
        %v3958 = vpop.f32.mrb[0].mxu0
        %3959 = vdwg.mxu0
        %v3961 = vshrl.u32 %v3773, 16
        %v3963 = vrot.slane %v3961, 7
        %v3965 = vshrl.u32 %v3774, 16
        %v3967 = vrot.slane %v3965, 7
        %v3968 = vshll.u32 %v3774, 16
        %v3970 = vor.u32 %v3967, %v3968
        %v3971 = vsel %vm750, %v3963, %v3970
        %v3973 = vshrl.u32 %v3775, 16
        %v3975 = vrot.slane %v3973, 7
        %v3976 = vshll.u32 %v3775, 16
        %v3978 = vor.u32 %v3975, %v3976
        %v3979 = vsel %vm750, %v3967, %v3978
        %v3981 = vshrl.u32 %v3776, 16
        %v3983 = vrot.slane %v3981, 7
        %v3984 = vshll.u32 %v3776, 16
        %v3986 = vor.u32 %v3983, %v3984
        %v3987 = vsel %vm750, %v3975, %v3986
        %v3989 = vshrl.u32 %v3777, 16
        %v3991 = vrot.slane %v3989, 7
        %v3992 = vshll.u32 %v3777, 16
        %v3994 = vor.u32 %v3991, %v3992
        %v3995 = vsel %vm750, %v3983, %v3994
        %v3997 = vshrl.u32 %v3778, 16
        %v3999 = vrot.slane %v3997, 7
        %v4000 = vshll.u32 %v3778, 16
        %v4002 = vor.u32 %v3999, %v4000
        %v4003 = vsel %vm750, %v3991, %v4002
        %v4005 = vshrl.u32 %v3779, 16
        %v4007 = vrot.slane %v4005, 7
        %v4008 = vshll.u32 %v3779, 16
        %v4010 = vor.u32 %v4007, %v4008
        %v4011 = vsel %vm750, %v3999, %v4010
        %v4013 = vshrl.u32 %v3780, 16
        %v4015 = vrot.slane %v4013, 7
        %v4016 = vshll.u32 %v3780, 16
        %v4018 = vor.u32 %v4015, %v4016
        %v4019 = vsel %vm750, %v4007, %v4018
        %v4021 = vshrl.u32 %v3781, 16
        %v4023 = vrot.slane %v4021, 7
        %v4024 = vshll.u32 %v3781, 16
        %v4026 = vor.u32 %v4023, %v4024
        %v4027 = vsel %vm750, %v4015, %v4026
        %v4052 = vunpack.c.l.b16 %v3782
        %v4053 = vunpack.c.l.b16 %v3783
        %v4054 = vunpack.c.l.b16 %v3784
        %v4055 = vunpack.c.l.b16 %v3785
        %v4056 = vunpack.c.l.b16 %v3786
        %v4057 = vunpack.c.l.b16 %v3787
        %v4058 = vunpack.c.l.b16 %v3788
        %v4059 = vunpack.c.l.b16 %v3789
        %v4060 = vunpack.c.l.b16 %v3790
        %v4061 = vunpack.c.l.b16 %v3791
        %v4062 = vunpack.c.l.b16 %v3792
        %v4063 = vunpack.c.l.b16 %v3793
        %v4064 = vunpack.c.l.b16 %v3794
        %v4065 = vunpack.c.l.b16 %v3795
        %v4066 = vunpack.c.l.b16 %v3796
        %v4067 = vunpack.c.l.b16 %v3797
        %v4068 = vpack.c.b16 %v4053, %v4052
        %v4069 = vpack.c.b16 %v4055, %v4054
        %v4070 = vpack.c.b16 %v4057, %v4056
        %v4071 = vpack.c.b16 %v4059, %v4058
        %v4072 = vpack.c.b16 %v4061, %v4060
        %v4073 = vpack.c.b16 %v4063, %v4062
        %v4074 = vpack.c.b16 %v4065, %v4064
        %v4075 = vpack.c.b16 %v4067, %v4066
        %4084 = vmatprep.subr.bf16.mxu0 0
        %4085 = vmatpush1.bf16.msra.mxu0 %v4068
        %4086 = vmatprep.subr.bf16.mxu0 0
        %4087 = vmatpush1.bf16.msra.mxu0 %v4069
        %4088 = vmatprep.subr.bf16.mxu0 0
        %4089 = vmatpush1.bf16.msra.mxu0 %v4070
        %4090 = vmatprep.subr.bf16.mxu0 0
        %4091 = vmatpush1.bf16.msra.mxu0 %v4071
        %4092 = vmatprep.subr.bf16.mxu0 0
        %4093 = vmatpush1.bf16.msra.mxu0 %v4072
        %4094 = vmatprep.subr.bf16.mxu0 0
        %4095 = vmatpush1.bf16.msra.mxu0 %v4073
        %4096 = vmatprep.subr.bf16.mxu0 0
        %4097 = vmatpush1.bf16.msra.mxu0 %v4074
        %4098 = vmatprep.subr.bf16.mxu0 0
        %4099 = vmatpush1.bf16.msra.mxu0 %v4075
        %4100 = vmatprep.subr.bf16.mxu0 0
        %4101 = vmatpush1.bf16.msra.mxu0 0
        %4102 = vmatprep.subr.bf16.mxu0 0
        %4103 = vmatpush1.bf16.msra.mxu0 0
        %4104 = vmatprep.subr.bf16.mxu0 0
        %4105 = vmatpush1.bf16.msra.mxu0 0
        %4106 = vmatprep.subr.bf16.mxu0 0
        %4107 = vmatpush1.bf16.msra.mxu0 0
        %4108 = vmatprep.subr.bf16.mxu0 0
        %4109 = vmatpush1.bf16.msra.mxu0 0
        %4110 = vmatprep.subr.bf16.mxu0 0
        %4111 = vmatpush1.bf16.msra.mxu0 0
        %4112 = vmatprep.subr.bf16.mxu0 0
        %4113 = vmatpush1.bf16.msra.mxu0 0
        %4114 = vmatprep.subr.bf16.mxu0 0
        %4115 = vmatpush1.bf16.msra.mxu0 0
        %4116 = vmatprep.mubr.bf16.mxu0 0
        %4117 = vmatmul.mubr.bf16.gmra.mrb[0].mxu0 %v3971
        %v4118 = vpop.f32.mrb[0].mxu0
        %v4119 = vadd.f32 %v3898, %v4118
        %v4120 = vpop.f32.mrb[0].mxu0
        %v4121 = vpop.f32.mrb[0].mxu0
        %v4122 = vadd.f32 %v3901, %v4121
        %v4123 = vpop.f32.mrb[0].mxu0
        %4124 = vmatprep.mubr.bf16.mxu0 0
        %4125 = vmatmul.mubr.bf16.gmra.mrb[0].mxu0 %v3979
        %v4126 = vpop.f32.mrb[0].mxu0
        %v4127 = vadd.f32 %v3906, %v4126
        %v4128 = vpop.f32.mrb[0].mxu0
        %v4129 = vpop.f32.mrb[0].mxu0
        %v4130 = vadd.f32 %v3909, %v4129
        %v4131 = vpop.f32.mrb[0].mxu0
        %4132 = vmatprep.mubr.bf16.mxu0 0
        %4133 = vmatmul.mubr.bf16.gmra.mrb[0].mxu0 %v3987
        %v4134 = vpop.f32.mrb[0].mxu0
        %v4135 = vadd.f32 %v3914, %v4134
        %v4136 = vpop.f32.mrb[0].mxu0
        %v4137 = vpop.f32.mrb[0].mxu0
        %v4138 = vadd.f32 %v3917, %v4137
        %v4139 = vpop.f32.mrb[0].mxu0
        %4140 = vmatprep.mubr.bf16.mxu0 0
        %4141 = vmatmul.mubr.bf16.gmra.mrb[0].mxu0 %v3995
        %v4142 = vpop.f32.mrb[0].mxu0
        %v4143 = vadd.f32 %v3922, %v4142
        %v4144 = vpop.f32.mrb[0].mxu0
        %v4145 = vpop.f32.mrb[0].mxu0
        %v4146 = vadd.f32 %v3925, %v4145
        %v4147 = vpop.f32.mrb[0].mxu0
        %4148 = vmatprep.mubr.bf16.mxu0 0
        %4149 = vmatmul.mubr.bf16.gmra.mrb[0].mxu0 %v4003
        %v4150 = vpop.f32.mrb[0].mxu0
        %v4151 = vadd.f32 %v3930, %v4150
        %v4152 = vpop.f32.mrb[0].mxu0
        %v4153 = vpop.f32.mrb[0].mxu0
        %v4154 = vadd.f32 %v3933, %v4153
        %v4155 = vpop.f32.mrb[0].mxu0
        %4156 = vmatprep.mubr.bf16.mxu0 0
        %4157 = vmatmul.mubr.bf16.gmra.mrb[0].mxu0 %v4011
        %v4158 = vpop.f32.mrb[0].mxu0
        %v4159 = vadd.f32 %v3938, %v4158
        %v4160 = vpop.f32.mrb[0].mxu0
        %v4161 = vpop.f32.mrb[0].mxu0
        %v4162 = vadd.f32 %v3941, %v4161
        %v4163 = vpop.f32.mrb[0].mxu0
        %4164 = vmatprep.mubr.bf16.mxu0 0
        %4165 = vmatmul.mubr.bf16.gmra.mrb[0].mxu0 %v4019
        %v4166 = vpop.f32.mrb[0].mxu0
        %v4167 = vadd.f32 %v3946, %v4166
        %v4168 = vpop.f32.mrb[0].mxu0
        %v4169 = vpop.f32.mrb[0].mxu0
        %v4170 = vadd.f32 %v3949, %v4169
        %v4171 = vpop.f32.mrb[0].mxu0
        %4172 = vmatprep.mubr.bf16.mxu0 0
        %4173 = vmatmul.mubr.bf16.gmra.mrb[0].mxu0 %v4027
        %v4174 = vpop.f32.mrb[0].mxu0
        %v4175 = vadd.f32 %v3954, %v4174
        %v4176 = vpop.f32.mrb[0].mxu0
        %v4177 = vpop.f32.mrb[0].mxu0
        %v4178 = vadd.f32 %v3957, %v4177
        %v4179 = vpop.f32.mrb[0].mxu0
        %4180 = vdwg.mxu0
        %v4181 = vld [vmem:[#allocation3 + $0x8] sm:$0xff]
        %v4182 = vld [vmem:[#allocation3 + $0x10] sm:$0xff]
        %v4183 = vld [vmem:[#allocation3 + $0x18] sm:$0xff]
        %v4184 = vld [vmem:[#allocation3 + $0x20] sm:$0xff]
        %v4185 = vld [vmem:[#allocation3 + $0x28] sm:$0xff]
        %v4186 = vld [vmem:[#allocation3 + $0x30] sm:$0xff]
        %v4187 = vld [vmem:[#allocation3 + $0x38] sm:$0xff]
        %v4188 = vld [vmem:[#allocation3 + $0x40] sm:$0xff]
        %v4189 = vld [vmem:[#allocation3 + $0x48] sm:$0x1]
        %s4190 = scalar_lea.vmem [#allocation9], 128
        %v4191 = vld [vmem:[%s4190] sm:$0xf]
        %v4192 = vld [vmem:[%s4190 + $0x4] sm:$0xf]
        %v4193 = vld [vmem:[%s4190 + $0x8] sm:$0xf]
        %v4194 = vld [vmem:[%s4190 + $0xc] sm:$0xf]
        %v4195 = vld [vmem:[%s4190 + $0x10] sm:$0xf]
        %v4196 = vld [vmem:[%s4190 + $0x14] sm:$0xf]
        %v4197 = vld [vmem:[%s4190 + $0x18] sm:$0xf]
        %v4198 = vld [vmem:[%s4190 + $0x1c] sm:$0xf]
        %v4199 = vld [vmem:[%s4190 + $0x20] sm:$0xf]
        %v4200 = vld [vmem:[%s4190 + $0x24] sm:$0xf]
        %v4201 = vld [vmem:[%s4190 + $0x28] sm:$0xf]
        %v4202 = vld [vmem:[%s4190 + $0x2c] sm:$0xf]
        %v4203 = vld [vmem:[%s4190 + $0x30] sm:$0xf]
        %v4204 = vld [vmem:[%s4190 + $0x34] sm:$0xf]
        %v4205 = vld [vmem:[%s4190 + $0x38] sm:$0xf]
        %v4206 = vld [vmem:[%s4190 + $0x3c] sm:$0xf]
        %v4208 = vshrl.u32 %v4181, 16
        %v4210 = vshll.u32 %v4181, 16
        %v4212 = vrot.slane %v4210, 1
        %v4213 = vor.u32 %v4208, %v4212
        %v4215 = vshll.u32 %v4182, 16
        %v4217 = vrot.slane %v4215, 1
        %v4218 = vsel %vm1070, %v4213, %v4217
        %v4219 = vshrl.u32 %v4182, 16
        %v4221 = vor.u32 %v4219, %v4217
        %v4223 = vshll.u32 %v4183, 16
        %v4225 = vrot.slane %v4223, 1
        %v4226 = vsel %vm1070, %v4221, %v4225
        %v4227 = vshrl.u32 %v4183, 16
        %v4229 = vor.u32 %v4227, %v4225
        %v4231 = vshll.u32 %v4184, 16
        %v4233 = vrot.slane %v4231, 1
        %v4234 = vsel %vm1070, %v4229, %v4233
        %v4235 = vshrl.u32 %v4184, 16
        %v4237 = vor.u32 %v4235, %v4233
        %v4239 = vshll.u32 %v4185, 16
        %v4241 = vrot.slane %v4239, 1
        %v4242 = vsel %vm1070, %v4237, %v4241
        %v4243 = vshrl.u32 %v4185, 16
        %v4245 = vor.u32 %v4243, %v4241
        %v4247 = vshll.u32 %v4186, 16
        %v4249 = vrot.slane %v4247, 1
        %v4250 = vsel %vm1070, %v4245, %v4249
        %v4251 = vshrl.u32 %v4186, 16
        %v4253 = vor.u32 %v4251, %v4249
        %v4255 = vshll.u32 %v4187, 16
        %v4257 = vrot.slane %v4255, 1
        %v4258 = vsel %vm1070, %v4253, %v4257
        %v4259 = vshrl.u32 %v4187, 16
        %v4261 = vor.u32 %v4259, %v4257
        %v4263 = vshll.u32 %v4188, 16
        %v4265 = vrot.slane %v4263, 1
        %v4266 = vsel %vm1070, %v4261, %v4265
        %v4267 = vshrl.u32 %v4188, 16
        %v4269 = vor.u32 %v4267, %v4265
        %v4271 = vshll.u32 %v4189, 16
        %v4273 = vrot.slane %v4271, 1
        %v4274 = vsel %vm1070, %v4269, %v4273
        %v4299 = vunpack.c.l.b16 %v4191
        %v4300 = vunpack.c.l.b16 %v4192
        %v4301 = vunpack.c.l.b16 %v4193
        %v4302 = vunpack.c.l.b16 %v4194
        %v4303 = vunpack.c.l.b16 %v4195
        %v4304 = vunpack.c.l.b16 %v4196
        %v4305 = vunpack.c.l.b16 %v4197
        %v4306 = vunpack.c.l.b16 %v4198
        %v4307 = vunpack.c.l.b16 %v4199
        %v4308 = vunpack.c.l.b16 %v4200
        %v4309 = vunpack.c.l.b16 %v4201
        %v4310 = vunpack.c.l.b16 %v4202
        %v4311 = vunpack.c.l.b16 %v4203
        %v4312 = vunpack.c.l.b16 %v4204
        %v4313 = vunpack.c.l.b16 %v4205
        %v4314 = vunpack.c.l.b16 %v4206
        %v4315 = vpack.c.b16 %v4300, %v4299
        %v4316 = vpack.c.b16 %v4302, %v4301
        %v4317 = vpack.c.b16 %v4304, %v4303
        %v4318 = vpack.c.b16 %v4306, %v4305
        %v4319 = vpack.c.b16 %v4308, %v4307
        %v4320 = vpack.c.b16 %v4310, %v4309
        %v4321 = vpack.c.b16 %v4312, %v4311
        %v4322 = vpack.c.b16 %v4314, %v4313
        %4331 = vmatprep.subr.bf16.mxu0 0
        %4332 = vmatpush1.bf16.msra.mxu0 %v4315
        %4333 = vmatprep.subr.bf16.mxu0 0
        %4334 = vmatpush1.bf16.msra.mxu0 %v4316
        %4335 = vmatprep.subr.bf16.mxu0 0
        %4336 = vmatpush1.bf16.msra.mxu0 %v4317
        %4337 = vmatprep.subr.bf16.mxu0 0
        %4338 = vmatpush1.bf16.msra.mxu0 %v4318
        %4339 = vmatprep.subr.bf16.mxu0 0
        %4340 = vmatpush1.bf16.msra.mxu0 %v4319
        %4341 = vmatprep.subr.bf16.mxu0 0
        %4342 = vmatpush1.bf16.msra.mxu0 %v4320
        %4343 = vmatprep.subr.bf16.mxu0 0
        %4344 = vmatpush1.bf16.msra.mxu0 %v4321
        %4345 = vmatprep.subr.bf16.mxu0 0
        %4346 = vmatpush1.bf16.msra.mxu0 %v4322
        %4347 = vmatprep.subr.bf16.mxu0 0
        %4348 = vmatpush1.bf16.msra.mxu0 0
        %4349 = vmatprep.subr.bf16.mxu0 0
        %4350 = vmatpush1.bf16.msra.mxu0 0
        %4351 = vmatprep.subr.bf16.mxu0 0
        %4352 = vmatpush1.bf16.msra.mxu0 0
        %4353 = vmatprep.subr.bf16.mxu0 0
        %4354 = vmatpush1.bf16.msra.mxu0 0
        %4355 = vmatprep.subr.bf16.mxu0 0
        %4356 = vmatpush1.bf16.msra.mxu0 0
        %4357 = vmatprep.subr.bf16.mxu0 0
        %4358 = vmatpush1.bf16.msra.mxu0 0
        %4359 = vmatprep.subr.bf16.mxu0 0
        %4360 = vmatpush1.bf16.msra.mxu0 0
        %4361 = vmatprep.subr.bf16.mxu0 0
        %4362 = vmatpush1.bf16.msra.mxu0 0
        %4363 = vmatprep.mubr.bf16.mxu0 0
        %4364 = vmatmul.mubr.bf16.gmra.mrb[0].mxu0 %v4218
        %v4365 = vpop.f32.mrb[0].mxu0
        %v4366 = vadd.f32 0.0, %v4365
        %v4367 = vpop.f32.mrb[0].mxu0
        %v4368 = vpop.f32.mrb[0].mxu0
        %v4369 = vadd.f32 0.0, %v4368
        %v4370 = vpop.f32.mrb[0].mxu0
        %4371 = vmatprep.mubr.bf16.mxu0 0
        %4372 = vmatmul.mubr.bf16.gmra.mrb[0].mxu0 %v4226
        %v4373 = vpop.f32.mrb[0].mxu0
        %v4374 = vadd.f32 0.0, %v4373
        %v4375 = vpop.f32.mrb[0].mxu0
        %v4376 = vpop.f32.mrb[0].mxu0
        %v4377 = vadd.f32 0.0, %v4376
        %v4378 = vpop.f32.mrb[0].mxu0
        %4379 = vmatprep.mubr.bf16.mxu0 0
        %4380 = vmatmul.mubr.bf16.gmra.mrb[0].mxu0 %v4234
        %v4381 = vpop.f32.mrb[0].mxu0
        %v4382 = vadd.f32 0.0, %v4381
        %v4383 = vpop.f32.mrb[0].mxu0
        %v4384 = vpop.f32.mrb[0].mxu0
        %v4385 = vadd.f32 0.0, %v4384
        %v4386 = vpop.f32.mrb[0].mxu0
        %4387 = vmatprep.mubr.bf16.mxu0 0
        %4388 = vmatmul.mubr.bf16.gmra.mrb[0].mxu0 %v4242
        %v4389 = vpop.f32.mrb[0].mxu0
        %v4390 = vadd.f32 0.0, %v4389
        %v4391 = vpop.f32.mrb[0].mxu0
        %v4392 = vpop.f32.mrb[0].mxu0
        %v4393 = vadd.f32 0.0, %v4392
        %v4394 = vpop.f32.mrb[0].mxu0
        %4395 = vmatprep.mubr.bf16.mxu0 0
        %4396 = vmatmul.mubr.bf16.gmra.mrb[0].mxu0 %v4250
        %v4397 = vpop.f32.mrb[0].mxu0
        %v4398 = vadd.f32 0.0, %v4397
        %v4399 = vpop.f32.mrb[0].mxu0
        %v4400 = vpop.f32.mrb[0].mxu0
        %v4401 = vadd.f32 0.0, %v4400
        %v4402 = vpop.f32.mrb[0].mxu0
        %4403 = vmatprep.mubr.bf16.mxu0 0
        %4404 = vmatmul.mubr.bf16.gmra.mrb[0].mxu0 %v4258
        %v4405 = vpop.f32.mrb[0].mxu0
        %v4406 = vadd.f32 0.0, %v4405
        %v4407 = vpop.f32.mrb[0].mxu0
        %v4408 = vpop.f32.mrb[0].mxu0
        %v4409 = vadd.f32 0.0, %v4408
        %v4410 = vpop.f32.mrb[0].mxu0
        %4411 = vmatprep.mubr.bf16.mxu0 0
        %4412 = vmatmul.mubr.bf16.gmra.mrb[0].mxu0 %v4266
        %v4413 = vpop.f32.mrb[0].mxu0
        %v4414 = vadd.f32 0.0, %v4413
        %v4415 = vpop.f32.mrb[0].mxu0
        %v4416 = vpop.f32.mrb[0].mxu0
        %v4417 = vadd.f32 0.0, %v4416
        %v4418 = vpop.f32.mrb[0].mxu0
        %4419 = vmatprep.mubr.bf16.mxu0 0
        %4420 = vmatmul.mubr.bf16.gmra.mrb[0].mxu0 %v4274
        %v4421 = vpop.f32.mrb[0].mxu0
        %v4422 = vadd.f32 0.0, %v4421
        %v4423 = vpop.f32.mrb[0].mxu0
        %v4424 = vpop.f32.mrb[0].mxu0
        %v4425 = vadd.f32 0.0, %v4424
        %v4426 = vpop.f32.mrb[0].mxu0
        %4427 = vdwg.mxu0
        %v4428 = vadd.f32 %v4119, %v4366
        %v4429 = vadd.f32 %v4122, %v4369
        %v4430 = vadd.f32 %v4127, %v4374
        %v4431 = vadd.f32 %v4130, %v4377
        %v4432 = vadd.f32 %v4135, %v4382
        %v4433 = vadd.f32 %v4138, %v4385
        %v4434 = vadd.f32 %v4143, %v4390
        %v4435 = vadd.f32 %v4146, %v4393
        %v4436 = vadd.f32 %v4151, %v4398
        %v4437 = vadd.f32 %v4154, %v4401
        %v4438 = vadd.f32 %v4159, %v4406
        %v4439 = vadd.f32 %v4162, %v4409
        %v4440 = vadd.f32 %v4167, %v4414
        %v4441 = vadd.f32 %v4170, %v4417
        %v4442 = vadd.f32 %v4175, %v4422
        %v4443 = vadd.f32 %v4178, %v4425
        %v4444 = vld [vmem:[#allocation3 + $0x10] sm:$0x80]
        %v4445 = vld [vmem:[#allocation3 + $0x18] sm:$0xff]
        %v4446 = vld [vmem:[#allocation3 + $0x20] sm:$0xff]
        %v4447 = vld [vmem:[#allocation3 + $0x28] sm:$0xff]
        %v4448 = vld [vmem:[#allocation3 + $0x30] sm:$0xff]
        %v4449 = vld [vmem:[#allocation3 + $0x38] sm:$0xff]
        %v4450 = vld [vmem:[#allocation3 + $0x40] sm:$0xff]
        %v4451 = vld [vmem:[#allocation3 + $0x48] sm:$0xff]
        %v4452 = vld [vmem:[#allocation3 + $0x50] sm:$0xff]
        %s4453 = scalar_lea.vmem [#allocation9], 192
        %v4454 = vld [vmem:[%s4453] sm:$0xf]
        %v4455 = vld [vmem:[%s4453 + $0x4] sm:$0xf]
        %v4456 = vld [vmem:[%s4453 + $0x8] sm:$0xf]
        %v4457 = vld [vmem:[%s4453 + $0xc] sm:$0xf]
        %v4458 = vld [vmem:[%s4453 + $0x10] sm:$0xf]
        %v4459 = vld [vmem:[%s4453 + $0x14] sm:$0xf]
        %v4460 = vld [vmem:[%s4453 + $0x18] sm:$0xf]
        %v4461 = vld [vmem:[%s4453 + $0x1c] sm:$0xf]
        %v4462 = vld [vmem:[%s4453 + $0x20] sm:$0xf]
        %v4463 = vld [vmem:[%s4453 + $0x24] sm:$0xf]
        %v4464 = vld [vmem:[%s4453 + $0x28] sm:$0xf]
        %v4465 = vld [vmem:[%s4453 + $0x2c] sm:$0xf]
        %v4466 = vld [vmem:[%s4453 + $0x30] sm:$0xf]
        %v4467 = vld [vmem:[%s4453 + $0x34] sm:$0xf]
        %v4468 = vld [vmem:[%s4453 + $0x38] sm:$0xf]
        %v4469 = vld [vmem:[%s4453 + $0x3c] sm:$0xf]
        %v4471 = vshrl.u32 %v4444, 16
        %v4473 = vrot.slane %v4471, 7
        %v4475 = vshrl.u32 %v4445, 16
        %v4477 = vrot.slane %v4475, 7
        %v4478 = vshll.u32 %v4445, 16
        %v4480 = vor.u32 %v4477, %v4478
        %v4481 = vsel %vm750, %v4473, %v4480
        %v4483 = vshrl.u32 %v4446, 16
        %v4485 = vrot.slane %v4483, 7
        %v4486 = vshll.u32 %v4446, 16
        %v4488 = vor.u32 %v4485, %v4486
        %v4489 = vsel %vm750, %v4477, %v4488
        %v4491 = vshrl.u32 %v4447, 16
        %v4493 = vrot.slane %v4491, 7
        %v4494 = vshll.u32 %v4447, 16
        %v4496 = vor.u32 %v4493, %v4494
        %v4497 = vsel %vm750, %v4485, %v4496
        %v4499 = vshrl.u32 %v4448, 16
        %v4501 = vrot.slane %v4499, 7
        %v4502 = vshll.u32 %v4448, 16
        %v4504 = vor.u32 %v4501, %v4502
        %v4505 = vsel %vm750, %v4493, %v4504
        %v4507 = vshrl.u32 %v4449, 16
        %v4509 = vrot.slane %v4507, 7
        %v4510 = vshll.u32 %v4449, 16
        %v4512 = vor.u32 %v4509, %v4510
        %v4513 = vsel %vm750, %v4501, %v4512
        %v4515 = vshrl.u32 %v4450, 16
        %v4517 = vrot.slane %v4515, 7
        %v4518 = vshll.u32 %v4450, 16
        %v4520 = vor.u32 %v4517, %v4518
        %v4521 = vsel %vm750, %v4509, %v4520
        %v4523 = vshrl.u32 %v4451, 16
        %v4525 = vrot.slane %v4523, 7
        %v4526 = vshll.u32 %v4451, 16
        %v4528 = vor.u32 %v4525, %v4526
        %v4529 = vsel %vm750, %v4517, %v4528
        %v4531 = vshrl.u32 %v4452, 16
        %v4533 = vrot.slane %v4531, 7
        %v4534 = vshll.u32 %v4452, 16
        %v4536 = vor.u32 %v4533, %v4534
        %v4537 = vsel %vm750, %v4525, %v4536
        %v4562 = vunpack.c.l.b16 %v4454
        %v4563 = vunpack.c.l.b16 %v4455
        %v4564 = vunpack.c.l.b16 %v4456
        %v4565 = vunpack.c.l.b16 %v4457
        %v4566 = vunpack.c.l.b16 %v4458
        %v4567 = vunpack.c.l.b16 %v4459
        %v4568 = vunpack.c.l.b16 %v4460
        %v4569 = vunpack.c.l.b16 %v4461
        %v4570 = vunpack.c.l.b16 %v4462
        %v4571 = vunpack.c.l.b16 %v4463
        %v4572 = vunpack.c.l.b16 %v4464
        %v4573 = vunpack.c.l.b16 %v4465
        %v4574 = vunpack.c.l.b16 %v4466
        %v4575 = vunpack.c.l.b16 %v4467
        %v4576 = vunpack.c.l.b16 %v4468
        %v4577 = vunpack.c.l.b16 %v4469
        %v4578 = vpack.c.b16 %v4563, %v4562
        %v4579 = vpack.c.b16 %v4565, %v4564
        %v4580 = vpack.c.b16 %v4567, %v4566
        %v4581 = vpack.c.b16 %v4569, %v4568
        %v4582 = vpack.c.b16 %v4571, %v4570
        %v4583 = vpack.c.b16 %v4573, %v4572
        %v4584 = vpack.c.b16 %v4575, %v4574
        %v4585 = vpack.c.b16 %v4577, %v4576
        %4594 = vmatprep.subr.bf16.mxu0 0
        %4595 = vmatpush1.bf16.msra.mxu0 %v4578
        %4596 = vmatprep.subr.bf16.mxu0 0
        %4597 = vmatpush1.bf16.msra.mxu0 %v4579
        %4598 = vmatprep.subr.bf16.mxu0 0
        %4599 = vmatpush1.bf16.msra.mxu0 %v4580
        %4600 = vmatprep.subr.bf16.mxu0 0
        %4601 = vmatpush1.bf16.msra.mxu0 %v4581
        %4602 = vmatprep.subr.bf16.mxu0 0
        %4603 = vmatpush1.bf16.msra.mxu0 %v4582
        %4604 = vmatprep.subr.bf16.mxu0 0
        %4605 = vmatpush1.bf16.msra.mxu0 %v4583
        %4606 = vmatprep.subr.bf16.mxu0 0
        %4607 = vmatpush1.bf16.msra.mxu0 %v4584
        %4608 = vmatprep.subr.bf16.mxu0 0
        %4609 = vmatpush1.bf16.msra.mxu0 %v4585
        %4610 = vmatprep.subr.bf16.mxu0 0
        %4611 = vmatpush1.bf16.msra.mxu0 0
        %4612 = vmatprep.subr.bf16.mxu0 0
        %4613 = vmatpush1.bf16.msra.mxu0 0
        %4614 = vmatprep.subr.bf16.mxu0 0
        %4615 = vmatpush1.bf16.msra.mxu0 0
        %4616 = vmatprep.subr.bf16.mxu0 0
        %4617 = vmatpush1.bf16.msra.mxu0 0
        %4618 = vmatprep.subr.bf16.mxu0 0
        %4619 = vmatpush1.bf16.msra.mxu0 0
        %4620 = vmatprep.subr.bf16.mxu0 0
        %4621 = vmatpush1.bf16.msra.mxu0 0
        %4622 = vmatprep.subr.bf16.mxu0 0
        %4623 = vmatpush1.bf16.msra.mxu0 0
        %4624 = vmatprep.subr.bf16.mxu0 0
        %4625 = vmatpush1.bf16.msra.mxu0 0
        %4626 = vmatprep.mubr.bf16.mxu0 0
        %4627 = vmatmul.mubr.bf16.gmra.mrb[0].mxu0 %v4481
        %v4628 = vpop.f32.mrb[0].mxu0
        %v4629 = vadd.f32 0.0, %v4628
        %v4630 = vpop.f32.mrb[0].mxu0
        %v4631 = vpop.f32.mrb[0].mxu0
        %v4632 = vadd.f32 0.0, %v4631
        %v4633 = vpop.f32.mrb[0].mxu0
        %4634 = vmatprep.mubr.bf16.mxu0 0
        %4635 = vmatmul.mubr.bf16.gmra.mrb[0].mxu0 %v4489
        %v4636 = vpop.f32.mrb[0].mxu0
        %v4637 = vadd.f32 0.0, %v4636
        %v4638 = vpop.f32.mrb[0].mxu0
        %v4639 = vpop.f32.mrb[0].mxu0
        %v4640 = vadd.f32 0.0, %v4639
        %v4641 = vpop.f32.mrb[0].mxu0
        %4642 = vmatprep.mubr.bf16.mxu0 0
        %4643 = vmatmul.mubr.bf16.gmra.mrb[0].mxu0 %v4497
        %v4644 = vpop.f32.mrb[0].mxu0
        %v4645 = vadd.f32 0.0, %v4644
        %v4646 = vpop.f32.mrb[0].mxu0
        %v4647 = vpop.f32.mrb[0].mxu0
        %v4648 = vadd.f32 0.0, %v4647
        %v4649 = vpop.f32.mrb[0].mxu0
        %4650 = vmatprep.mubr.bf16.mxu0 0
        %4651 = vmatmul.mubr.bf16.gmra.mrb[0].mxu0 %v4505
        %v4652 = vpop.f32.mrb[0].mxu0
        %v4653 = vadd.f32 0.0, %v4652
        %v4654 = vpop.f32.mrb[0].mxu0
        %v4655 = vpop.f32.mrb[0].mxu0
        %v4656 = vadd.f32 0.0, %v4655
        %v4657 = vpop.f32.mrb[0].mxu0
        %4658 = vmatprep.mubr.bf16.mxu0 0
        %4659 = vmatmul.mubr.bf16.gmra.mrb[0].mxu0 %v4513
        %v4660 = vpop.f32.mrb[0].mxu0
        %v4661 = vadd.f32 0.0, %v4660
        %v4662 = vpop.f32.mrb[0].mxu0
        %v4663 = vpop.f32.mrb[0].mxu0
        %v4664 = vadd.f32 0.0, %v4663
        %v4665 = vpop.f32.mrb[0].mxu0
        %4666 = vmatprep.mubr.bf16.mxu0 0
        %4667 = vmatmul.mubr.bf16.gmra.mrb[0].mxu0 %v4521
        %v4668 = vpop.f32.mrb[0].mxu0
        %v4669 = vadd.f32 0.0, %v4668
        %v4670 = vpop.f32.mrb[0].mxu0
        %v4671 = vpop.f32.mrb[0].mxu0
        %v4672 = vadd.f32 0.0, %v4671
        %v4673 = vpop.f32.mrb[0].mxu0
        %4674 = vmatprep.mubr.bf16.mxu0 0
        %4675 = vmatmul.mubr.bf16.gmra.mrb[0].mxu0 %v4529
        %v4676 = vpop.f32.mrb[0].mxu0
        %v4677 = vadd.f32 0.0, %v4676
        %v4678 = vpop.f32.mrb[0].mxu0
        %v4679 = vpop.f32.mrb[0].mxu0
        %v4680 = vadd.f32 0.0, %v4679
        %v4681 = vpop.f32.mrb[0].mxu0
        %4682 = vmatprep.mubr.bf16.mxu0 0
        %4683 = vmatmul.mubr.bf16.gmra.mrb[0].mxu0 %v4537
        %v4684 = vpop.f32.mrb[0].mxu0
        %v4685 = vadd.f32 0.0, %v4684
        %v4686 = vpop.f32.mrb[0].mxu0
        %v4687 = vpop.f32.mrb[0].mxu0
        %v4688 = vadd.f32 0.0, %v4687
        %v4689 = vpop.f32.mrb[0].mxu0
        %4690 = vdwg.mxu0
        %v4691 = vadd.f32 %v4428, %v4629
        %v4692 = vadd.f32 %v4429, %v4632
        %v4693 = vadd.f32 %v4430, %v4637
        %v4694 = vadd.f32 %v4431, %v4640
        %v4695 = vadd.f32 %v4432, %v4645
        %v4696 = vadd.f32 %v4433, %v4648
        %v4697 = vadd.f32 %v4434, %v4653
        %v4698 = vadd.f32 %v4435, %v4656
        %v4699 = vadd.f32 %v4436, %v4661
        %v4700 = vadd.f32 %v4437, %v4664
        %v4701 = vadd.f32 %v4438, %v4669
        %v4702 = vadd.f32 %v4439, %v4672
        %v4703 = vadd.f32 %v4440, %v4677
        %v4704 = vadd.f32 %v4441, %v4680
        %v4705 = vadd.f32 %v4442, %v4685
        %v4706 = vadd.f32 %v4443, %v4688
        %s4707 = scalar_lea.vmem [#allocation9], 256
        %v4708 = vld [vmem:[%s4707] sm:$0xf]
        %v4709 = vld [vmem:[%s4707 + $0x4] sm:$0xf]
        %v4710 = vld [vmem:[%s4707 + $0x8] sm:$0xf]
        %v4711 = vld [vmem:[%s4707 + $0xc] sm:$0xf]
        %v4712 = vld [vmem:[%s4707 + $0x10] sm:$0xf]
        %v4713 = vld [vmem:[%s4707 + $0x14] sm:$0xf]
        %v4714 = vld [vmem:[%s4707 + $0x18] sm:$0xf]
        %v4715 = vld [vmem:[%s4707 + $0x1c] sm:$0xf]
        %v4716 = vld [vmem:[%s4707 + $0x20] sm:$0xf]
        %v4717 = vld [vmem:[%s4707 + $0x24] sm:$0xf]
        %v4718 = vld [vmem:[%s4707 + $0x28] sm:$0xf]
        %v4719 = vld [vmem:[%s4707 + $0x2c] sm:$0xf]
        %v4720 = vld [vmem:[%s4707 + $0x30] sm:$0xf]
        %v4721 = vld [vmem:[%s4707 + $0x34] sm:$0xf]
        %v4722 = vld [vmem:[%s4707 + $0x38] sm:$0xf]
        %v4723 = vld [vmem:[%s4707 + $0x3c] sm:$0xf]
        %v4740 = vunpack.c.l.b16 %v4708
        %v4741 = vunpack.c.l.b16 %v4709
        %v4742 = vunpack.c.l.b16 %v4710
        %v4743 = vunpack.c.l.b16 %v4711
        %v4744 = vunpack.c.l.b16 %v4712
        %v4745 = vunpack.c.l.b16 %v4713
        %v4746 = vunpack.c.l.b16 %v4714
        %v4747 = vunpack.c.l.b16 %v4715
        %v4748 = vunpack.c.l.b16 %v4716
        %v4749 = vunpack.c.l.b16 %v4717
        %v4750 = vunpack.c.l.b16 %v4718
        %v4751 = vunpack.c.l.b16 %v4719
        %v4752 = vunpack.c.l.b16 %v4720
        %v4753 = vunpack.c.l.b16 %v4721
        %v4754 = vunpack.c.l.b16 %v4722
        %v4755 = vunpack.c.l.b16 %v4723
        %v4756 = vpack.c.b16 %v4741, %v4740
        %v4757 = vpack.c.b16 %v4743, %v4742
        %v4758 = vpack.c.b16 %v4745, %v4744
        %v4759 = vpack.c.b16 %v4747, %v4746
        %v4760 = vpack.c.b16 %v4749, %v4748
        %v4761 = vpack.c.b16 %v4751, %v4750
        %v4762 = vpack.c.b16 %v4753, %v4752
        %v4763 = vpack.c.b16 %v4755, %v4754
        %4772 = vmatprep.subr.bf16.mxu0 0
        %4773 = vmatpush1.bf16.msra.mxu0 %v4756
        %4774 = vmatprep.subr.bf16.mxu0 0
        %4775 = vmatpush1.bf16.msra.mxu0 %v4757
        %4776 = vmatprep.subr.bf16.mxu0 0
        %4777 = vmatpush1.bf16.msra.mxu0 %v4758
        %4778 = vmatprep.subr.bf16.mxu0 0
        %4779 = vmatpush1.bf16.msra.mxu0 %v4759
        %4780 = vmatprep.subr.bf16.mxu0 0
        %4781 = vmatpush1.bf16.msra.mxu0 %v4760
        %4782 = vmatprep.subr.bf16.mxu0 0
        %4783 = vmatpush1.bf16.msra.mxu0 %v4761
        %4784 = vmatprep.subr.bf16.mxu0 0
        %4785 = vmatpush1.bf16.msra.mxu0 %v4762
        %4786 = vmatprep.subr.bf16.mxu0 0
        %4787 = vmatpush1.bf16.msra.mxu0 %v4763
        %4788 = vmatprep.subr.bf16.mxu0 0
        %4789 = vmatpush1.bf16.msra.mxu0 0
        %4790 = vmatprep.subr.bf16.mxu0 0
        %4791 = vmatpush1.bf16.msra.mxu0 0
        %4792 = vmatprep.subr.bf16.mxu0 0
        %4793 = vmatpush1.bf16.msra.mxu0 0
        %4794 = vmatprep.subr.bf16.mxu0 0
        %4795 = vmatpush1.bf16.msra.mxu0 0
        %4796 = vmatprep.subr.bf16.mxu0 0
        %4797 = vmatpush1.bf16.msra.mxu0 0
        %4798 = vmatprep.subr.bf16.mxu0 0
        %4799 = vmatpush1.bf16.msra.mxu0 0
        %4800 = vmatprep.subr.bf16.mxu0 0
        %4801 = vmatpush1.bf16.msra.mxu0 0
        %4802 = vmatprep.subr.bf16.mxu0 0
        %4803 = vmatpush1.bf16.msra.mxu0 0
        %4804 = vmatprep.mubr.bf16.mxu0 0
        %4805 = vmatmul.mubr.bf16.gmra.mrb[0].mxu0 %v4445
        %v4806 = vpop.f32.mrb[0].mxu0
        %v4807 = vadd.f32 0.0, %v4806
        %v4808 = vpop.f32.mrb[0].mxu0
        %v4809 = vpop.f32.mrb[0].mxu0
        %v4810 = vadd.f32 0.0, %v4809
        %v4811 = vpop.f32.mrb[0].mxu0
        %4812 = vmatprep.mubr.bf16.mxu0 0
        %4813 = vmatmul.mubr.bf16.gmra.mrb[0].mxu0 %v4446
        %v4814 = vpop.f32.mrb[0].mxu0
        %v4815 = vadd.f32 0.0, %v4814
        %v4816 = vpop.f32.mrb[0].mxu0
        %v4817 = vpop.f32.mrb[0].mxu0
        %v4818 = vadd.f32 0.0, %v4817
        %v4819 = vpop.f32.mrb[0].mxu0
        %4820 = vmatprep.mubr.bf16.mxu0 0
        %4821 = vmatmul.mubr.bf16.gmra.mrb[0].mxu0 %v4447
        %v4822 = vpop.f32.mrb[0].mxu0
        %v4823 = vadd.f32 0.0, %v4822
        %v4824 = vpop.f32.mrb[0].mxu0
        %v4825 = vpop.f32.mrb[0].mxu0
        %v4826 = vadd.f32 0.0, %v4825
        %v4827 = vpop.f32.mrb[0].mxu0
        %4828 = vmatprep.mubr.bf16.mxu0 0
        %4829 = vmatmul.mubr.bf16.gmra.mrb[0].mxu0 %v4448
        %v4830 = vpop.f32.mrb[0].mxu0
        %v4831 = vadd.f32 0.0, %v4830
        %v4832 = vpop.f32.mrb[0].mxu0
        %v4833 = vpop.f32.mrb[0].mxu0
        %v4834 = vadd.f32 0.0, %v4833
        %v4835 = vpop.f32.mrb[0].mxu0
        %4836 = vmatprep.mubr.bf16.mxu0 0
        %4837 = vmatmul.mubr.bf16.gmra.mrb[0].mxu0 %v4449
        %v4838 = vpop.f32.mrb[0].mxu0
        %v4839 = vadd.f32 0.0, %v4838
        %v4840 = vpop.f32.mrb[0].mxu0
        %v4841 = vpop.f32.mrb[0].mxu0
        %v4842 = vadd.f32 0.0, %v4841
        %v4843 = vpop.f32.mrb[0].mxu0
        %4844 = vmatprep.mubr.bf16.mxu0 0
        %4845 = vmatmul.mubr.bf16.gmra.mrb[0].mxu0 %v4450
        %v4846 = vpop.f32.mrb[0].mxu0
        %v4847 = vadd.f32 0.0, %v4846
        %v4848 = vpop.f32.mrb[0].mxu0
        %v4849 = vpop.f32.mrb[0].mxu0
        %v4850 = vadd.f32 0.0, %v4849
        %v4851 = vpop.f32.mrb[0].mxu0
        %4852 = vmatprep.mubr.bf16.mxu0 0
        %4853 = vmatmul.mubr.bf16.gmra.mrb[0].mxu0 %v4451
        %v4854 = vpop.f32.mrb[0].mxu0
        %v4855 = vadd.f32 0.0, %v4854
        %v4856 = vpop.f32.mrb[0].mxu0
        %v4857 = vpop.f32.mrb[0].mxu0
        %v4858 = vadd.f32 0.0, %v4857
        %v4859 = vpop.f32.mrb[0].mxu0
        %4860 = vmatprep.mubr.bf16.mxu0 0
        %4861 = vmatmul.mubr.bf16.gmra.mrb[0].mxu0 %v4452
        %v4862 = vpop.f32.mrb[0].mxu0
        %v4863 = vadd.f32 0.0, %v4862
        %v4864 = vpop.f32.mrb[0].mxu0
        %v4865 = vpop.f32.mrb[0].mxu0
        %v4866 = vadd.f32 0.0, %v4865
        %v4867 = vpop.f32.mrb[0].mxu0
        %4868 = vdwg.mxu0
        %v4869 = vadd.f32 %v4691, %v4807
        %v4870 = vadd.f32 %v4692, %v4810
        %v4871 = vadd.f32 %v4693, %v4815
        %v4872 = vadd.f32 %v4694, %v4818
        %v4873 = vadd.f32 %v4695, %v4823
        %v4874 = vadd.f32 %v4696, %v4826
        %v4875 = vadd.f32 %v4697, %v4831
        %v4876 = vadd.f32 %v4698, %v4834
        %v4877 = vadd.f32 %v4699, %v4839
        %v4878 = vadd.f32 %v4700, %v4842
        %v4879 = vadd.f32 %v4701, %v4847
        %v4880 = vadd.f32 %v4702, %v4850
        %v4881 = vadd.f32 %v4703, %v4855
        %v4882 = vadd.f32 %v4704, %v4858
        %v4883 = vadd.f32 %v4705, %v4863
        %v4884 = vadd.f32 %v4706, %v4866
        %v4885 = vld [vmem:[#allocation3 + $0x18] sm:$0xff]
        %v4886 = vld [vmem:[#allocation3 + $0x20] sm:$0xff]
        %v4887 = vld [vmem:[#allocation3 + $0x28] sm:$0xff]
        %v4888 = vld [vmem:[#allocation3 + $0x30] sm:$0xff]
        %v4889 = vld [vmem:[#allocation3 + $0x38] sm:$0xff]
        %v4890 = vld [vmem:[#allocation3 + $0x40] sm:$0xff]
        %v4891 = vld [vmem:[#allocation3 + $0x48] sm:$0xff]
        %v4892 = vld [vmem:[#allocation3 + $0x50] sm:$0xff]
        %v4893 = vld [vmem:[#allocation3 + $0x58] sm:$0x1]
        %s4894 = scalar_lea.vmem [#allocation9], 320
        %v4895 = vld [vmem:[%s4894] sm:$0xf]
        %v4896 = vld [vmem:[%s4894 + $0x4] sm:$0xf]
        %v4897 = vld [vmem:[%s4894 + $0x8] sm:$0xf]
        %v4898 = vld [vmem:[%s4894 + $0xc] sm:$0xf]
        %v4899 = vld [vmem:[%s4894 + $0x10] sm:$0xf]
        %v4900 = vld [vmem:[%s4894 + $0x14] sm:$0xf]
        %v4901 = vld [vmem:[%s4894 + $0x18] sm:$0xf]
        %v4902 = vld [vmem:[%s4894 + $0x1c] sm:$0xf]
        %v4903 = vld [vmem:[%s4894 + $0x20] sm:$0xf]
        %v4904 = vld [vmem:[%s4894 + $0x24] sm:$0xf]
        %v4905 = vld [vmem:[%s4894 + $0x28] sm:$0xf]
        %v4906 = vld [vmem:[%s4894 + $0x2c] sm:$0xf]
        %v4907 = vld [vmem:[%s4894 + $0x30] sm:$0xf]
        %v4908 = vld [vmem:[%s4894 + $0x34] sm:$0xf]
        %v4909 = vld [vmem:[%s4894 + $0x38] sm:$0xf]
        %v4910 = vld [vmem:[%s4894 + $0x3c] sm:$0xf]
        %v4912 = vshrl.u32 %v4885, 16
        %v4914 = vshll.u32 %v4885, 16
        %v4916 = vrot.slane %v4914, 1
        %v4917 = vor.u32 %v4912, %v4916
        %v4919 = vshll.u32 %v4886, 16
        %v4921 = vrot.slane %v4919, 1
        %v4922 = vsel %vm1070, %v4917, %v4921
        %v4923 = vshrl.u32 %v4886, 16
        %v4925 = vor.u32 %v4923, %v4921
        %v4927 = vshll.u32 %v4887, 16
        %v4929 = vrot.slane %v4927, 1
        %v4930 = vsel %vm1070, %v4925, %v4929
        %v4931 = vshrl.u32 %v4887, 16
        %v4933 = vor.u32 %v4931, %v4929
        %v4935 = vshll.u32 %v4888, 16
        %v4937 = vrot.slane %v4935, 1
        %v4938 = vsel %vm1070, %v4933, %v4937
        %v4939 = vshrl.u32 %v4888, 16
        %v4941 = vor.u32 %v4939, %v4937
        %v4943 = vshll.u32 %v4889, 16
        %v4945 = vrot.slane %v4943, 1
        %v4946 = vsel %vm1070, %v4941, %v4945
        %v4947 = vshrl.u32 %v4889, 16
        %v4949 = vor.u32 %v4947, %v4945
        %v4951 = vshll.u32 %v4890, 16
        %v4953 = vrot.slane %v4951, 1
        %v4954 = vsel %vm1070, %v4949, %v4953
        %v4955 = vshrl.u32 %v4890, 16
        %v4957 = vor.u32 %v4955, %v4953
        %v4959 = vshll.u32 %v4891, 16
        %v4961 = vrot.slane %v4959, 1
        %v4962 = vsel %vm1070, %v4957, %v4961
        %v4963 = vshrl.u32 %v4891, 16
        %v4965 = vor.u32 %v4963, %v4961
        %v4967 = vshll.u32 %v4892, 16
        %v4969 = vrot.slane %v4967, 1
        %v4970 = vsel %vm1070, %v4965, %v4969
        %v4971 = vshrl.u32 %v4892, 16
        %v4973 = vor.u32 %v4971, %v4969
        %v4975 = vshll.u32 %v4893, 16
        %v4977 = vrot.slane %v4975, 1
        %v4978 = vsel %vm1070, %v4973, %v4977
        %v5003 = vunpack.c.l.b16 %v4895
        %v5004 = vunpack.c.l.b16 %v4896
        %v5005 = vunpack.c.l.b16 %v4897
        %v5006 = vunpack.c.l.b16 %v4898
        %v5007 = vunpack.c.l.b16 %v4899
        %v5008 = vunpack.c.l.b16 %v4900
        %v5009 = vunpack.c.l.b16 %v4901
        %v5010 = vunpack.c.l.b16 %v4902
        %v5011 = vunpack.c.l.b16 %v4903
        %v5012 = vunpack.c.l.b16 %v4904
        %v5013 = vunpack.c.l.b16 %v4905
        %v5014 = vunpack.c.l.b16 %v4906
        %v5015 = vunpack.c.l.b16 %v4907
        %v5016 = vunpack.c.l.b16 %v4908
        %v5017 = vunpack.c.l.b16 %v4909
        %v5018 = vunpack.c.l.b16 %v4910
        %v5019 = vpack.c.b16 %v5004, %v5003
        %v5020 = vpack.c.b16 %v5006, %v5005
        %v5021 = vpack.c.b16 %v5008, %v5007
        %v5022 = vpack.c.b16 %v5010, %v5009
        %v5023 = vpack.c.b16 %v5012, %v5011
        %v5024 = vpack.c.b16 %v5014, %v5013
        %v5025 = vpack.c.b16 %v5016, %v5015
        %v5026 = vpack.c.b16 %v5018, %v5017
        %5035 = vmatprep.subr.bf16.mxu0 0
        %5036 = vmatpush1.bf16.msra.mxu0 %v5019
        %5037 = vmatprep.subr.bf16.mxu0 0
        %5038 = vmatpush1.bf16.msra.mxu0 %v5020
        %5039 = vmatprep.subr.bf16.mxu0 0
        %5040 = vmatpush1.bf16.msra.mxu0 %v5021
        %5041 = vmatprep.subr.bf16.mxu0 0
        %5042 = vmatpush1.bf16.msra.mxu0 %v5022
        %5043 = vmatprep.subr.bf16.mxu0 0
        %5044 = vmatpush1.bf16.msra.mxu0 %v5023
        %5045 = vmatprep.subr.bf16.mxu0 0
        %5046 = vmatpush1.bf16.msra.mxu0 %v5024
        %5047 = vmatprep.subr.bf16.mxu0 0
        %5048 = vmatpush1.bf16.msra.mxu0 %v5025
        %5049 = vmatprep.subr.bf16.mxu0 0
        %5050 = vmatpush1.bf16.msra.mxu0 %v5026
        %5051 = vmatprep.subr.bf16.mxu0 0
        %5052 = vmatpush1.bf16.msra.mxu0 0
        %5053 = vmatprep.subr.bf16.mxu0 0
        %5054 = vmatpush1.bf16.msra.mxu0 0
        %5055 = vmatprep.subr.bf16.mxu0 0
        %5056 = vmatpush1.bf16.msra.mxu0 0
        %5057 = vmatprep.subr.bf16.mxu0 0
        %5058 = vmatpush1.bf16.msra.mxu0 0
        %5059 = vmatprep.subr.bf16.mxu0 0
        %5060 = vmatpush1.bf16.msra.mxu0 0
        %5061 = vmatprep.subr.bf16.mxu0 0
        %5062 = vmatpush1.bf16.msra.mxu0 0
        %5063 = vmatprep.subr.bf16.mxu0 0
        %5064 = vmatpush1.bf16.msra.mxu0 0
        %5065 = vmatprep.subr.bf16.mxu0 0
        %5066 = vmatpush1.bf16.msra.mxu0 0
        %5067 = vmatprep.mubr.bf16.mxu0 0
        %5068 = vmatmul.mubr.bf16.gmra.mrb[0].mxu0 %v4922
        %v5069 = vpop.f32.mrb[0].mxu0
        %v5070 = vadd.f32 0.0, %v5069
        %v5071 = vpop.f32.mrb[0].mxu0
        %v5072 = vpop.f32.mrb[0].mxu0
        %v5073 = vadd.f32 0.0, %v5072
        %v5074 = vpop.f32.mrb[0].mxu0
        %5075 = vmatprep.mubr.bf16.mxu0 0
        %5076 = vmatmul.mubr.bf16.gmra.mrb[0].mxu0 %v4930
        %v5077 = vpop.f32.mrb[0].mxu0
        %v5078 = vadd.f32 0.0, %v5077
        %v5079 = vpop.f32.mrb[0].mxu0
        %v5080 = vpop.f32.mrb[0].mxu0
        %v5081 = vadd.f32 0.0, %v5080
        %v5082 = vpop.f32.mrb[0].mxu0
        %5083 = vmatprep.mubr.bf16.mxu0 0
        %5084 = vmatmul.mubr.bf16.gmra.mrb[0].mxu0 %v4938
        %v5085 = vpop.f32.mrb[0].mxu0
        %v5086 = vadd.f32 0.0, %v5085
        %v5087 = vpop.f32.mrb[0].mxu0
        %v5088 = vpop.f32.mrb[0].mxu0
        %v5089 = vadd.f32 0.0, %v5088
        %v5090 = vpop.f32.mrb[0].mxu0
        %5091 = vmatprep.mubr.bf16.mxu0 0
        %5092 = vmatmul.mubr.bf16.gmra.mrb[0].mxu0 %v4946
        %v5093 = vpop.f32.mrb[0].mxu0
        %v5094 = vadd.f32 0.0, %v5093
        %v5095 = vpop.f32.mrb[0].mxu0
        %v5096 = vpop.f32.mrb[0].mxu0
        %v5097 = vadd.f32 0.0, %v5096
        %v5098 = vpop.f32.mrb[0].mxu0
        %5099 = vmatprep.mubr.bf16.mxu0 0
        %5100 = vmatmul.mubr.bf16.gmra.mrb[0].mxu0 %v4954
        %v5101 = vpop.f32.mrb[0].mxu0
        %v5102 = vadd.f32 0.0, %v5101
        %v5103 = vpop.f32.mrb[0].mxu0
        %v5104 = vpop.f32.mrb[0].mxu0
        %v5105 = vadd.f32 0.0, %v5104
        %v5106 = vpop.f32.mrb[0].mxu0
        %5107 = vmatprep.mubr.bf16.mxu0 0
        %5108 = vmatmul.mubr.bf16.gmra.mrb[0].mxu0 %v4962
        %v5109 = vpop.f32.mrb[0].mxu0
        %v5110 = vadd.f32 0.0, %v5109
        %v5111 = vpop.f32.mrb[0].mxu0
        %v5112 = vpop.f32.mrb[0].mxu0
        %v5113 = vadd.f32 0.0, %v5112
        %v5114 = vpop.f32.mrb[0].mxu0
        %5115 = vmatprep.mubr.bf16.mxu0 0
        %5116 = vmatmul.mubr.bf16.gmra.mrb[0].mxu0 %v4970
        %v5117 = vpop.f32.mrb[0].mxu0
        %v5118 = vadd.f32 0.0, %v5117
        %v5119 = vpop.f32.mrb[0].mxu0
        %v5120 = vpop.f32.mrb[0].mxu0
        %v5121 = vadd.f32 0.0, %v5120
        %v5122 = vpop.f32.mrb[0].mxu0
        %5123 = vmatprep.mubr.bf16.mxu0 0
        %5124 = vmatmul.mubr.bf16.gmra.mrb[0].mxu0 %v4978
        %v5125 = vpop.f32.mrb[0].mxu0
        %v5126 = vadd.f32 0.0, %v5125
        %v5127 = vpop.f32.mrb[0].mxu0
        %v5128 = vpop.f32.mrb[0].mxu0
        %v5129 = vadd.f32 0.0, %v5128
        %v5130 = vpop.f32.mrb[0].mxu0
        %5131 = vdwg.mxu0
        %v5132 = vadd.f32 %v4869, %v5070
        %v5133 = vadd.f32 %v4870, %v5073
        %v5134 = vadd.f32 %v4871, %v5078
        %v5135 = vadd.f32 %v4872, %v5081
        %v5136 = vadd.f32 %v4873, %v5086
        %v5137 = vadd.f32 %v4874, %v5089
        %v5138 = vadd.f32 %v4875, %v5094
        %v5139 = vadd.f32 %v4876, %v5097
        %v5140 = vadd.f32 %v4877, %v5102
        %v5141 = vadd.f32 %v4878, %v5105
        %v5142 = vadd.f32 %v4879, %v5110
        %v5143 = vadd.f32 %v4880, %v5113
        %v5144 = vadd.f32 %v4881, %v5118
        %v5145 = vadd.f32 %v4882, %v5121
        %v5146 = vadd.f32 %v4883, %v5126
        %v5147 = vadd.f32 %v4884, %v5129
        %v5148 = vld [vmem:[#allocation3 + $0x20] sm:$0x80]
        %v5149 = vld [vmem:[#allocation3 + $0x28] sm:$0xff]
        %v5150 = vld [vmem:[#allocation3 + $0x30] sm:$0xff]
        %v5151 = vld [vmem:[#allocation3 + $0x38] sm:$0xff]
        %v5152 = vld [vmem:[#allocation3 + $0x40] sm:$0xff]
        %v5153 = vld [vmem:[#allocation3 + $0x48] sm:$0xff]
        %v5154 = vld [vmem:[#allocation3 + $0x50] sm:$0xff]
        %v5155 = vld [vmem:[#allocation3 + $0x58] sm:$0xff]
        %v5156 = vld [vmem:[#allocation3 + $0x60] sm:$0xff]
        %s5157 = scalar_lea.vmem [#allocation9], 384
        %v5158 = vld [vmem:[%s5157] sm:$0xf]
        %v5159 = vld [vmem:[%s5157 + $0x4] sm:$0xf]
        %v5160 = vld [vmem:[%s5157 + $0x8] sm:$0xf]
        %v5161 = vld [vmem:[%s5157 + $0xc] sm:$0xf]
        %v5162 = vld [vmem:[%s5157 + $0x10] sm:$0xf]
        %v5163 = vld [vmem:[%s5157 + $0x14] sm:$0xf]
        %v5164 = vld [vmem:[%s5157 + $0x18] sm:$0xf]
        %v5165 = vld [vmem:[%s5157 + $0x1c] sm:$0xf]
        %v5166 = vld [vmem:[%s5157 + $0x20] sm:$0xf]
        %v5167 = vld [vmem:[%s5157 + $0x24] sm:$0xf]
        %v5168 = vld [vmem:[%s5157 + $0x28] sm:$0xf]
        %v5169 = vld [vmem:[%s5157 + $0x2c] sm:$0xf]
        %v5170 = vld [vmem:[%s5157 + $0x30] sm:$0xf]
        %v5171 = vld [vmem:[%s5157 + $0x34] sm:$0xf]
        %v5172 = vld [vmem:[%s5157 + $0x38] sm:$0xf]
        %v5173 = vld [vmem:[%s5157 + $0x3c] sm:$0xf]
        %v5175 = vshrl.u32 %v5148, 16
        %v5177 = vrot.slane %v5175, 7
        %v5179 = vshrl.u32 %v5149, 16
        %v5181 = vrot.slane %v5179, 7
        %v5182 = vshll.u32 %v5149, 16
        %v5184 = vor.u32 %v5181, %v5182
        %v5185 = vsel %vm750, %v5177, %v5184
        %v5187 = vshrl.u32 %v5150, 16
        %v5189 = vrot.slane %v5187, 7
        %v5190 = vshll.u32 %v5150, 16
        %v5192 = vor.u32 %v5189, %v5190
        %v5193 = vsel %vm750, %v5181, %v5192
        %v5195 = vshrl.u32 %v5151, 16
        %v5197 = vrot.slane %v5195, 7
        %v5198 = vshll.u32 %v5151, 16
        %v5200 = vor.u32 %v5197, %v5198
        %v5201 = vsel %vm750, %v5189, %v5200
        %v5203 = vshrl.u32 %v5152, 16
        %v5205 = vrot.slane %v5203, 7
        %v5206 = vshll.u32 %v5152, 16
        %v5208 = vor.u32 %v5205, %v5206
        %v5209 = vsel %vm750, %v5197, %v5208
        %v5211 = vshrl.u32 %v5153, 16
        %v5213 = vrot.slane %v5211, 7
        %v5214 = vshll.u32 %v5153, 16
        %v5216 = vor.u32 %v5213, %v5214
        %v5217 = vsel %vm750, %v5205, %v5216
        %v5219 = vshrl.u32 %v5154, 16
        %v5221 = vrot.slane %v5219, 7
        %v5222 = vshll.u32 %v5154, 16
        %v5224 = vor.u32 %v5221, %v5222
        %v5225 = vsel %vm750, %v5213, %v5224
        %v5227 = vshrl.u32 %v5155, 16
        %v5229 = vrot.slane %v5227, 7
        %v5230 = vshll.u32 %v5155, 16
        %v5232 = vor.u32 %v5229, %v5230
        %v5233 = vsel %vm750, %v5221, %v5232
        %v5235 = vshrl.u32 %v5156, 16
        %v5237 = vrot.slane %v5235, 7
        %v5238 = vshll.u32 %v5156, 16
        %v5240 = vor.u32 %v5237, %v5238
        %v5241 = vsel %vm750, %v5229, %v5240
        %v5266 = vunpack.c.l.b16 %v5158
        %v5267 = vunpack.c.l.b16 %v5159
        %v5268 = vunpack.c.l.b16 %v5160
        %v5269 = vunpack.c.l.b16 %v5161
        %v5270 = vunpack.c.l.b16 %v5162
        %v5271 = vunpack.c.l.b16 %v5163
        %v5272 = vunpack.c.l.b16 %v5164
        %v5273 = vunpack.c.l.b16 %v5165
        %v5274 = vunpack.c.l.b16 %v5166
        %v5275 = vunpack.c.l.b16 %v5167
        %v5276 = vunpack.c.l.b16 %v5168
        %v5277 = vunpack.c.l.b16 %v5169
        %v5278 = vunpack.c.l.b16 %v5170
        %v5279 = vunpack.c.l.b16 %v5171
        %v5280 = vunpack.c.l.b16 %v5172
        %v5281 = vunpack.c.l.b16 %v5173
        %v5282 = vpack.c.b16 %v5267, %v5266
        %v5283 = vpack.c.b16 %v5269, %v5268
        %v5284 = vpack.c.b16 %v5271, %v5270
        %v5285 = vpack.c.b16 %v5273, %v5272
        %v5286 = vpack.c.b16 %v5275, %v5274
        %v5287 = vpack.c.b16 %v5277, %v5276
        %v5288 = vpack.c.b16 %v5279, %v5278
        %v5289 = vpack.c.b16 %v5281, %v5280
        %5298 = vmatprep.subr.bf16.mxu0 0
        %5299 = vmatpush1.bf16.msra.mxu0 %v5282
        %5300 = vmatprep.subr.bf16.mxu0 0
        %5301 = vmatpush1.bf16.msra.mxu0 %v5283
        %5302 = vmatprep.subr.bf16.mxu0 0
        %5303 = vmatpush1.bf16.msra.mxu0 %v5284
        %5304 = vmatprep.subr.bf16.mxu0 0
        %5305 = vmatpush1.bf16.msra.mxu0 %v5285
        %5306 = vmatprep.subr.bf16.mxu0 0
        %5307 = vmatpush1.bf16.msra.mxu0 %v5286
        %5308 = vmatprep.subr.bf16.mxu0 0
        %5309 = vmatpush1.bf16.msra.mxu0 %v5287
        %5310 = vmatprep.subr.bf16.mxu0 0
        %5311 = vmatpush1.bf16.msra.mxu0 %v5288
        %5312 = vmatprep.subr.bf16.mxu0 0
        %5313 = vmatpush1.bf16.msra.mxu0 %v5289
        %5314 = vmatprep.subr.bf16.mxu0 0
        %5315 = vmatpush1.bf16.msra.mxu0 0
        %5316 = vmatprep.subr.bf16.mxu0 0
        %5317 = vmatpush1.bf16.msra.mxu0 0
        %5318 = vmatprep.subr.bf16.mxu0 0
        %5319 = vmatpush1.bf16.msra.mxu0 0
        %5320 = vmatprep.subr.bf16.mxu0 0
        %5321 = vmatpush1.bf16.msra.mxu0 0
        %5322 = vmatprep.subr.bf16.mxu0 0
        %5323 = vmatpush1.bf16.msra.mxu0 0
        %5324 = vmatprep.subr.bf16.mxu0 0
        %5325 = vmatpush1.bf16.msra.mxu0 0
        %5326 = vmatprep.subr.bf16.mxu0 0
        %5327 = vmatpush1.bf16.msra.mxu0 0
        %5328 = vmatprep.subr.bf16.mxu0 0
        %5329 = vmatpush1.bf16.msra.mxu0 0
        %5330 = vmatprep.mubr.bf16.mxu0 0
        %5331 = vmatmul.mubr.bf16.gmra.mrb[0].mxu0 %v5185
        %v5332 = vpop.f32.mrb[0].mxu0
        %v5333 = vadd.f32 0.0, %v5332
        %v5334 = vpop.f32.mrb[0].mxu0
        %v5335 = vpop.f32.mrb[0].mxu0
        %v5336 = vadd.f32 0.0, %v5335
        %v5337 = vpop.f32.mrb[0].mxu0
        %5338 = vmatprep.mubr.bf16.mxu0 0
        %5339 = vmatmul.mubr.bf16.gmra.mrb[0].mxu0 %v5193
        %v5340 = vpop.f32.mrb[0].mxu0
        %v5341 = vadd.f32 0.0, %v5340
        %v5342 = vpop.f32.mrb[0].mxu0
        %v5343 = vpop.f32.mrb[0].mxu0
        %v5344 = vadd.f32 0.0, %v5343
        %v5345 = vpop.f32.mrb[0].mxu0
        %5346 = vmatprep.mubr.bf16.mxu0 0
        %5347 = vmatmul.mubr.bf16.gmra.mrb[0].mxu0 %v5201
        %v5348 = vpop.f32.mrb[0].mxu0
        %v5349 = vadd.f32 0.0, %v5348
        %v5350 = vpop.f32.mrb[0].mxu0
        %v5351 = vpop.f32.mrb[0].mxu0
        %v5352 = vadd.f32 0.0, %v5351
        %v5353 = vpop.f32.mrb[0].mxu0
        %5354 = vmatprep.mubr.bf16.mxu0 0
        %5355 = vmatmul.mubr.bf16.gmra.mrb[0].mxu0 %v5209
        %v5356 = vpop.f32.mrb[0].mxu0
        %v5357 = vadd.f32 0.0, %v5356
        %v5358 = vpop.f32.mrb[0].mxu0
        %v5359 = vpop.f32.mrb[0].mxu0
        %v5360 = vadd.f32 0.0, %v5359
        %v5361 = vpop.f32.mrb[0].mxu0
        %5362 = vmatprep.mubr.bf16.mxu0 0
        %5363 = vmatmul.mubr.bf16.gmra.mrb[0].mxu0 %v5217
        %v5364 = vpop.f32.mrb[0].mxu0
        %v5365 = vadd.f32 0.0, %v5364
        %v5366 = vpop.f32.mrb[0].mxu0
        %v5367 = vpop.f32.mrb[0].mxu0
        %v5368 = vadd.f32 0.0, %v5367
        %v5369 = vpop.f32.mrb[0].mxu0
        %5370 = vmatprep.mubr.bf16.mxu0 0
        %5371 = vmatmul.mubr.bf16.gmra.mrb[0].mxu0 %v5225
        %v5372 = vpop.f32.mrb[0].mxu0
        %v5373 = vadd.f32 0.0, %v5372
        %v5374 = vpop.f32.mrb[0].mxu0
        %v5375 = vpop.f32.mrb[0].mxu0
        %v5376 = vadd.f32 0.0, %v5375
        %v5377 = vpop.f32.mrb[0].mxu0
        %5378 = vmatprep.mubr.bf16.mxu0 0
        %5379 = vmatmul.mubr.bf16.gmra.mrb[0].mxu0 %v5233
        %v5380 = vpop.f32.mrb[0].mxu0
        %v5381 = vadd.f32 0.0, %v5380
        %v5382 = vpop.f32.mrb[0].mxu0
        %v5383 = vpop.f32.mrb[0].mxu0
        %v5384 = vadd.f32 0.0, %v5383
        %v5385 = vpop.f32.mrb[0].mxu0
        %5386 = vmatprep.mubr.bf16.mxu0 0
        %5387 = vmatmul.mubr.bf16.gmra.mrb[0].mxu0 %v5241
        %v5388 = vpop.f32.mrb[0].mxu0
        %v5389 = vadd.f32 0.0, %v5388
        %v5390 = vpop.f32.mrb[0].mxu0
        %v5391 = vpop.f32.mrb[0].mxu0
        %v5392 = vadd.f32 0.0, %v5391
        %v5393 = vpop.f32.mrb[0].mxu0
        %5394 = vdwg.mxu0
        %v5395 = vadd.f32 %v5132, %v5333
        %v5396 = vadd.f32 %v5133, %v5336
        %v5397 = vadd.f32 %v5134, %v5341
        %v5398 = vadd.f32 %v5135, %v5344
        %v5399 = vadd.f32 %v5136, %v5349
        %v5400 = vadd.f32 %v5137, %v5352
        %v5401 = vadd.f32 %v5138, %v5357
        %v5402 = vadd.f32 %v5139, %v5360
        %v5403 = vadd.f32 %v5140, %v5365
        %v5404 = vadd.f32 %v5141, %v5368
        %v5405 = vadd.f32 %v5142, %v5373
        %v5406 = vadd.f32 %v5143, %v5376
        %v5407 = vadd.f32 %v5144, %v5381
        %v5408 = vadd.f32 %v5145, %v5384
        %v5409 = vadd.f32 %v5146, %v5389
        %v5410 = vadd.f32 %v5147, %v5392
        %s5411 = scalar_lea.vmem [#allocation9], 448
        %v5412 = vld [vmem:[%s5411] sm:$0xf]
        %v5413 = vld [vmem:[%s5411 + $0x4] sm:$0xf]
        %v5414 = vld [vmem:[%s5411 + $0x8] sm:$0xf]
        %v5415 = vld [vmem:[%s5411 + $0xc] sm:$0xf]
        %v5416 = vld [vmem:[%s5411 + $0x10] sm:$0xf]
        %v5417 = vld [vmem:[%s5411 + $0x14] sm:$0xf]
        %v5418 = vld [vmem:[%s5411 + $0x18] sm:$0xf]
        %v5419 = vld [vmem:[%s5411 + $0x1c] sm:$0xf]
        %v5420 = vld [vmem:[%s5411 + $0x20] sm:$0xf]
        %v5421 = vld [vmem:[%s5411 + $0x24] sm:$0xf]
        %v5422 = vld [vmem:[%s5411 + $0x28] sm:$0xf]
        %v5423 = vld [vmem:[%s5411 + $0x2c] sm:$0xf]
        %v5424 = vld [vmem:[%s5411 + $0x30] sm:$0xf]
        %v5425 = vld [vmem:[%s5411 + $0x34] sm:$0xf]
        %v5426 = vld [vmem:[%s5411 + $0x38] sm:$0xf]
        %v5427 = vld [vmem:[%s5411 + $0x3c] sm:$0xf]
        %v5444 = vunpack.c.l.b16 %v5412
        %v5445 = vunpack.c.l.b16 %v5413
        %v5446 = vunpack.c.l.b16 %v5414
        %v5447 = vunpack.c.l.b16 %v5415
        %v5448 = vunpack.c.l.b16 %v5416
        %v5449 = vunpack.c.l.b16 %v5417
        %v5450 = vunpack.c.l.b16 %v5418
        %v5451 = vunpack.c.l.b16 %v5419
        %v5452 = vunpack.c.l.b16 %v5420
        %v5453 = vunpack.c.l.b16 %v5421
        %v5454 = vunpack.c.l.b16 %v5422
        %v5455 = vunpack.c.l.b16 %v5423
        %v5456 = vunpack.c.l.b16 %v5424
        %v5457 = vunpack.c.l.b16 %v5425
        %v5458 = vunpack.c.l.b16 %v5426
        %v5459 = vunpack.c.l.b16 %v5427
        %v5460 = vpack.c.b16 %v5445, %v5444
        %v5461 = vpack.c.b16 %v5447, %v5446
        %v5462 = vpack.c.b16 %v5449, %v5448
        %v5463 = vpack.c.b16 %v5451, %v5450
        %v5464 = vpack.c.b16 %v5453, %v5452
        %v5465 = vpack.c.b16 %v5455, %v5454
        %v5466 = vpack.c.b16 %v5457, %v5456
        %v5467 = vpack.c.b16 %v5459, %v5458
        %5476 = vmatprep.subr.bf16.mxu0 0
        %5477 = vmatpush1.bf16.msra.mxu0 %v5460
        %5478 = vmatprep.subr.bf16.mxu0 0
        %5479 = vmatpush1.bf16.msra.mxu0 %v5461
        %5480 = vmatprep.subr.bf16.mxu0 0
        %5481 = vmatpush1.bf16.msra.mxu0 %v5462
        %5482 = vmatprep.subr.bf16.mxu0 0
        %5483 = vmatpush1.bf16.msra.mxu0 %v5463
        %5484 = vmatprep.subr.bf16.mxu0 0
        %5485 = vmatpush1.bf16.msra.mxu0 %v5464
        %5486 = vmatprep.subr.bf16.mxu0 0
        %5487 = vmatpush1.bf16.msra.mxu0 %v5465
        %5488 = vmatprep.subr.bf16.mxu0 0
        %5489 = vmatpush1.bf16.msra.mxu0 %v5466
        %5490 = vmatprep.subr.bf16.mxu0 0
        %5491 = vmatpush1.bf16.msra.mxu0 %v5467
        %5492 = vmatprep.subr.bf16.mxu0 0
        %5493 = vmatpush1.bf16.msra.mxu0 0
        %5494 = vmatprep.subr.bf16.mxu0 0
        %5495 = vmatpush1.bf16.msra.mxu0 0
        %5496 = vmatprep.subr.bf16.mxu0 0
        %5497 = vmatpush1.bf16.msra.mxu0 0
        %5498 = vmatprep.subr.bf16.mxu0 0
        %5499 = vmatpush1.bf16.msra.mxu0 0
        %5500 = vmatprep.subr.bf16.mxu0 0
        %5501 = vmatpush1.bf16.msra.mxu0 0
        %5502 = vmatprep.subr.bf16.mxu0 0
        %5503 = vmatpush1.bf16.msra.mxu0 0
        %5504 = vmatprep.subr.bf16.mxu0 0
        %5505 = vmatpush1.bf16.msra.mxu0 0
        %5506 = vmatprep.subr.bf16.mxu0 0
        %5507 = vmatpush1.bf16.msra.mxu0 0
        %5508 = vmatprep.mubr.bf16.mxu0 0
        %5509 = vmatmul.mubr.bf16.gmra.mrb[0].mxu0 %v5149
        %v5510 = vpop.f32.mrb[0].mxu0
        %v5511 = vadd.f32 0.0, %v5510
        %v5512 = vpop.f32.mrb[0].mxu0
        %v5513 = vpop.f32.mrb[0].mxu0
        %v5514 = vadd.f32 0.0, %v5513
        %v5515 = vpop.f32.mrb[0].mxu0
        %5516 = vmatprep.mubr.bf16.mxu0 0
        %5517 = vmatmul.mubr.bf16.gmra.mrb[0].mxu0 %v5150
        %v5518 = vpop.f32.mrb[0].mxu0
        %v5519 = vadd.f32 0.0, %v5518
        %v5520 = vpop.f32.mrb[0].mxu0
        %v5521 = vpop.f32.mrb[0].mxu0
        %v5522 = vadd.f32 0.0, %v5521
        %v5523 = vpop.f32.mrb[0].mxu0
        %5524 = vmatprep.mubr.bf16.mxu0 0
        %5525 = vmatmul.mubr.bf16.gmra.mrb[0].mxu0 %v5151
        %v5526 = vpop.f32.mrb[0].mxu0
        %v5527 = vadd.f32 0.0, %v5526
        %v5528 = vpop.f32.mrb[0].mxu0
        %v5529 = vpop.f32.mrb[0].mxu0
        %v5530 = vadd.f32 0.0, %v5529
        %v5531 = vpop.f32.mrb[0].mxu0
        %5532 = vmatprep.mubr.bf16.mxu0 0
        %5533 = vmatmul.mubr.bf16.gmra.mrb[0].mxu0 %v5152
        %v5534 = vpop.f32.mrb[0].mxu0
        %v5535 = vadd.f32 0.0, %v5534
        %v5536 = vpop.f32.mrb[0].mxu0
        %v5537 = vpop.f32.mrb[0].mxu0
        %v5538 = vadd.f32 0.0, %v5537
        %v5539 = vpop.f32.mrb[0].mxu0
        %5540 = vmatprep.mubr.bf16.mxu0 0
        %5541 = vmatmul.mubr.bf16.gmra.mrb[0].mxu0 %v5153
        %v5542 = vpop.f32.mrb[0].mxu0
        %v5543 = vadd.f32 0.0, %v5542
        %v5544 = vpop.f32.mrb[0].mxu0
        %v5545 = vpop.f32.mrb[0].mxu0
        %v5546 = vadd.f32 0.0, %v5545
        %v5547 = vpop.f32.mrb[0].mxu0
        %5548 = vmatprep.mubr.bf16.mxu0 0
        %5549 = vmatmul.mubr.bf16.gmra.mrb[0].mxu0 %v5154
        %v5550 = vpop.f32.mrb[0].mxu0
        %v5551 = vadd.f32 0.0, %v5550
        %v5552 = vpop.f32.mrb[0].mxu0
        %v5553 = vpop.f32.mrb[0].mxu0
        %v5554 = vadd.f32 0.0, %v5553
        %v5555 = vpop.f32.mrb[0].mxu0
        %5556 = vmatprep.mubr.bf16.mxu0 0
        %5557 = vmatmul.mubr.bf16.gmra.mrb[0].mxu0 %v5155
        %v5558 = vpop.f32.mrb[0].mxu0
        %v5559 = vadd.f32 0.0, %v5558
        %v5560 = vpop.f32.mrb[0].mxu0
        %v5561 = vpop.f32.mrb[0].mxu0
        %v5562 = vadd.f32 0.0, %v5561
        %v5563 = vpop.f32.mrb[0].mxu0
        %5564 = vmatprep.mubr.bf16.mxu0 0
        %5565 = vmatmul.mubr.bf16.gmra.mrb[0].mxu0 %v5156
        %v5566 = vpop.f32.mrb[0].mxu0
        %v5567 = vadd.f32 0.0, %v5566
        %v5568 = vpop.f32.mrb[0].mxu0
        %v5569 = vpop.f32.mrb[0].mxu0
        %v5570 = vadd.f32 0.0, %v5569
        %v5571 = vpop.f32.mrb[0].mxu0
        %5572 = vdwg.mxu0
        %v5573 = vadd.f32 %v5395, %v5511
        %v5574 = vadd.f32 %v5396, %v5514
        %v5575 = vadd.f32 %v5397, %v5519
        %v5576 = vadd.f32 %v5398, %v5522
        %v5577 = vadd.f32 %v5399, %v5527
        %v5578 = vadd.f32 %v5400, %v5530
        %v5579 = vadd.f32 %v5401, %v5535
        %v5580 = vadd.f32 %v5402, %v5538
        %v5581 = vadd.f32 %v5403, %v5543
        %v5582 = vadd.f32 %v5404, %v5546
        %v5583 = vadd.f32 %v5405, %v5551
        %v5584 = vadd.f32 %v5406, %v5554
        %v5585 = vadd.f32 %v5407, %v5559
        %v5586 = vadd.f32 %v5408, %v5562
        %v5587 = vadd.f32 %v5409, %v5567
        %v5588 = vadd.f32 %v5410, %v5570
        %v5589 = vld [vmem:[#allocation3 + $0x28] sm:$0xff]
        %v5590 = vld [vmem:[#allocation3 + $0x30] sm:$0xff]
        %v5591 = vld [vmem:[#allocation3 + $0x38] sm:$0xff]
        %v5592 = vld [vmem:[#allocation3 + $0x40] sm:$0xff]
        %v5593 = vld [vmem:[#allocation3 + $0x48] sm:$0xff]
        %v5594 = vld [vmem:[#allocation3 + $0x50] sm:$0xff]
        %v5595 = vld [vmem:[#allocation3 + $0x58] sm:$0xff]
        %v5596 = vld [vmem:[#allocation3 + $0x60] sm:$0xff]
        %v5597 = vld [vmem:[#allocation3 + $0x68] sm:$0x1]
        %s5598 = scalar_lea.vmem [#allocation9], 512
        %v5599 = vld [vmem:[%s5598] sm:$0xf]
        %v5600 = vld [vmem:[%s5598 + $0x4] sm:$0xf]
        %v5601 = vld [vmem:[%s5598 + $0x8] sm:$0xf]
        %v5602 = vld [vmem:[%s5598 + $0xc] sm:$0xf]
        %v5603 = vld [vmem:[%s5598 + $0x10] sm:$0xf]
        %v5604 = vld [vmem:[%s5598 + $0x14] sm:$0xf]
        %v5605 = vld [vmem:[%s5598 + $0x18] sm:$0xf]
        %v5606 = vld [vmem:[%s5598 + $0x1c] sm:$0xf]
        %v5607 = vld [vmem:[%s5598 + $0x20] sm:$0xf]
        %v5608 = vld [vmem:[%s5598 + $0x24] sm:$0xf]
        %v5609 = vld [vmem:[%s5598 + $0x28] sm:$0xf]
        %v5610 = vld [vmem:[%s5598 + $0x2c] sm:$0xf]
        %v5611 = vld [vmem:[%s5598 + $0x30] sm:$0xf]
        %v5612 = vld [vmem:[%s5598 + $0x34] sm:$0xf]
        %v5613 = vld [vmem:[%s5598 + $0x38] sm:$0xf]
        %v5614 = vld [vmem:[%s5598 + $0x3c] sm:$0xf]
        %v5616 = vshrl.u32 %v5589, 16
        %v5618 = vshll.u32 %v5589, 16
        %v5620 = vrot.slane %v5618, 1
        %v5621 = vor.u32 %v5616, %v5620
        %v5623 = vshll.u32 %v5590, 16
        %v5625 = vrot.slane %v5623, 1
        %v5626 = vsel %vm1070, %v5621, %v5625
        %v5627 = vshrl.u32 %v5590, 16
        %v5629 = vor.u32 %v5627, %v5625
        %v5631 = vshll.u32 %v5591, 16
        %v5633 = vrot.slane %v5631, 1
        %v5634 = vsel %vm1070, %v5629, %v5633
        %v5635 = vshrl.u32 %v5591, 16
        %v5637 = vor.u32 %v5635, %v5633
        %v5639 = vshll.u32 %v5592, 16
        %v5641 = vrot.slane %v5639, 1
        %v5642 = vsel %vm1070, %v5637, %v5641
        %v5643 = vshrl.u32 %v5592, 16
        %v5645 = vor.u32 %v5643, %v5641
        %v5647 = vshll.u32 %v5593, 16
        %v5649 = vrot.slane %v5647, 1
        %v5650 = vsel %vm1070, %v5645, %v5649
        %v5651 = vshrl.u32 %v5593, 16
        %v5653 = vor.u32 %v5651, %v5649
        %v5655 = vshll.u32 %v5594, 16
        %v5657 = vrot.slane %v5655, 1
        %v5658 = vsel %vm1070, %v5653, %v5657
        %v5659 = vshrl.u32 %v5594, 16
        %v5661 = vor.u32 %v5659, %v5657
        %v5663 = vshll.u32 %v5595, 16
        %v5665 = vrot.slane %v5663, 1
        %v5666 = vsel %vm1070, %v5661, %v5665
        %v5667 = vshrl.u32 %v5595, 16
        %v5669 = vor.u32 %v5667, %v5665
        %v5671 = vshll.u32 %v5596, 16
        %v5673 = vrot.slane %v5671, 1
        %v5674 = vsel %vm1070, %v5669, %v5673
        %v5675 = vshrl.u32 %v5596, 16
        %v5677 = vor.u32 %v5675, %v5673
        %v5679 = vshll.u32 %v5597, 16
        %v5681 = vrot.slane %v5679, 1
        %v5682 = vsel %vm1070, %v5677, %v5681
        %v5707 = vunpack.c.l.b16 %v5599
        %v5708 = vunpack.c.l.b16 %v5600
        %v5709 = vunpack.c.l.b16 %v5601
        %v5710 = vunpack.c.l.b16 %v5602
        %v5711 = vunpack.c.l.b16 %v5603
        %v5712 = vunpack.c.l.b16 %v5604
        %v5713 = vunpack.c.l.b16 %v5605
        %v5714 = vunpack.c.l.b16 %v5606
        %v5715 = vunpack.c.l.b16 %v5607
        %v5716 = vunpack.c.l.b16 %v5608
        %v5717 = vunpack.c.l.b16 %v5609
        %v5718 = vunpack.c.l.b16 %v5610
        %v5719 = vunpack.c.l.b16 %v5611
        %v5720 = vunpack.c.l.b16 %v5612
        %v5721 = vunpack.c.l.b16 %v5613
        %v5722 = vunpack.c.l.b16 %v5614
        %v5723 = vpack.c.b16 %v5708, %v5707
        %v5724 = vpack.c.b16 %v5710, %v5709
        %v5725 = vpack.c.b16 %v5712, %v5711
        %v5726 = vpack.c.b16 %v5714, %v5713
        %v5727 = vpack.c.b16 %v5716, %v5715
        %v5728 = vpack.c.b16 %v5718, %v5717
        %v5729 = vpack.c.b16 %v5720, %v5719
        %v5730 = vpack.c.b16 %v5722, %v5721
        %5739 = vmatprep.subr.bf16.mxu0 0
        %5740 = vmatpush1.bf16.msra.mxu0 %v5723
        %5741 = vmatprep.subr.bf16.mxu0 0
        %5742 = vmatpush1.bf16.msra.mxu0 %v5724
        %5743 = vmatprep.subr.bf16.mxu0 0
        %5744 = vmatpush1.bf16.msra.mxu0 %v5725
        %5745 = vmatprep.subr.bf16.mxu0 0
        %5746 = vmatpush1.bf16.msra.mxu0 %v5726
        %5747 = vmatprep.subr.bf16.mxu0 0
        %5748 = vmatpush1.bf16.msra.mxu0 %v5727
        %5749 = vmatprep.subr.bf16.mxu0 0
        %5750 = vmatpush1.bf16.msra.mxu0 %v5728
        %5751 = vmatprep.subr.bf16.mxu0 0
        %5752 = vmatpush1.bf16.msra.mxu0 %v5729
        %5753 = vmatprep.subr.bf16.mxu0 0
        %5754 = vmatpush1.bf16.msra.mxu0 %v5730
        %5755 = vmatprep.subr.bf16.mxu0 0
        %5756 = vmatpush1.bf16.msra.mxu0 0
        %5757 = vmatprep.subr.bf16.mxu0 0
        %5758 = vmatpush1.bf16.msra.mxu0 0
        %5759 = vmatprep.subr.bf16.mxu0 0
        %5760 = vmatpush1.bf16.msra.mxu0 0
        %5761 = vmatprep.subr.bf16.mxu0 0
        %5762 = vmatpush1.bf16.msra.mxu0 0
        %5763 = vmatprep.subr.bf16.mxu0 0
        %5764 = vmatpush1.bf16.msra.mxu0 0
        %5765 = vmatprep.subr.bf16.mxu0 0
        %5766 = vmatpush1.bf16.msra.mxu0 0
        %5767 = vmatprep.subr.bf16.mxu0 0
        %5768 = vmatpush1.bf16.msra.mxu0 0
        %5769 = vmatprep.subr.bf16.mxu0 0
        %5770 = vmatpush1.bf16.msra.mxu0 0
        %5771 = vmatprep.mubr.bf16.mxu0 0
        %5772 = vmatmul.mubr.bf16.gmra.mrb[0].mxu0 %v5626
        %v5773 = vpop.f32.mrb[0].mxu0
        %v5774 = vadd.f32 0.0, %v5773
        %v5775 = vpop.f32.mrb[0].mxu0
        %v5776 = vpop.f32.mrb[0].mxu0
        %v5777 = vadd.f32 0.0, %v5776
        %v5778 = vpop.f32.mrb[0].mxu0
        %5779 = vmatprep.mubr.bf16.mxu0 0
        %5780 = vmatmul.mubr.bf16.gmra.mrb[0].mxu0 %v5634
        %v5781 = vpop.f32.mrb[0].mxu0
        %v5782 = vadd.f32 0.0, %v5781
        %v5783 = vpop.f32.mrb[0].mxu0
        %v5784 = vpop.f32.mrb[0].mxu0
        %v5785 = vadd.f32 0.0, %v5784
        %v5786 = vpop.f32.mrb[0].mxu0
        %5787 = vmatprep.mubr.bf16.mxu0 0
        %5788 = vmatmul.mubr.bf16.gmra.mrb[0].mxu0 %v5642
        %v5789 = vpop.f32.mrb[0].mxu0
        %v5790 = vadd.f32 0.0, %v5789
        %v5791 = vpop.f32.mrb[0].mxu0
        %v5792 = vpop.f32.mrb[0].mxu0
        %v5793 = vadd.f32 0.0, %v5792
        %v5794 = vpop.f32.mrb[0].mxu0
        %5795 = vmatprep.mubr.bf16.mxu0 0
        %5796 = vmatmul.mubr.bf16.gmra.mrb[0].mxu0 %v5650
        %v5797 = vpop.f32.mrb[0].mxu0
        %v5798 = vadd.f32 0.0, %v5797
        %v5799 = vpop.f32.mrb[0].mxu0
        %v5800 = vpop.f32.mrb[0].mxu0
        %v5801 = vadd.f32 0.0, %v5800
        %v5802 = vpop.f32.mrb[0].mxu0
        %5803 = vmatprep.mubr.bf16.mxu0 0
        %5804 = vmatmul.mubr.bf16.gmra.mrb[0].mxu0 %v5658
        %v5805 = vpop.f32.mrb[0].mxu0
        %v5806 = vadd.f32 0.0, %v5805
        %v5807 = vpop.f32.mrb[0].mxu0
        %v5808 = vpop.f32.mrb[0].mxu0
        %v5809 = vadd.f32 0.0, %v5808
        %v5810 = vpop.f32.mrb[0].mxu0
        %5811 = vmatprep.mubr.bf16.mxu0 0
        %5812 = vmatmul.mubr.bf16.gmra.mrb[0].mxu0 %v5666
        %v5813 = vpop.f32.mrb[0].mxu0
        %v5814 = vadd.f32 0.0, %v5813
        %v5815 = vpop.f32.mrb[0].mxu0
        %v5816 = vpop.f32.mrb[0].mxu0
        %v5817 = vadd.f32 0.0, %v5816
        %v5818 = vpop.f32.mrb[0].mxu0
        %5819 = vmatprep.mubr.bf16.mxu0 0
        %5820 = vmatmul.mubr.bf16.gmra.mrb[0].mxu0 %v5674
        %v5821 = vpop.f32.mrb[0].mxu0
        %v5822 = vadd.f32 0.0, %v5821
        %v5823 = vpop.f32.mrb[0].mxu0
        %v5824 = vpop.f32.mrb[0].mxu0
        %v5825 = vadd.f32 0.0, %v5824
        %v5826 = vpop.f32.mrb[0].mxu0
        %5827 = vmatprep.mubr.bf16.mxu0 0
        %5828 = vmatmul.mubr.bf16.gmra.mrb[0].mxu0 %v5682
        %v5829 = vpop.f32.mrb[0].mxu0
        %v5830 = vadd.f32 0.0, %v5829
        %v5831 = vpop.f32.mrb[0].mxu0
        %v5832 = vpop.f32.mrb[0].mxu0
        %v5833 = vadd.f32 0.0, %v5832
        %v5834 = vpop.f32.mrb[0].mxu0
        %5835 = vdwg.mxu0
        %v5836 = vadd.f32 %v5573, %v5774
        %v5837 = vadd.f32 %v5574, %v5777
        %v5838 = vadd.f32 %v5575, %v5782
        %v5839 = vadd.f32 %v5576, %v5785
        %v5840 = vadd.f32 %v5577, %v5790
        %v5841 = vadd.f32 %v5578, %v5793
        %v5842 = vadd.f32 %v5579, %v5798
        %v5843 = vadd.f32 %v5580, %v5801
        %v5844 = vadd.f32 %v5581, %v5806
        %v5845 = vadd.f32 %v5582, %v5809
        %v5846 = vadd.f32 %v5583, %v5814
        %v5847 = vadd.f32 %v5584, %v5817
        %v5848 = vadd.f32 %v5585, %v5822
        %v5849 = vadd.f32 %v5586, %v5825
        %v5850 = vadd.f32 %v5587, %v5830
        %v5851 = vadd.f32 %v5588, %v5833
        %v5852 = vld [vmem:[%s5] sm:$0x1]
        %v5854 = vlaneseq
        %v5855 = vshrl.u32 %v5854, 7
        %v5856 = vsub.s32 0, %v5855
        %v5857 = vrot.slane %v5852, %v5856
        %v5859 = vmul.f32 %v5836, %v5857
        %v5860 = vmul.f32 %v5837, %v5857
        %v5861 = vmul.f32 %v5838, %v5857
        %v5862 = vmul.f32 %v5839, %v5857
        %v5863 = vmul.f32 %v5840, %v5857
        %v5864 = vmul.f32 %v5841, %v5857
        %v5865 = vmul.f32 %v5842, %v5857
        %v5866 = vmul.f32 %v5843, %v5857
        %v5867 = vmul.f32 %v5844, %v5857
        %v5868 = vmul.f32 %v5845, %v5857
        %v5869 = vmul.f32 %v5846, %v5857
        %v5870 = vmul.f32 %v5847, %v5857
        %v5871 = vmul.f32 %v5848, %v5857
        %v5872 = vmul.f32 %v5849, %v5857
        %v5873 = vmul.f32 %v5850, %v5857
        %v5874 = vmul.f32 %v5851, %v5857
        %v5875 = vld [vmem:[%s6] sm:$0x1]
        %v5877 = vlaneseq
        %v5878 = vshrl.u32 %v5877, 7
        %v5879 = vsub.s32 0, %v5878
        %v5880 = vrot.slane %v5875, %v5879
        %v5882 = vadd.f32 %v5859, %v5880
        %v5883 = vadd.f32 %v5860, %v5880
        %v5884 = vadd.f32 %v5861, %v5880
        %v5885 = vadd.f32 %v5862, %v5880
        %v5886 = vadd.f32 %v5863, %v5880
        %v5887 = vadd.f32 %v5864, %v5880
        %v5888 = vadd.f32 %v5865, %v5880
        %v5889 = vadd.f32 %v5866, %v5880
        %v5890 = vadd.f32 %v5867, %v5880
        %v5891 = vadd.f32 %v5868, %v5880
        %v5892 = vadd.f32 %v5869, %v5880
        %v5893 = vadd.f32 %v5870, %v5880
        %v5894 = vadd.f32 %v5871, %v5880
        %v5895 = vadd.f32 %v5872, %v5880
        %v5896 = vadd.f32 %v5873, %v5880
        %v5897 = vadd.f32 %v5874, %v5880
        %v5898 = vmax.f32 %v5882, 0.0
        %v5899 = vmax.f32 %v5883, 0.0
        %v5900 = vmax.f32 %v5884, 0.0
        %v5901 = vmax.f32 %v5885, 0.0
        %v5902 = vmax.f32 %v5886, 0.0
        %v5903 = vmax.f32 %v5887, 0.0
        %v5904 = vmax.f32 %v5888, 0.0
        %v5905 = vmax.f32 %v5889, 0.0
        %v5906 = vmax.f32 %v5890, 0.0
        %v5907 = vmax.f32 %v5891, 0.0
        %v5908 = vmax.f32 %v5892, 0.0
        %v5909 = vmax.f32 %v5893, 0.0
        %v5910 = vmax.f32 %v5894, 0.0
        %v5911 = vmax.f32 %v5895, 0.0
        %v5912 = vmax.f32 %v5896, 0.0
        %v5913 = vmax.f32 %v5897, 0.0
        %v5914 = vpack.c.bf16 %v5899, %v5898
        %v5915 = vpack.c.bf16 %v5901, %v5900
        %v5916 = vpack.c.bf16 %v5903, %v5902
        %v5917 = vpack.c.bf16 %v5905, %v5904
        %v5918 = vpack.c.bf16 %v5907, %v5906
        %v5919 = vpack.c.bf16 %v5909, %v5908
        %v5920 = vpack.c.bf16 %v5911, %v5910
        %v5921 = vpack.c.bf16 %v5913, %v5912
        %v5930 = vunpack.c.l.b16 %v5914
        %v5931 = vunpack.c.h.b16 %v5914
        %v5932 = vunpack.c.l.b16 %v5915
        %v5933 = vunpack.c.h.b16 %v5915
        %v5934 = vunpack.c.l.b16 %v5916
        %v5935 = vunpack.c.h.b16 %v5916
        %v5936 = vunpack.c.l.b16 %v5917
        %v5937 = vunpack.c.h.b16 %v5917
        %v5938 = vunpack.c.l.b16 %v5918
        %v5939 = vunpack.c.h.b16 %v5918
        %v5940 = vunpack.c.l.b16 %v5919
        %v5941 = vunpack.c.h.b16 %v5919
        %v5942 = vunpack.c.l.b16 %v5920
        %v5943 = vunpack.c.h.b16 %v5920
        %v5944 = vunpack.c.l.b16 %v5921
        %v5945 = vunpack.c.h.b16 %v5921
        %v5946 = vpack.c.b16 %v5930, %v5930
        %v5947 = vpack.c.b16 %v5931, %v5931
        %v5948 = vpack.c.b16 %v5932, %v5932
        %v5949 = vpack.c.b16 %v5933, %v5933
        %v5950 = vpack.c.b16 %v5934, %v5934
        %v5951 = vpack.c.b16 %v5935, %v5935
        %v5952 = vpack.c.b16 %v5936, %v5936
        %v5953 = vpack.c.b16 %v5937, %v5937
        %v5954 = vpack.c.b16 %v5938, %v5938
        %v5955 = vpack.c.b16 %v5939, %v5939
        %v5956 = vpack.c.b16 %v5940, %v5940
        %v5957 = vpack.c.b16 %v5941, %v5941
        %v5958 = vpack.c.b16 %v5942, %v5942
        %v5959 = vpack.c.b16 %v5943, %v5943
        %v5960 = vpack.c.b16 %v5944, %v5944
        %v5961 = vpack.c.b16 %v5945, %v5945
        %5978 = vst [vmem:[%s339] sm:$0xf] %v5946
        %5979 = vst [vmem:[%s339 + $0x4] sm:$0xf] %v5947
        %5980 = vst [vmem:[%s339 + $0x8] sm:$0xf] %v5948
        %5981 = vst [vmem:[%s339 + $0xc] sm:$0xf] %v5949
        %5982 = vst [vmem:[%s339 + $0x10] sm:$0xf] %v5950
        %5983 = vst [vmem:[%s339 + $0x14] sm:$0xf] %v5951
        %5984 = vst [vmem:[%s339 + $0x18] sm:$0xf] %v5952
        %5985 = vst [vmem:[%s339 + $0x1c] sm:$0xf] %v5953
        %5986 = vst [vmem:[%s339 + $0x20] sm:$0xf] %v5954
        %5987 = vst [vmem:[%s339 + $0x24] sm:$0xf] %v5955
        %5988 = vst [vmem:[%s339 + $0x28] sm:$0xf] %v5956
        %5989 = vst [vmem:[%s339 + $0x2c] sm:$0xf] %v5957
        %5990 = vst [vmem:[%s339 + $0x30] sm:$0xf] %v5958
        %5991 = vst [vmem:[%s339 + $0x34] sm:$0xf] %v5959
        %5992 = vst [vmem:[%s339 + $0x38] sm:$0xf] %v5960
        %5993 = vst [vmem:[%s339 + $0x3c] sm:$0xf] %v5961
        %s5994 = sand.u32 %s199, 1
        %s5995 = scalar_lea.sflag [#allocation6], %s5994
        %s5996 = sand.u32 %s199, 1
        %s5997 = smul.addr %s5996, 64
        %s5998 = scalar_lea.vmem [#allocation10], %s5997
        // Predicated region
        $region69: #{tpu_custom_call.1} parent=47 // pred_check
          %p5999 = pneg %p209
        $region70: #{tpu_custom_call.1} parent=47 // pred_check_branch
          %6001 = sbr.rel (%p5999) target = $region72
        $region71: #{tpu_custom_call.1} parent=47 // pred_region
          %s6002 = smul.u32 16, %s30
          %s6004 = ssub.s32 1024, 1024
          %6005 = vsyncadd %s5995, %s6004
          %s6006 = smul.addr %s29, 64
          %s6007 = sadd.s32 %s6002, %s6006
          %s6008 = smul.addr %s6007, 64
          %s6009 = scalar_lea.hbm %s7, %s6008
          %s6010 = sshll.u32 %s5998, 4
          %s6011 = int_to_ptr.vmem [resolvable:$true] %s6010
          %6016 = dma.vmem_to_hbm [thread:$0]  %s6011, 1024, %s6009, %s5995, 64, 64, 4
        $region72: #{tpu_custom_call.1} parent=47 // pred_fallthru
          _
      $region48: #{tpu_custom_call.1} parent=5 // pred_fallthru
        _
      %p6017 = scmp.le.s32.totalorder 2, %s20
      // Predicated region
      $region73: #{tpu_custom_call.1} parent=5 // pred_check
        %p6018 = pneg %p6017
      $region74: #{tpu_custom_call.1} parent=5 // pred_check_branch
        %6020 = sbr.rel (%p6018) target = $region76
      $region75: #{tpu_custom_call.1} parent=5 // pred_region
        %s6021 = ssub.s32 %s20, 2
        // Predicated region
        $region77: #{tpu_custom_call.1} parent=75 // pred_check
          %p6022 = pneg %p215
        $region78: #{tpu_custom_call.1} parent=75 // pred_check_branch
          %6024 = sbr.rel (%p6022) target = $region80
        $region79: #{tpu_custom_call.1} parent=75 // pred_region
          %s6025 = sand.u32 %s200, 1
          %s6026 = scalar_lea.sflag [#allocation6], %s6025
          %s6027 = sand.u32 %s200, 1
          %s6028 = smul.addr %s6027, 64
          %s6029 = scalar_lea.vmem [#allocation10], %s6028
          %6030 = dma.done %s6026, 1024
        $region80: #{tpu_custom_call.1} parent=75 // pred_fallthru
          _
      $region76: #{tpu_custom_call.1} parent=5 // pred_fallthru
        _
    $region6: #{tpu_custom_call.1} parent=1 // loop_footer
      %s24 = sadd.s32 1, %s20
    $region7: #{tpu_custom_call.1} parent=1 // loop_footer_branch
      %19 = sbr.rel target = $region3
    $region8: #{tpu_custom_call.1} parent=1 // loop_exit
      _
    %6031 = vsyncpa [#allocation5], 1
    %s6032 = scalar_lea.sflag [#allocation5], 1
    %6033 = vsyncpa %s6032, 1
    %6034 = vsyncpa [#allocation8], 1
    %6035 = vsyncpa [#allocation6], 1
    %s6036 = scalar_lea.sflag [#allocation6], 1
    %6037 = vsyncpa %s6036, 1

</llo_original>
